<compile_context>
chip_gen: v7x
topology: tpu7x:2x2x1
jax: 0.10.0
libtpu: 0.0.40
codegen_flags: <defaults>
</compile_context>

<pallas_src>
import functools
import math

import jax
import jax.numpy as jnp
from jax import lax
from jax.experimental import pallas as pl
from jax.experimental.pallas import tpu as pltpu

_LN_EPS = 1e-6


# ----------------------------------------------------------------------------- helpers
def _round_up(x, m):
    return (x + m - 1) // m * m


def _default_vmem_limit():
    """Generation-aware scoped-VMEM limit (v7x: ~54 MiB, v5e/v6e: 100 MiB)."""
    try:
        cap = int(pltpu.get_tpu_info().vmem_capacity_bytes)
        return max(32 * 1024 * 1024, min(cap - 10 * 1024 * 1024, 100 * 1024 * 1024))
    except Exception:
        return 48 * 1024 * 1024


_VMEM_LIMIT = _default_vmem_limit()


def _row_tile(m, target=256):
    """Row tile (multiple of 8). Aims for >=2 row blocks so v7x megacore engages."""
    if m >= 2 * target:
        return target
    return _round_up(max(8, -(-m // 2)), 8)


def _col_tile(n, target=512):
    """Largest divisor of n that is a multiple of 128 and <= target, else n (full)."""
    t = (min(target, n) // 128) * 128
    while t >= 128:
        if n % t == 0:
            return t
        t -= 128
    return n


def _head_group(num_heads, dh, target=512):
    """Heads packed per K2 grid step so block width is a multiple of 128 (lane-dense)."""
    best = None
    for g in range(1, num_heads + 1):
        if num_heads % g == 0 and (g * dh) % 128 == 0 and g * dh <= target:
            best = g
    return best if best is not None else num_heads   # fall back to full width (== D)


def _layernorm_f32(x, g, b):
    x = x.astype(jnp.float32)
    mu = jnp.mean(x, axis=-1, keepdims=True)
    var = jnp.mean(jnp.square(x - mu), axis=-1, keepdims=True)
    return (x - mu) * lax.rsqrt(var + _LN_EPS) * g + b


def _gelu_exact(x):
    # PyTorch nn.GELU() default = exact erf formulation.
    # (jax.nn.gelu(approximate=True) is an EUP-friendly drop-in if exact parity is waived.)
    return 0.5 * x * (1.0 + lax.erf(x * (1.0 / math.sqrt(2.0))))


# ----------------------------------------------------------------------------- kernels
def _ln_qkv_kernel(x_ref, g_ref, b_ref, wq_ref, wk_ref, wv_ref,
                   q_ref, k_ref, v_ref, xn_sc):
    """LayerNorm1 + QKV projection, column-tiled over D; LN cached in VMEM scratch."""
    @pl.when(pl.program_id(1) == 0)
    def _():
        xn_sc[...] = _layernorm_f32(x_ref[...], g_ref[...], b_ref[...])

    xn = xn_sc[...].astype(wq_ref.dtype)   # bf16 in fast mode -> MXU-native
    q_ref[...] = jnp.dot(xn, wq_ref[...], preferred_element_type=jnp.float32).astype(q_ref.dtype)
    k_ref[...] = jnp.dot(xn, wk_ref[...], preferred_element_type=jnp.float32).astype(k_ref.dtype)
    v_ref[...] = jnp.dot(xn, wv_ref[...], preferred_element_type=jnp.float32).astype(v_ref.dtype)


def _attn_kernel(q_ref, k_ref, v_ref, o_ref, *, scale, heads, dh, mm_dtype, approx_recip):
    """Softmax attention for one (batch, head-group); blocks are (N, heads*dh)."""
    outs = []
    for i in range(heads):                       # static unroll over packed heads
        lo, hi = i * dh, (i + 1) * dh
        q = q_ref[:, lo:hi].astype(jnp.float32) * scale   # fold scale into q (N*dh muls)
        k = k_ref[:, lo:hi].astype(jnp.float32)
        s = lax.dot_general(q.astype(mm_dtype), k.astype(mm_dtype),
                            (((1,), (1,)), ((), ())),
                            preferred_element_type=jnp.float32)
        m = jnp.max(s, axis=-1, keepdims=True)
        p = jnp.exp(s - m)
        l = jnp.sum(p, axis=-1, keepdims=True)
        if approx_recip:
            p = p * pl.reciprocal(l, approx=True)          # EUP slot, off the VALU path
        else:
            p = p / l                                      # attn_drop(p=0.0) == identity
        o = jnp.dot(p.astype(mm_dtype), v_ref[:, lo:hi].astype(mm_dtype),
                    preferred_element_type=jnp.float32)
        outs.append(o)
    out = outs[0] if heads == 1 else jnp.concatenate(outs, axis=-1)
    o_ref[...] = out.astype(o_ref.dtype)                   # lane-dense store


def _proj_res_mlp_kernel(ctx_ref, x_ref, wp_ref, bp_ref, g2_ref, b2ln_ref,
                         w1_ref, b1_ref, w2_ref, b2_ref, o_ref,
                         xmid_sc, normed_sc, acc_sc):
    """proj + residual + LayerNorm2 + MLP (fc1->GELU->fc2) + residual.

    Grid axis 1 tiles the MLP hidden dim (reduction); fc2 accumulates into a
    VMEM f32 scratch, init at j==0, writeback (+ bias + residual) at j==last.
    """
    j = pl.program_id(1)

    @pl.when(j == 0)
    def _():
        xm = jnp.dot(ctx_ref[...].astype(wp_ref.dtype), wp_ref[...],
                     preferred_element_type=jnp.float32)
        xm = xm + bp_ref[...] + x_ref[...].astype(jnp.float32)   # first residual
        xmid_sc[...] = xm
        normed_sc[...] = _layernorm_f32(xm, g2_ref[...], b2ln_ref[...])
        acc_sc[...] = jnp.zeros_like(acc_sc)

    h = jnp.dot(normed_sc[...].astype(w1_ref.dtype), w1_ref[...],
                preferred_element_type=jnp.float32)
    h = _gelu_exact(h + b1_ref[...])
    acc_sc[...] += jnp.dot(h.astype(w2_ref.dtype), w2_ref[...],
                           preferred_element_type=jnp.float32)

    @pl.when(j == pl.num_programs(1) - 1)
    def _():
        o_ref[...] = (acc_sc[...] + b2_ref[...] + xmid_sc[...]).astype(o_ref.dtype)


# ----------------------------------------------------------------------------- wrapper
@functools.partial(jax.jit,
                   static_argnames=("num_heads", "fast", "tm_target", "tc_target", "th_target"))
def block_forward(x, params, *, num_heads, fast=True,
                  tm_target=256, tc_target=512, th_target=512):
    """x: [B, N, D] -> [B, N, D] (transformer Block forward)."""
    B, N, D = x.shape
    H = num_heads
    dh = D // H
    assert dh * H == D, "dim must be divisible by num_heads"
    # TODO(synk): sequences with N % 8 != 0 (e.g. ViT's 197 tokens) need padding + masking.
    assert N % 8 == 0, "sequence length must be a multiple of 8 for the attention tiling"
    Hd = params["w1"].shape[1]
    dtype = x.dtype
    mm_dtype = jnp.bfloat16 if fast else jnp.float32

    M = B * N
    tm = _row_tile(M, tm_target)
    M_pad = _round_up(M, tm)
    grid_rows = M_pad // tm
    tc = _col_tile(D, tc_target)           # K1 output-column tile (per q/k/v)
    grid_c = D // tc
    tH = _col_tile(Hd, th_target)          # K3 MLP hidden-dim tile
    grid_h = Hd // tH
    G = _head_group(H, dh)                 # heads packed per K2 step (lane density)
    Wg = G * dh
    grid_g = H // G

    x2 = x.reshape(M, D)
    if M_pad != M:
        x2 = jnp.pad(x2, ((0, M_pad - M), (0, 0)))

    g1 = params["ln1_g"].reshape(1, D)
    b1n = params["ln1_b"].reshape(1, D)
    g2 = params["ln2_g"].reshape(1, D)
    b2n = params["ln2_b"].reshape(1, D)
    wqkv = params["wqkv"].astype(mm_dtype)              # (D, 3D), qkv_bias=False
    wq, wk, wv = wqkv[:, :D], wqkv[:, D:2 * D], wqkv[:, 2 * D:]
    wproj = params["wproj"].astype(mm_dtype)            # (D, D)
    bproj = params["bproj"].reshape(1, D)
    w1 = params["w1"].astype(mm_dtype)                  # (D, Hd)
    b1 = params["b1"].reshape(1, Hd)
    w2 = params["w2"].astype(mm_dtype)                  # (Hd, D)
    b2 = params["b2"].reshape(1, D)

    wbytes = jnp.dtype(mm_dtype).itemsize
    xbytes = jnp.dtype(dtype).itemsize

    # ---- K1: LayerNorm1 + QKV projection (column-tiled, LN cached in scratch) -------
    q, k, v = pl.pallas_call(
        _ln_qkv_kernel,
        out_shape=(jax.ShapeDtypeStruct((M_pad, D), dtype),
                   jax.ShapeDtypeStruct((M_pad, D), dtype),
                   jax.ShapeDtypeStruct((M_pad, D), dtype)),
        grid_spec=pltpu.PrefetchScalarGridSpec(
            num_scalar_prefetch=0,
            grid=(grid_rows, grid_c),
            in_specs=[
                pl.BlockSpec((tm, D), lambda i, n: (i, 0)),      # x rows
                pl.BlockSpec((1, D), lambda i, n: (0, 0)),       # ln1 gamma
                pl.BlockSpec((1, D), lambda i, n: (0, 0)),       # ln1 beta
                pl.BlockSpec((D, tc), lambda i, n: (0, n)),      # wq column tile
                pl.BlockSpec((D, tc), lambda i, n: (0, n)),      # wk column tile
                pl.BlockSpec((D, tc), lambda i, n: (0, n)),      # wv column tile
            ],
            out_specs=(pl.BlockSpec((tm, tc), lambda i, n: (i, n)),
                       pl.BlockSpec((tm, tc), lambda i, n: (i, n)),
                       pl.BlockSpec((tm, tc), lambda i, n: (i, n))),
            scratch_shapes=[pltpu.VMEM((tm, D), jnp.float32)],   # cached LayerNorm1(x)
        ),
        compiler_params=pltpu.CompilerParams(
            dimension_semantics=("parallel", "arbitrary"),
            vmem_limit_bytes=_VMEM_LIMIT,
        ),
        cost_estimate=pl.CostEstimate(
            flops=2 * M_pad * D * 3 * D,
            transcendentals=M_pad,
            bytes_accessed=xbytes * 4 * M_pad * D + wbytes * 3 * D * D,
        ),
    )(x2, g1, b1n, wq, wk, wv)

    # ---- K2: softmax attention per (batch, head-group) -------------------------------
    scale = dh ** (-0.5)
    ctx = pl.pallas_call(
        functools.partial(_attn_kernel, scale=scale, heads=G, dh=dh,
                          mm_dtype=mm_dtype, approx_recip=fast),
        out_shape=jax.ShapeDtypeStruct((M_pad, D), dtype),
        grid_spec=pltpu.PrefetchScalarGridSpec(
            num_scalar_prefetch=0,
            grid=(B, grid_g),
            in_specs=[
                pl.BlockSpec((N, Wg), lambda b, g: (b, g)),      # q heads [g*G, (g+1)*G)
                pl.BlockSpec((N, Wg), lambda b, g: (b, g)),      # k
                pl.BlockSpec((N, Wg), lambda b, g: (b, g)),      # v
            ],
            out_specs=pl.BlockSpec((N, Wg), lambda b, g: (b, g)),  # ctx in (M, D) layout
        ),
        compiler_params=pltpu.CompilerParams(
            dimension_semantics=("parallel", "parallel"),
            vmem_limit_bytes=_VMEM_LIMIT,
        ),
        cost_estimate=pl.CostEstimate(
            flops=4 * B * N * N * D,
            transcendentals=B * H * N * N,
            bytes_accessed=xbytes * 4 * B * N * D,
        ),
    )(q, k, v)

    # ---- K3: proj + residual + LayerNorm2 + MLP + residual ---------------------------
    out2 = pl.pallas_call(
        _proj_res_mlp_kernel,
        out_shape=jax.ShapeDtypeStruct((M_pad, D), dtype),
        grid_spec=pltpu.PrefetchScalarGridSpec(
            num_scalar_prefetch=0,
            grid=(grid_rows, grid_h),                            # hidden (reduction) axis last
            in_specs=[
                pl.BlockSpec((tm, D), lambda i, j: (i, 0)),      # attention context
                pl.BlockSpec((tm, D), lambda i, j: (i, 0)),      # residual input x
                pl.BlockSpec((D, D), lambda i, j: (0, 0)),       # wproj
                pl.BlockSpec((1, D), lambda i, j: (0, 0)),       # bproj
                pl.BlockSpec((1, D), lambda i, j: (0, 0)),       # ln2 gamma
                pl.BlockSpec((1, D), lambda i, j: (0, 0)),       # ln2 beta
                pl.BlockSpec((D, tH), lambda i, j: (0, j)),      # w1 hidden tile
                pl.BlockSpec((1, tH), lambda i, j: (0, j)),      # b1 hidden tile
                pl.BlockSpec((tH, D), lambda i, j: (j, 0)),      # w2 hidden tile
                pl.BlockSpec((1, D), lambda i, j: (0, 0)),       # b2
            ],
            out_specs=pl.BlockSpec((tm, D), lambda i, j: (i, 0)),
            scratch_shapes=[
                pltpu.VMEM((tm, D), jnp.float32),   # x_mid (after first residual)
                pltpu.VMEM((tm, D), jnp.float32),   # LayerNorm2 output (reused per j)
                pltpu.VMEM((tm, D), jnp.float32),   # fc2 accumulator
            ],
        ),
        compiler_params=pltpu.CompilerParams(
            dimension_semantics=("parallel", "arbitrary"),
            vmem_limit_bytes=_VMEM_LIMIT,
        ),
        cost_estimate=pl.CostEstimate(
            flops=2 * M_pad * D * D + 4 * M_pad * D * Hd,
            transcendentals=M_pad * Hd + M_pad,
            bytes_accessed=xbytes * 3 * M_pad * D + wbytes * (D * D + 2 * D * Hd),
        ),
    )(ctx, x2, wproj, bproj, g2, b2n, w1, b1, w2, b2)

    return out2[:M].reshape(B, N, D)


# ----------------------------------------------------------------------------- params / reference
def init_block_params(key, dim, num_heads, mlp_ratio=4.0, dtype=jnp.float32):
    """Synthetic deterministic init mimicking nn.Linear / nn.LayerNorm defaults."""
    del num_heads
    hidden = int(dim * mlp_ratio)
    ks = jax.random.split(key, 11)

    def uni(k, shape, fan_in):
        lim = 1.0 / math.sqrt(fan_in)
        return jax.random.uniform(k, shape, dtype, -lim, lim)

    return {
        "ln1_g": jnp.ones((dim,), dtype) + 0.05 * jax.random.normal(ks[0], (dim,), dtype),
        "ln1_b": 0.05 * jax.random.normal(ks[1], (dim,), dtype),
        "wqkv": uni(ks[2], (dim, 3 * dim), dim),     # qkv_bias=False (Block default)
        "wproj": uni(ks[3], (dim, dim), dim),
        "bproj": uni(ks[4], (dim,), dim),
        "ln2_g": jnp.ones((dim,), dtype) + 0.05 * jax.random.normal(ks[5], (dim,), dtype),
        "ln2_b": 0.05 * jax.random.normal(ks[6], (dim,), dtype),
        "w1": uni(ks[7], (dim, hidden), dim),
        "b1": uni(ks[8], (hidden,), dim),
        "w2": uni(ks[9], (hidden, dim), hidden),
        "b2": uni(ks[10], (dim,), hidden),
    }


def block_reference(x, p, num_heads):
    """Pure-JAX reference, same math path as the PyTorch Block forward."""
    B, N, D = x.shape
    H = num_heads
    dh = D // H

    def ln(y, g, b):
        mu = y.mean(-1, keepdims=True)
        var = ((y - mu) ** 2).mean(-1, keepdims=True)
        return (y - mu) / jnp.sqrt(var + _LN_EPS) * g + b

    xn = ln(x, p["ln1_g"], p["ln1_b"])
    qkv = xn @ p["wqkv"]
    qkv = qkv.reshape(B, N, 3, H, dh).transpose(2, 0, 3, 1, 4)
    q, k, v = qkv[0], qkv[1], qkv[2]
    s = jnp.einsum("bhnd,bhmd->bhnm", q, k) * (dh ** (-0.5))
    a = jax.nn.softmax(s, axis=-1)
    ctx = jnp.einsum("bhnm,bhmd->bhnd", a, v)
    ctx = ctx.transpose(0, 2, 1, 3).reshape(B, N, D)
    x = x + ctx @ p["wproj"] + p["bproj"]
    xn2 = ln(x, p["ln2_g"], p["ln2_b"])
    h = xn2 @ p["w1"] + p["b1"]
    h = 0.5 * h * (1.0 + lax.erf(h / jnp.sqrt(2.0)))
    return x + h @ p["w2"] + p["b2"]


if __name__ == "__main__":
    key = jax.random.PRNGKey(0)
    kx, kp = jax.random.split(key)

    # dim=32, num_heads=4 (head_dim=8), mlp_hidden=128, seq=8, batch=2
    B, N, D, H = 2, 8, 32, 4
    x = jax.random.normal(kx, (B, N, D), dtype=jnp.float32)
    params = init_block_params(kp, D, H, mlp_ratio=4.0)

    ref = block_reference(x, params, H)

    # Precise path (f32 MXU operands, exact reciprocal): tight reference check.
    out_f32 = block_forward(x, params, num_heads=H, fast=False)
    jax.block_until_ready(out_f32)
    assert out_f32.shape == ref.shape
    assert jnp.allclose(out_f32, ref, atol=2e-4, rtol=2e-4), \
        f"f32 mismatch vs reference, max err={float(jnp.max(jnp.abs(out_f32 - ref)))}"

    # Fast path (bf16 MXU operands + approx reciprocal): loose reference check.
    out_fast = block_forward(x, params, num_heads=H, fast=True)
    jax.block_until_ready(out_fast)
    assert jnp.allclose(out_fast, ref, atol=1e-1, rtol=1e-1), \
        f"bf16 mismatch vs reference, max err={float(jnp.max(jnp.abs(out_fast - ref)))}"

    print("KERNEL_OK")
</pallas_src>

<mosaic_0001>
module attributes {stable_mosaic.version = 11 : i64} {
  func.func @_attn_kernel(%arg0: i32, %arg1: i32, %arg2: memref<8x32xf32, #tpu.memory_space<vmem>>, %arg3: memref<8x32xf32, #tpu.memory_space<vmem>>, %arg4: memref<8x32xf32, #tpu.memory_space<vmem>>, %arg5: memref<8x32xf32, #tpu.memory_space<vmem>>) attributes {dimension_semantics = [#tpu.dimension_semantics<parallel>, #tpu.dimension_semantics<parallel>], iteration_bounds = array<i64: 2, 1>, scalar_prefetch = 0 : i64, scratch_operands = 0 : i64, tpu.core_type = #tpu.core_type<tc>, window_params = [{transform_indices = @transform_0, window_bounds = array<i64: 8, 32>}, {transform_indices = @transform_1, window_bounds = array<i64: 8, 32>}, {transform_indices = @transform_2, window_bounds = array<i64: 8, 32>}, {transform_indices = @transform_3, window_bounds = array<i64: 8, 32>}]} {
    %c0 = arith.constant 0 : index
    %c0_0 = arith.constant 0 : index
    %0 = vector.load %arg2[%c0, %c0_0] : memref<8x32xf32, #tpu.memory_space<vmem>>, vector<8x8xf32>
    %cst = arith.constant 0.353553385 : f32
    %1 = vector.broadcast %cst : f32 to vector<8x8xf32>
    %2 = arith.mulf %0, %1 : vector<8x8xf32>
    %c0_1 = arith.constant 0 : index
    %c0_2 = arith.constant 0 : index
    %3 = vector.load %arg3[%c0_1, %c0_2] : memref<8x32xf32, #tpu.memory_space<vmem>>, vector<8x8xf32>
    %cst_3 = arith.constant dense<0.000000e+00> : vector<8x8xf32>
    %4 = tpu.matmul %2, %3, %cst_3 {dimension_numbers = #tpu.dot_dimension_numbers<[1], [1], [0], [0], [0, 0, 1, 0], [], []>} : vector<8x8xf32>, vector<8x8xf32>, vector<8x8xf32> -> vector<8x8xf32>
    %cst_4 = arith.constant dense<0xFF800000> : vector<8xf32>
    %5 = vector.multi_reduction <maximumf>, %4, %cst_4 [1] : vector<8x8xf32> to vector<8xf32>
    %6 = vector.shape_cast %5 : vector<8xf32> to vector<8x1xf32>
    %7 = vector.broadcast %6 : vector<8x1xf32> to vector<8x8xf32>
    %8 = arith.subf %4, %7 : vector<8x8xf32>
    %9 = math.exp %8 : vector<8x8xf32>
    %cst_5 = arith.constant dense<0.000000e+00> : vector<8xf32>
    %10 = vector.multi_reduction <add>, %9, %cst_5 [1] : vector<8x8xf32> to vector<8xf32>
    %11 = vector.shape_cast %10 : vector<8xf32> to vector<8x1xf32>
    %12 = vector.broadcast %11 : vector<8x1xf32> to vector<8x8xf32>
    %13 = arith.divf %9, %12 : vector<8x8xf32>
    %c0_6 = arith.constant 0 : index
    %c0_7 = arith.constant 0 : index
    %14 = vector.load %arg4[%c0_6, %c0_7] : memref<8x32xf32, #tpu.memory_space<vmem>>, vector<8x8xf32>
    %cst_8 = arith.constant dense<0.000000e+00> : vector<8x8xf32>
    %15 = tpu.matmul %13, %14, %cst_8 {dimension_numbers = #tpu.dot_dimension_numbers<[1], [0], [0], [1], [0, 0, 1, 1], [], []>} : vector<8x8xf32>, vector<8x8xf32>, vector<8x8xf32> -> vector<8x8xf32>
    %c0_9 = arith.constant 0 : index
    %c8 = arith.constant 8 : index
    %16 = vector.load %arg2[%c0_9, %c8] : memref<8x32xf32, #tpu.memory_space<vmem>>, vector<8x8xf32>
    %cst_10 = arith.constant 0.353553385 : f32
    %17 = vector.broadcast %cst_10 : f32 to vector<8x8xf32>
    %18 = arith.mulf %16, %17 : vector<8x8xf32>
    %c0_11 = arith.constant 0 : index
    %c8_12 = arith.constant 8 : index
    %19 = vector.load %arg3[%c0_11, %c8_12] : memref<8x32xf32, #tpu.memory_space<vmem>>, vector<8x8xf32>
    %cst_13 = arith.constant dense<0.000000e+00> : vector<8x8xf32>
    %20 = tpu.matmul %18, %19, %cst_13 {dimension_numbers = #tpu.dot_dimension_numbers<[1], [1], [0], [0], [0, 0, 1, 0], [], []>} : vector<8x8xf32>, vector<8x8xf32>, vector<8x8xf32> -> vector<8x8xf32>
    %cst_14 = arith.constant dense<0xFF800000> : vector<8xf32>
    %21 = vector.multi_reduction <maximumf>, %20, %cst_14 [1] : vector<8x8xf32> to vector<8xf32>
    %22 = vector.shape_cast %21 : vector<8xf32> to vector<8x1xf32>
    %23 = vector.broadcast %22 : vector<8x1xf32> to vector<8x8xf32>
    %24 = arith.subf %20, %23 : vector<8x8xf32>
    %25 = math.exp %24 : vector<8x8xf32>
    %cst_15 = arith.constant dense<0.000000e+00> : vector<8xf32>
    %26 = vector.multi_reduction <add>, %25, %cst_15 [1] : vector<8x8xf32> to vector<8xf32>
    %27 = vector.shape_cast %26 : vector<8xf32> to vector<8x1xf32>
    %28 = vector.broadcast %27 : vector<8x1xf32> to vector<8x8xf32>
    %29 = arith.divf %25, %28 : vector<8x8xf32>
    %c0_16 = arith.constant 0 : index
    %c8_17 = arith.constant 8 : index
    %30 = vector.load %arg4[%c0_16, %c8_17] : memref<8x32xf32, #tpu.memory_space<vmem>>, vector<8x8xf32>
    %cst_18 = arith.constant dense<0.000000e+00> : vector<8x8xf32>
    %31 = tpu.matmul %29, %30, %cst_18 {dimension_numbers = #tpu.dot_dimension_numbers<[1], [0], [0], [1], [0, 0, 1, 1], [], []>} : vector<8x8xf32>, vector<8x8xf32>, vector<8x8xf32> -> vector<8x8xf32>
    %c0_19 = arith.constant 0 : index
    %c16 = arith.constant 16 : index
    %32 = vector.load %arg2[%c0_19, %c16] : memref<8x32xf32, #tpu.memory_space<vmem>>, vector<8x8xf32>
    %cst_20 = arith.constant 0.353553385 : f32
    %33 = vector.broadcast %cst_20 : f32 to vector<8x8xf32>
    %34 = arith.mulf %32, %33 : vector<8x8xf32>
    %c0_21 = arith.constant 0 : index
    %c16_22 = arith.constant 16 : index
    %35 = vector.load %arg3[%c0_21, %c16_22] : memref<8x32xf32, #tpu.memory_space<vmem>>, vector<8x8xf32>
    %cst_23 = arith.constant dense<0.000000e+00> : vector<8x8xf32>
    %36 = tpu.matmul %34, %35, %cst_23 {dimension_numbers = #tpu.dot_dimension_numbers<[1], [1], [0], [0], [0, 0, 1, 0], [], []>} : vector<8x8xf32>, vector<8x8xf32>, vector<8x8xf32> -> vector<8x8xf32>
    %cst_24 = arith.constant dense<0xFF800000> : vector<8xf32>
    %37 = vector.multi_reduction <maximumf>, %36, %cst_24 [1] : vector<8x8xf32> to vector<8xf32>
    %38 = vector.shape_cast %37 : vector<8xf32> to vector<8x1xf32>
    %39 = vector.broadcast %38 : vector<8x1xf32> to vector<8x8xf32>
    %40 = arith.subf %36, %39 : vector<8x8xf32>
    %41 = math.exp %40 : vector<8x8xf32>
    %cst_25 = arith.constant dense<0.000000e+00> : vector<8xf32>
    %42 = vector.multi_reduction <add>, %41, %cst_25 [1] : vector<8x8xf32> to vector<8xf32>
    %43 = vector.shape_cast %42 : vector<8xf32> to vector<8x1xf32>
    %44 = vector.broadcast %43 : vector<8x1xf32> to vector<8x8xf32>
    %45 = arith.divf %41, %44 : vector<8x8xf32>
    %c0_26 = arith.constant 0 : index
    %c16_27 = arith.constant 16 : index
    %46 = vector.load %arg4[%c0_26, %c16_27] : memref<8x32xf32, #tpu.memory_space<vmem>>, vector<8x8xf32>
    %cst_28 = arith.constant dense<0.000000e+00> : vector<8x8xf32>
    %47 = tpu.matmul %45, %46, %cst_28 {dimension_numbers = #tpu.dot_dimension_numbers<[1], [0], [0], [1], [0, 0, 1, 1], [], []>} : vector<8x8xf32>, vector<8x8xf32>, vector<8x8xf32> -> vector<8x8xf32>
    %c0_29 = arith.constant 0 : index
    %c24 = arith.constant 24 : index
    %48 = vector.load %arg2[%c0_29, %c24] : memref<8x32xf32, #tpu.memory_space<vmem>>, vector<8x8xf32>
    %cst_30 = arith.constant 0.353553385 : f32
    %49 = vector.broadcast %cst_30 : f32 to vector<8x8xf32>
    %50 = arith.mulf %48, %49 : vector<8x8xf32>
    %c0_31 = arith.constant 0 : index
    %c24_32 = arith.constant 24 : index
    %51 = vector.load %arg3[%c0_31, %c24_32] : memref<8x32xf32, #tpu.memory_space<vmem>>, vector<8x8xf32>
    %cst_33 = arith.constant dense<0.000000e+00> : vector<8x8xf32>
    %52 = tpu.matmul %50, %51, %cst_33 {dimension_numbers = #tpu.dot_dimension_numbers<[1], [1], [0], [0], [0, 0, 1, 0], [], []>} : vector<8x8xf32>, vector<8x8xf32>, vector<8x8xf32> -> vector<8x8xf32>
    %cst_34 = arith.constant dense<0xFF800000> : vector<8xf32>
    %53 = vector.multi_reduction <maximumf>, %52, %cst_34 [1] : vector<8x8xf32> to vector<8xf32>
    %54 = vector.shape_cast %53 : vector<8xf32> to vector<8x1xf32>
    %55 = vector.broadcast %54 : vector<8x1xf32> to vector<8x8xf32>
    %56 = arith.subf %52, %55 : vector<8x8xf32>
    %57 = math.exp %56 : vector<8x8xf32>
    %cst_35 = arith.constant dense<0.000000e+00> : vector<8xf32>
    %58 = vector.multi_reduction <add>, %57, %cst_35 [1] : vector<8x8xf32> to vector<8xf32>
    %59 = vector.shape_cast %58 : vector<8xf32> to vector<8x1xf32>
    %60 = vector.broadcast %59 : vector<8x1xf32> to vector<8x8xf32>
    %61 = arith.divf %57, %60 : vector<8x8xf32>
    %c0_36 = arith.constant 0 : index
    %c24_37 = arith.constant 24 : index
    %62 = vector.load %arg4[%c0_36, %c24_37] : memref<8x32xf32, #tpu.memory_space<vmem>>, vector<8x8xf32>
    %cst_38 = arith.constant dense<0.000000e+00> : vector<8x8xf32>
    %63 = tpu.matmul %61, %62, %cst_38 {dimension_numbers = #tpu.dot_dimension_numbers<[1], [0], [0], [1], [0, 0, 1, 1], [], []>} : vector<8x8xf32>, vector<8x8xf32>, vector<8x8xf32> -> vector<8x8xf32>
    %64 = tpu.concatenate %15, %31, %47, %63 in 1 : vector<8x8xf32>, vector<8x8xf32>, vector<8x8xf32>, vector<8x8xf32> -> vector<8x32xf32>
    %c0_39 = arith.constant 0 : index
    %c0_40 = arith.constant 0 : index
    %65 = vector.load %arg5[%c0_39, %c0_40] : memref<8x32xf32, #tpu.memory_space<vmem>>, vector<8x32xf32>
    tpu.vector_store %arg5[%c0_39, %c0_40], %64 {strides = array<i32>} : memref<8x32xf32, #tpu.memory_space<vmem>>, vector<8x32xf32>,
    return
  }
  func.func @transform_0(%arg0: i32, %arg1: i32) -> (i32, i32) {
    %c0_i32 = arith.constant 0 : i32
    return %arg0, %arg1 : i32, i32
  }
  func.func @transform_1(%arg0: i32, %arg1: i32) -> (i32, i32) {
    %c0_i32 = arith.constant 0 : i32
    return %arg0, %arg1 : i32, i32
  }
  func.func @transform_2(%arg0: i32, %arg1: i32) -> (i32, i32) {
    %c0_i32 = arith.constant 0 : i32
    return %arg0, %arg1 : i32, i32
  }
  func.func @transform_3(%arg0: i32, %arg1: i32) -> (i32, i32) {
    %c0_i32 = arith.constant 0 : i32
    return %arg0, %arg1 : i32, i32
  }
}

module attributes {stable_mosaic.version = 11 : i64} {
  func.func @_ln_qkv_kernel(%arg0: i32, %arg1: i32, %arg2: memref<8x32xf32, #tpu.memory_space<vmem>>, %arg3: memref<1x32xf32, #tpu.memory_space<vmem>>, %arg4: memref<1x32xf32, #tpu.memory_space<vmem>>, %arg5: memref<32x32xf32, #tpu.memory_space<vmem>>, %arg6: memref<32x32xf32, #tpu.memory_space<vmem>>, %arg7: memref<32x32xf32, #tpu.memory_space<vmem>>, %arg8: memref<8x32xf32, #tpu.memory_space<vmem>>, %arg9: memref<8x32xf32, #tpu.memory_space<vmem>>, %arg10: memref<8x32xf32, #tpu.memory_space<vmem>>, %arg11: memref<8x32xf32, #tpu.memory_space<vmem>>) attributes {dimension_semantics = [#tpu.dimension_semantics<parallel>, #tpu.dimension_semantics<arbitrary>], iteration_bounds = array<i64: 2, 1>, scalar_prefetch = 0 : i64, scratch_operands = 1 : i64, tpu.core_type = #tpu.core_type<tc>, window_params = [{transform_indices = @transform_0, window_bounds = array<i64: 8, 32>}, {pipeline_mode = #tpu.pipeline_mode<synchronous>, transform_indices = @transform_1, window_bounds = array<i64: 1, 32>}, {pipeline_mode = #tpu.pipeline_mode<synchronous>, transform_indices = @transform_2, window_bounds = array<i64: 1, 32>}, {transform_indices = @transform_3, window_bounds = array<i64: 32, 32>}, {transform_indices = @transform_4, window_bounds = array<i64: 32, 32>}, {transform_indices = @transform_5, window_bounds = array<i64: 32, 32>}, {transform_indices = @transform_6, window_bounds = array<i64: 8, 32>}, {transform_indices = @transform_7, window_bounds = array<i64: 8, 32>}, {transform_indices = @transform_8, window_bounds = array<i64: 8, 32>}]} {
    %c0_i32 = arith.constant 0 : i32
    %0 = arith.cmpi eq, %arg1, %c0_i32 : i32
    %1 = arith.extui %0 : i1 to i32
    %c0_i32_0 = arith.constant 0 : i32
    %2 = arith.cmpi ne, %1, %c0_i32_0 : i32
    scf.if %2 {
      %c0_16 = arith.constant 0 : index
      %c0_17 = arith.constant 0 : index
      %13 = vector.load %arg2[%c0_16, %c0_17] : memref<8x32xf32, #tpu.memory_space<vmem>>, vector<8x32xf32>
      %c0_18 = arith.constant 0 : index
      %c0_19 = arith.constant 0 : index
      %14 = vector.load %arg3[%c0_18, %c0_19] : memref<1x32xf32, #tpu.memory_space<vmem>>, vector<1x32xf32>
      %c0_20 = arith.constant 0 : index
      %c0_21 = arith.constant 0 : index
      %15 = vector.load %arg4[%c0_20, %c0_21] : memref<1x32xf32, #tpu.memory_space<vmem>>, vector<1x32xf32>
      %cst_22 = arith.constant dense<0.000000e+00> : vector<8xf32>
      %16 = vector.multi_reduction <add>, %13, %cst_22 [1] : vector<8x32xf32> to vector<8xf32>
      %17 = vector.shape_cast %16 : vector<8xf32> to vector<8x1xf32>
      %cst_23 = arith.constant 3.200000e+01 : f32
      %18 = vector.broadcast %cst_23 : f32 to vector<8x1xf32>
      %19 = arith.divf %17, %18 : vector<8x1xf32>
      %20 = vector.broadcast %19 : vector<8x1xf32> to vector<8x32xf32>
      %21 = arith.subf %13, %20 : vector<8x32xf32>
      %22 = arith.mulf %21, %21 : vector<8x32xf32>
      %cst_24 = arith.constant dense<0.000000e+00> : vector<8xf32>
      %23 = vector.multi_reduction <add>, %22, %cst_24 [1] : vector<8x32xf32> to vector<8xf32>
      %24 = vector.shape_cast %23 : vector<8xf32> to vector<8x1xf32>
      %cst_25 = arith.constant 3.200000e+01 : f32
      %25 = vector.broadcast %cst_25 : f32 to vector<8x1xf32>
      %26 = arith.divf %24, %25 : vector<8x1xf32>
      %27 = vector.broadcast %19 : vector<8x1xf32> to vector<8x32xf32>
      %28 = arith.subf %13, %27 : vector<8x32xf32>
      %cst_26 = arith.constant 9.99999997E-7 : f32
      %29 = vector.broadcast %cst_26 : f32 to vector<8x1xf32>
      %30 = arith.addf %26, %29 : vector<8x1xf32>
      %31 = math.rsqrt %30 : vector<8x1xf32>
      %32 = vector.broadcast %31 : vector<8x1xf32> to vector<8x32xf32>
      %33 = arith.mulf %28, %32 : vector<8x32xf32>
      %34 = vector.broadcast %14 : vector<1x32xf32> to vector<8x32xf32>
      %35 = arith.mulf %33, %34 : vector<8x32xf32>
      %36 = vector.broadcast %15 : vector<1x32xf32> to vector<8x32xf32>
      %37 = arith.addf %35, %36 : vector<8x32xf32>
      %c0_27 = arith.constant 0 : index
      %c0_28 = arith.constant 0 : index
      %38 = vector.load %arg11[%c0_27, %c0_28] : memref<8x32xf32, #tpu.memory_space<vmem>>, vector<8x32xf32>
      tpu.vector_store %arg11[%c0_27, %c0_28], %37 {strides = array<i32>} : memref<8x32xf32, #tpu.memory_space<vmem>>, vector<8x32xf32>,
    } else {
    }
    %c0 = arith.constant 0 : index
    %c0_1 = arith.constant 0 : index
    %3 = vector.load %arg11[%c0, %c0_1] : memref<8x32xf32, #tpu.memory_space<vmem>>, vector<8x32xf32>
    %c0_2 = arith.constant 0 : index
    %c0_3 = arith.constant 0 : index
    %4 = vector.load %arg5[%c0_2, %c0_3] : memref<32x32xf32, #tpu.memory_space<vmem>>, vector<32x32xf32>
    %cst = arith.constant dense<0.000000e+00> : vector<8x32xf32>
    %5 = tpu.matmul %3, %4, %cst {dimension_numbers = #tpu.dot_dimension_numbers<[1], [0], [0], [1], [0, 0, 1, 1], [], []>} : vector<8x32xf32>, vector<32x32xf32>, vector<8x32xf32> -> vector<8x32xf32>
    %c0_4 = arith.constant 0 : index
    %c0_5 = arith.constant 0 : index
    %6 = vector.load %arg8[%c0_4, %c0_5] : memref<8x32xf32, #tpu.memory_space<vmem>>, vector<8x32xf32>
    tpu.vector_store %arg8[%c0_4, %c0_5], %5 {strides = array<i32>} : memref<8x32xf32, #tpu.memory_space<vmem>>, vector<8x32xf32>,
    %c0_6 = arith.constant 0 : index
    %c0_7 = arith.constant 0 : index
    %7 = vector.load %arg6[%c0_6, %c0_7] : memref<32x32xf32, #tpu.memory_space<vmem>>, vector<32x32xf32>
    %cst_8 = arith.constant dense<0.000000e+00> : vector<8x32xf32>
    %8 = tpu.matmul %3, %7, %cst_8 {dimension_numbers = #tpu.dot_dimension_numbers<[1], [0], [0], [1], [0, 0, 1, 1], [], []>} : vector<8x32xf32>, vector<32x32xf32>, vector<8x32xf32> -> vector<8x32xf32>
    %c0_9 = arith.constant 0 : index
    %c0_10 = arith.constant 0 : index
    %9 = vector.load %arg9[%c0_9, %c0_10] : memref<8x32xf32, #tpu.memory_space<vmem>>, vector<8x32xf32>
    tpu.vector_store %arg9[%c0_9, %c0_10], %8 {strides = array<i32>} : memref<8x32xf32, #tpu.memory_space<vmem>>, vector<8x32xf32>,
    %c0_11 = arith.constant 0 : index
    %c0_12 = arith.constant 0 : index
    %10 = vector.load %arg7[%c0_11, %c0_12] : memref<32x32xf32, #tpu.memory_space<vmem>>, vector<32x32xf32>
    %cst_13 = arith.constant dense<0.000000e+00> : vector<8x32xf32>
    %11 = tpu.matmul %3, %10, %cst_13 {dimension_numbers = #tpu.dot_dimension_numbers<[1], [0], [0], [1], [0, 0, 1, 1], [], []>} : vector<8x32xf32>, vector<32x32xf32>, vector<8x32xf32> -> vector<8x32xf32>
    %c0_14 = arith.constant 0 : index
    %c0_15 = arith.constant 0 : index
    %12 = vector.load %arg10[%c0_14, %c0_15] : memref<8x32xf32, #tpu.memory_space<vmem>>, vector<8x32xf32>
    tpu.vector_store %arg10[%c0_14, %c0_15], %11 {strides = array<i32>} : memref<8x32xf32, #tpu.memory_space<vmem>>, vector<8x32xf32>,
    return
  }
  func.func @transform_0(%arg0: i32, %arg1: i32) -> (i32, i32) {
    %c0_i32 = arith.constant 0 : i32
    %c0_i32_0 = arith.constant 0 : i32
    return %arg0, %c0_i32 : i32, i32
  }
  func.func @transform_1(%arg0: i32, %arg1: i32) -> (i32, i32) {
    %c0_i32 = arith.constant 0 : i32
    %c0_i32_0 = arith.constant 0 : i32
    %c0_i32_1 = arith.constant 0 : i32
    return %c0_i32, %c0_i32_0 : i32, i32
  }
  func.func @transform_2(%arg0: i32, %arg1: i32) -> (i32, i32) {
    %c0_i32 = arith.constant 0 : i32
    %c0_i32_0 = arith.constant 0 : i32
    %c0_i32_1 = arith.constant 0 : i32
    return %c0_i32, %c0_i32_0 : i32, i32
  }
  func.func @transform_3(%arg0: i32, %arg1: i32) -> (i32, i32) {
    %c0_i32 = arith.constant 0 : i32
    %c0_i32_0 = arith.constant 0 : i32
    return %c0_i32, %arg1 : i32, i32
  }
  func.func @transform_4(%arg0: i32, %arg1: i32) -> (i32, i32) {
    %c0_i32 = arith.constant 0 : i32
    %c0_i32_0 = arith.constant 0 : i32
    return %c0_i32, %arg1 : i32, i32
  }
  func.func @transform_5(%arg0: i32, %arg1: i32) -> (i32, i32) {
    %c0_i32 = arith.constant 0 : i32
    %c0_i32_0 = arith.constant 0 : i32
    return %c0_i32, %arg1 : i32, i32
  }
  func.func @transform_6(%arg0: i32, %arg1: i32) -> (i32, i32) {
    %c0_i32 = arith.constant 0 : i32
    return %arg0, %arg1 : i32, i32
  }
  func.func @transform_7(%arg0: i32, %arg1: i32) -> (i32, i32) {
    %c0_i32 = arith.constant 0 : i32
    return %arg0, %arg1 : i32, i32
  }
  func.func @transform_8(%arg0: i32, %arg1: i32) -> (i32, i32) {
    %c0_i32 = arith.constant 0 : i32
    return %arg0, %arg1 : i32, i32
  }
}

module attributes {stable_mosaic.version = 11 : i64} {
  func.func @_proj_res_mlp_kernel(%arg0: i32, %arg1: i32, %arg2: memref<8x32xf32, #tpu.memory_space<vmem>>, %arg3: memref<8x32xf32, #tpu.memory_space<vmem>>, %arg4: memref<32x32xf32, #tpu.memory_space<vmem>>, %arg5: memref<1x32xf32, #tpu.memory_space<vmem>>, %arg6: memref<1x32xf32, #tpu.memory_space<vmem>>, %arg7: memref<1x32xf32, #tpu.memory_space<vmem>>, %arg8: memref<32x128xf32, #tpu.memory_space<vmem>>, %arg9: memref<1x128xf32, #tpu.memory_space<vmem>>, %arg10: memref<128x32xf32, #tpu.memory_space<vmem>>, %arg11: memref<1x32xf32, #tpu.memory_space<vmem>>, %arg12: memref<8x32xf32, #tpu.memory_space<vmem>>, %arg13: memref<8x32xf32, #tpu.memory_space<vmem>>, %arg14: memref<8x32xf32, #tpu.memory_space<vmem>>, %arg15: memref<8x32xf32, #tpu.memory_space<vmem>>) attributes {dimension_semantics = [#tpu.dimension_semantics<parallel>, #tpu.dimension_semantics<arbitrary>], iteration_bounds = array<i64: 2, 1>, scalar_prefetch = 0 : i64, scratch_operands = 3 : i64, tpu.core_type = #tpu.core_type<tc>, window_params = [{transform_indices = @transform_0, window_bounds = array<i64: 8, 32>}, {transform_indices = @transform_1, window_bounds = array<i64: 8, 32>}, {pipeline_mode = #tpu.pipeline_mode<synchronous>, transform_indices = @transform_2, window_bounds = array<i64: 32, 32>}, {pipeline_mode = #tpu.pipeline_mode<synchronous>, transform_indices = @transform_3, window_bounds = array<i64: 1, 32>}, {pipeline_mode = #tpu.pipeline_mode<synchronous>, transform_indices = @transform_4, window_bounds = array<i64: 1, 32>}, {pipeline_mode = #tpu.pipeline_mode<synchronous>, transform_indices = @transform_5, window_bounds = array<i64: 1, 32>}, {transform_indices = @transform_6, window_bounds = array<i64: 32, 128>}, {transform_indices = @transform_7, window_bounds = array<i64: 1, 128>}, {transform_indices = @transform_8, window_bounds = array<i64: 128, 32>}, {pipeline_mode = #tpu.pipeline_mode<synchronous>, transform_indices = @transform_9, window_bounds = array<i64: 1, 32>}, {transform_indices = @transform_10, window_bounds = array<i64: 8, 32>}]} {
    %c0_i32 = arith.constant 0 : i32
    %0 = arith.cmpi eq, %arg1, %c0_i32 : i32
    %1 = arith.extui %0 : i1 to i32
    %c0_i32_0 = arith.constant 0 : i32
    %2 = arith.cmpi ne, %1, %c0_i32_0 : i32
    scf.if %2 {
      %c0_18 = arith.constant 0 : index
      %c0_19 = arith.constant 0 : index
      %25 = vector.load %arg2[%c0_18, %c0_19] : memref<8x32xf32, #tpu.memory_space<vmem>>, vector<8x32xf32>
      %c0_20 = arith.constant 0 : index
      %c0_21 = arith.constant 0 : index
      %26 = vector.load %arg4[%c0_20, %c0_21] : memref<32x32xf32, #tpu.memory_space<vmem>>, vector<32x32xf32>
      %cst_22 = arith.constant dense<0.000000e+00> : vector<8x32xf32>
      %27 = tpu.matmul %25, %26, %cst_22 {dimension_numbers = #tpu.dot_dimension_numbers<[1], [0], [0], [1], [0, 0, 1, 1], [], []>} : vector<8x32xf32>, vector<32x32xf32>, vector<8x32xf32> -> vector<8x32xf32>
      %c0_23 = arith.constant 0 : index
      %c0_24 = arith.constant 0 : index
      %28 = vector.load %arg5[%c0_23, %c0_24] : memref<1x32xf32, #tpu.memory_space<vmem>>, vector<1x32xf32>
      %29 = vector.broadcast %28 : vector<1x32xf32> to vector<8x32xf32>
      %30 = arith.addf %27, %29 : vector<8x32xf32>
      %c0_25 = arith.constant 0 : index
      %c0_26 = arith.constant 0 : index
      %31 = vector.load %arg3[%c0_25, %c0_26] : memref<8x32xf32, #tpu.memory_space<vmem>>, vector<8x32xf32>
      %32 = arith.addf %30, %31 : vector<8x32xf32>
      %c0_27 = arith.constant 0 : index
      %c0_28 = arith.constant 0 : index
      %33 = vector.load %arg13[%c0_27, %c0_28] : memref<8x32xf32, #tpu.memory_space<vmem>>, vector<8x32xf32>
      tpu.vector_store %arg13[%c0_27, %c0_28], %32 {strides = array<i32>} : memref<8x32xf32, #tpu.memory_space<vmem>>, vector<8x32xf32>,
      %c0_29 = arith.constant 0 : index
      %c0_30 = arith.constant 0 : index
      %34 = vector.load %arg6[%c0_29, %c0_30] : memref<1x32xf32, #tpu.memory_space<vmem>>, vector<1x32xf32>
      %c0_31 = arith.constant 0 : index
      %c0_32 = arith.constant 0 : index
      %35 = vector.load %arg7[%c0_31, %c0_32] : memref<1x32xf32, #tpu.memory_space<vmem>>, vector<1x32xf32>
      %cst_33 = arith.constant dense<0.000000e+00> : vector<8xf32>
      %36 = vector.multi_reduction <add>, %32, %cst_33 [1] : vector<8x32xf32> to vector<8xf32>
      %37 = vector.shape_cast %36 : vector<8xf32> to vector<8x1xf32>
      %cst_34 = arith.constant 3.200000e+01 : f32
      %38 = vector.broadcast %cst_34 : f32 to vector<8x1xf32>
      %39 = arith.divf %37, %38 : vector<8x1xf32>
      %40 = vector.broadcast %39 : vector<8x1xf32> to vector<8x32xf32>
      %41 = arith.subf %32, %40 : vector<8x32xf32>
      %42 = arith.mulf %41, %41 : vector<8x32xf32>
      %cst_35 = arith.constant dense<0.000000e+00> : vector<8xf32>
      %43 = vector.multi_reduction <add>, %42, %cst_35 [1] : vector<8x32xf32> to vector<8xf32>
      %44 = vector.shape_cast %43 : vector<8xf32> to vector<8x1xf32>
      %cst_36 = arith.constant 3.200000e+01 : f32
      %45 = vector.broadcast %cst_36 : f32 to vector<8x1xf32>
      %46 = arith.divf %44, %45 : vector<8x1xf32>
      %47 = vector.broadcast %39 : vector<8x1xf32> to vector<8x32xf32>
      %48 = arith.subf %32, %47 : vector<8x32xf32>
      %cst_37 = arith.constant 9.99999997E-7 : f32
      %49 = vector.broadcast %cst_37 : f32 to vector<8x1xf32>
      %50 = arith.addf %46, %49 : vector<8x1xf32>
      %51 = math.rsqrt %50 : vector<8x1xf32>
      %52 = vector.broadcast %51 : vector<8x1xf32> to vector<8x32xf32>
      %53 = arith.mulf %48, %52 : vector<8x32xf32>
      %54 = vector.broadcast %34 : vector<1x32xf32> to vector<8x32xf32>
      %55 = arith.mulf %53, %54 : vector<8x32xf32>
      %56 = vector.broadcast %35 : vector<1x32xf32> to vector<8x32xf32>
      %57 = arith.addf %55, %56 : vector<8x32xf32>
      %c0_38 = arith.constant 0 : index
      %c0_39 = arith.constant 0 : index
      %58 = vector.load %arg14[%c0_38, %c0_39] : memref<8x32xf32, #tpu.memory_space<vmem>>, vector<8x32xf32>
      tpu.vector_store %arg14[%c0_38, %c0_39], %57 {strides = array<i32>} : memref<8x32xf32, #tpu.memory_space<vmem>>, vector<8x32xf32>,
      %cst_40 = arith.constant 0.000000e+00 : f32
      %59 = vector.broadcast %cst_40 : f32 to vector<8x32xf32>
      %c0_41 = arith.constant 0 : index
      %c0_42 = arith.constant 0 : index
      %60 = vector.load %arg15[%c0_41, %c0_42] : memref<8x32xf32, #tpu.memory_space<vmem>>, vector<8x32xf32>
      tpu.vector_store %arg15[%c0_41, %c0_42], %59 {strides = array<i32>} : memref<8x32xf32, #tpu.memory_space<vmem>>, vector<8x32xf32>,
    } else {
    }
    %c0 = arith.constant 0 : index
    %c0_1 = arith.constant 0 : index
    %3 = vector.load %arg14[%c0, %c0_1] : memref<8x32xf32, #tpu.memory_space<vmem>>, vector<8x32xf32>
    %c0_2 = arith.constant 0 : index
    %c0_3 = arith.constant 0 : index
    %4 = vector.load %arg8[%c0_2, %c0_3] : memref<32x128xf32, #tpu.memory_space<vmem>>, vector<32x128xf32>
    %cst = arith.constant dense<0.000000e+00> : vector<8x128xf32>
    %5 = tpu.matmul %3, %4, %cst {dimension_numbers = #tpu.dot_dimension_numbers<[1], [0], [0], [1], [0, 0, 1, 1], [], []>} : vector<8x32xf32>, vector<32x128xf32>, vector<8x128xf32> -> vector<8x128xf32>
    %c0_4 = arith.constant 0 : index
    %c0_5 = arith.constant 0 : index
    %6 = vector.load %arg9[%c0_4, %c0_5] : memref<1x128xf32, #tpu.memory_space<vmem>>, vector<1x128xf32>
    %7 = vector.broadcast %6 : vector<1x128xf32> to vector<8x128xf32>
    %8 = arith.addf %5, %7 : vector<8x128xf32>
    %cst_6 = arith.constant 5.000000e-01 : f32
    %9 = vector.broadcast %cst_6 : f32 to vector<8x128xf32>
    %10 = arith.mulf %9, %8 : vector<8x128xf32>
    %cst_7 = arith.constant 0.707106769 : f32
    %11 = vector.broadcast %cst_7 : f32 to vector<8x128xf32>
    %12 = arith.mulf %8, %11 : vector<8x128xf32>
    %13 = math.erf %12 : vector<8x128xf32>
    %cst_8 = arith.constant 1.000000e+00 : f32
    %14 = vector.broadcast %cst_8 : f32 to vector<8x128xf32>
    %15 = arith.addf %14, %13 : vector<8x128xf32>
    %16 = arith.mulf %10, %15 : vector<8x128xf32>
    %c0_9 = arith.constant 0 : index
    %c0_10 = arith.constant 0 : index
    %17 = vector.load %arg15[%c0_9, %c0_10] : memref<8x32xf32, #tpu.memory_space<vmem>>, vector<8x32xf32>
    %c0_11 = arith.constant 0 : index
    %c0_12 = arith.constant 0 : index
    %18 = vector.load %arg10[%c0_11, %c0_12] : memref<128x32xf32, #tpu.memory_space<vmem>>, vector<128x32xf32>
    %cst_13 = arith.constant dense<0.000000e+00> : vector<8x32xf32>
    %19 = tpu.matmul %16, %18, %cst_13 {dimension_numbers = #tpu.dot_dimension_numbers<[1], [0], [0], [1], [0, 0, 1, 1], [], []>} : vector<8x128xf32>, vector<128x32xf32>, vector<8x32xf32> -> vector<8x32xf32>
    %20 = arith.addf %17, %19 : vector<8x32xf32>
    %c0_14 = arith.constant 0 : index
    %c0_15 = arith.constant 0 : index
    %21 = vector.load %arg15[%c0_14, %c0_15] : memref<8x32xf32, #tpu.memory_space<vmem>>, vector<8x32xf32>
    tpu.vector_store %arg15[%c0_14, %c0_15], %20 {strides = array<i32>} : memref<8x32xf32, #tpu.memory_space<vmem>>, vector<8x32xf32>,
    %c0_i32_16 = arith.constant 0 : i32
    %22 = arith.cmpi eq, %arg1, %c0_i32_16 : i32
    %23 = arith.extui %22 : i1 to i32
    %c0_i32_17 = arith.constant 0 : i32
    %24 = arith.cmpi ne, %23, %c0_i32_17 : i32
    scf.if %24 {
      %c0_18 = arith.constant 0 : index
      %c0_19 = arith.constant 0 : index
      %25 = vector.load %arg15[%c0_18, %c0_19] : memref<8x32xf32, #tpu.memory_space<vmem>>, vector<8x32xf32>
      %c0_20 = arith.constant 0 : index
      %c0_21 = arith.constant 0 : index
      %26 = vector.load %arg11[%c0_20, %c0_21] : memref<1x32xf32, #tpu.memory_space<vmem>>, vector<1x32xf32>
      %27 = vector.broadcast %26 : vector<1x32xf32> to vector<8x32xf32>
      %28 = arith.addf %25, %27 : vector<8x32xf32>
      %c0_22 = arith.constant 0 : index
      %c0_23 = arith.constant 0 : index
      %29 = vector.load %arg13[%c0_22, %c0_23] : memref<8x32xf32, #tpu.memory_space<vmem>>, vector<8x32xf32>
      %30 = arith.addf %28, %29 : vector<8x32xf32>
      %c0_24 = arith.constant 0 : index
      %c0_25 = arith.constant 0 : index
      %31 = vector.load %arg12[%c0_24, %c0_25] : memref<8x32xf32, #tpu.memory_space<vmem>>, vector<8x32xf32>
      tpu.vector_store %arg12[%c0_24, %c0_25], %30 {strides = array<i32>} : memref<8x32xf32, #tpu.memory_space<vmem>>, vector<8x32xf32>,
    } else {
    }
    return
  }
  func.func @transform_0(%arg0: i32, %arg1: i32) -> (i32, i32) {
    %c0_i32 = arith.constant 0 : i32
    %c0_i32_0 = arith.constant 0 : i32
    return %arg0, %c0_i32 : i32, i32
  }
  func.func @transform_1(%arg0: i32, %arg1: i32) -> (i32, i32) {
    %c0_i32 = arith.constant 0 : i32
    %c0_i32_0 = arith.constant 0 : i32
    return %arg0, %c0_i32 : i32, i32
  }
  func.func @transform_2(%arg0: i32, %arg1: i32) -> (i32, i32) {
    %c0_i32 = arith.constant 0 : i32
    %c0_i32_0 = arith.constant 0 : i32
    %c0_i32_1 = arith.constant 0 : i32
    return %c0_i32, %c0_i32_0 : i32, i32
  }
  func.func @transform_3(%arg0: i32, %arg1: i32) -> (i32, i32) {
    %c0_i32 = arith.constant 0 : i32
    %c0_i32_0 = arith.constant 0 : i32
    %c0_i32_1 = arith.constant 0 : i32
    return %c0_i32, %c0_i32_0 : i32, i32
  }
  func.func @transform_4(%arg0: i32, %arg1: i32) -> (i32, i32) {
    %c0_i32 = arith.constant 0 : i32
    %c0_i32_0 = arith.constant 0 : i32
    %c0_i32_1 = arith.constant 0 : i32
    return %c0_i32, %c0_i32_0 : i32, i32
  }
  func.func @transform_5(%arg0: i32, %arg1: i32) -> (i32, i32) {
    %c0_i32 = arith.constant 0 : i32
    %c0_i32_0 = arith.constant 0 : i32
    %c0_i32_1 = arith.constant 0 : i32
    return %c0_i32, %c0_i32_0 : i32, i32
  }
  func.func @transform_6(%arg0: i32, %arg1: i32) -> (i32, i32) {
    %c0_i32 = arith.constant 0 : i32
    %c0_i32_0 = arith.constant 0 : i32
    return %c0_i32, %arg1 : i32, i32
  }
  func.func @transform_7(%arg0: i32, %arg1: i32) -> (i32, i32) {
    %c0_i32 = arith.constant 0 : i32
    %c0_i32_0 = arith.constant 0 : i32
    return %c0_i32, %arg1 : i32, i32
  }
  func.func @transform_8(%arg0: i32, %arg1: i32) -> (i32, i32) {
    %c0_i32 = arith.constant 0 : i32
    %c0_i32_0 = arith.constant 0 : i32
    return %arg1, %c0_i32 : i32, i32
  }
  func.func @transform_9(%arg0: i32, %arg1: i32) -> (i32, i32) {
    %c0_i32 = arith.constant 0 : i32
    %c0_i32_0 = arith.constant 0 : i32
    %c0_i32_1 = arith.constant 0 : i32
    return %c0_i32, %c0_i32_0 : i32, i32
  }
  func.func @transform_10(%arg0: i32, %arg1: i32) -> (i32, i32) {
    %c0_i32 = arith.constant 0 : i32
    %c0_i32_0 = arith.constant 0 : i32
    return %arg0, %c0_i32 : i32, i32
  }
}

</mosaic_0001>

<llo_original>
// kernel: block_forward.3
$region0: #{block_forward.3}
  #allocation0 [shape = 'u32[]', space=smem, size = 0x4, offset = 0x4, fixed_abs, tag = 'smem constant byte address 0x4 - core index']
  #allocation1 [shape = 'u32[144,128]{1,0:T(1,128)}', space=vmem, size = 0x12000, scoped, tag = 'internal scratch']
  #allocation2 [shape = 'f32[8,32]{1,0:T(8,128)}', space=vmem, size = 0x1000, scoped, tag = 'scratch operand']
  %s0 = inlined_call_operand.vmem [shape: f32[16,32], index: 0, kind: input, shape index: {}]
  %s1 = inlined_call_operand.vmem [shape: f32[1,32], index: 1, kind: input, shape index: {}]
  %s2 = inlined_call_operand.vmem [shape: f32[1,32], index: 2, kind: input, shape index: {}]
  %s3 = inlined_call_operand.vmem [shape: f32[32,32], index: 3, kind: input, shape index: {}]
  %s4 = inlined_call_operand.vmem [shape: f32[32,32], index: 4, kind: input, shape index: {}]
  %s5 = inlined_call_operand.vmem [shape: f32[32,32], index: 5, kind: input, shape index: {}]
  %s6 = inlined_call_operand.vmem [shape: f32[16,32], index: 6, kind: output, shape index: {0}]
  %s7 = inlined_call_operand.vmem [shape: f32[16,32], index: 7, kind: output, shape index: {1}]
  %s8 = inlined_call_operand.vmem [shape: f32[16,32], index: 8, kind: output, shape index: {2}]
  %9 = xla_tuple %s6, %s7, %s8
  %s10 = sld [smem:[#allocation0]]
  $region77: #{block_forward.3} parent=0
    _
  %s12 = ssub.s32 1, %s10
  %s13 = scalar_select 0, %s12, %s10
  loop: start=0, step=1, limit=4
  $region2: #{block_forward.3} parent=0 // loop_pre_header
    _
  $region3: #{block_forward.3} parent=0 // loop_header
    %s15 = sphi 0, %s19
    %p16 = scmp.ge.s32.totalorder %s15, 4
    %s22 = sphi 0, %s34
    %s23 = sphi 0, %s30
    %s24 = sphi 0, %s22
    %s25 = sphi 0, %s23
    %s26 = sphi 0, %s24
    %s27 = sphi 0, %s25
    %s37 = sphi 0, %s39
    %s40 = sphi 0, %s37
    %s41 = sphi 0, %s40
    %s57 = sphi 0, %s41
    %s61 = sphi 0, %s61
    %s63 = sphi 0, %s61
    %s64 = sphi 0, %s63
    %s78 = sphi 0, %s64
    %s82 = sphi 0, %s82
    %s84 = sphi 0, %s82
    %s85 = sphi 0, %s84
    %s99 = sphi 0, %s85
    %s105 = sphi 0, %s107
    %s108 = sphi 0, %s105
    %s109 = sphi 0, %s108
    %s125 = sphi 0, %s109
    %s131 = sphi 0, %s133
    %s134 = sphi 0, %s131
    %s135 = sphi 0, %s134
    %s151 = sphi 0, %s135
    %s157 = sphi 0, %s159
    %s160 = sphi 0, %s157
    %s161 = sphi 0, %s160
    %s177 = sphi 0, %s161
    %s185 = sphi 0, %s187
    %s188 = sphi 0, %s185
    %s189 = sphi 0, %s188
    %s205 = sphi 0, %s189
    %s213 = sphi 0, %s215
    %s216 = sphi 0, %s213
    %s217 = sphi 0, %s216
    %s233 = sphi 0, %s217
    %s241 = sphi 0, %s243
    %s244 = sphi 0, %s241
    %s245 = sphi 0, %s244
    %s261 = sphi 0, %s245
  $region4: #{block_forward.3} parent=0 // loop_header_branch
    %18 = sbr.rel (%p16) target = $region8
  $region5: #{block_forward.3} parent=0 // loop_body
    %s20 = ssub.s32 %s15, 1
    %s21 = ssub.s32 %s15, 2
    %s28 = sadd.s32 1, %s23
    %p29 = scmp.ge.s32.totalorder %s28, 1
    %s30 = scalar_select %p29, 0, %s28
    %s31 = sadd.s32 1, %s22
    %s32 = scalar_select %p29, %s31, %s22
    %p33 = scmp.ge.s32.totalorder %s32, 2
    %s34 = scalar_select %p33, 0, %s32
    %s35 = ssub.s32 %s22, %s34
    %p36 = scmp.eq.s32.totalorder %s35, 0
    %s38 = sadd.s32 %s37, 1
    %s39 = scalar_select %p36, %s37, %s38
    %p42 = pneg %p36
    %p43 = scmp.eq.s32.totalorder %s15, 1
    %p44 = por %p42, %p43
    %p45 = scmp.ne.s32.totalorder %s37, %s40
    %p46 = scmp.eq.s32.totalorder %s15, 0
    %p47 = por %p45, %p46
    %p48 = scmp.ne.s32.totalorder %s37, %s40
    %p49 = scmp.eq.s32.totalorder %s20, 1
    %p50 = por %p48, %p49
    %p51 = scmp.ne.s32.totalorder %s40, %s41
    %p52 = scmp.eq.s32.totalorder %s20, 0
    %p53 = por %p51, %p52
    %p54 = scmp.ne.s32.totalorder %s40, %s41
    %p55 = scmp.eq.s32.totalorder %s21, 1
    %p56 = por %p54, %p55
    %p58 = scmp.ne.s32.totalorder %s41, %s57
    %p59 = scmp.eq.s32.totalorder %s21, 0
    %p60 = por %p58, %p59
    %s62 = sadd.s32 %s61, 1
    %p65 = scmp.eq.s32.totalorder %s15, 1
    %p66 = scmp.ne.s32.totalorder %s61, %s63
    %p67 = scmp.eq.s32.totalorder %s15, 0
    %p68 = por %p66, %p67
    %p69 = scmp.ne.s32.totalorder %s61, %s63
    %p70 = scmp.eq.s32.totalorder %s20, 1
    %p71 = por %p69, %p70
    %p72 = scmp.ne.s32.totalorder %s63, %s64
    %p73 = scmp.eq.s32.totalorder %s20, 0
    %p74 = por %p72, %p73
    %p75 = scmp.ne.s32.totalorder %s63, %s64
    %p76 = scmp.eq.s32.totalorder %s21, 1
    %p77 = por %p75, %p76
    %p79 = scmp.ne.s32.totalorder %s64, %s78
    %p80 = scmp.eq.s32.totalorder %s21, 0
    %p81 = por %p79, %p80
    %s83 = sadd.s32 %s82, 1
    %p86 = scmp.eq.s32.totalorder %s15, 1
    %p87 = scmp.ne.s32.totalorder %s82, %s84
    %p88 = scmp.eq.s32.totalorder %s15, 0
    %p89 = por %p87, %p88
    %p90 = scmp.ne.s32.totalorder %s82, %s84
    %p91 = scmp.eq.s32.totalorder %s20, 1
    %p92 = por %p90, %p91
    %p93 = scmp.ne.s32.totalorder %s84, %s85
    %p94 = scmp.eq.s32.totalorder %s20, 0
    %p95 = por %p93, %p94
    %p96 = scmp.ne.s32.totalorder %s84, %s85
    %p97 = scmp.eq.s32.totalorder %s21, 1
    %p98 = por %p96, %p97
    %p100 = scmp.ne.s32.totalorder %s85, %s99
    %p101 = scmp.eq.s32.totalorder %s21, 0
    %p102 = por %p100, %p101
    %s103 = ssub.s32 %s23, %s30
    %p104 = scmp.eq.s32.totalorder %s103, 0
    %s106 = sadd.s32 %s105, 1
    %s107 = scalar_select %p104, %s105, %s106
    %p110 = pneg %p104
    %p111 = scmp.eq.s32.totalorder %s15, 1
    %p112 = por %p110, %p111
    %p113 = scmp.ne.s32.totalorder %s105, %s108
    %p114 = scmp.eq.s32.totalorder %s15, 0
    %p115 = por %p113, %p114
    %p116 = scmp.ne.s32.totalorder %s105, %s108
    %p117 = scmp.eq.s32.totalorder %s20, 1
    %p118 = por %p116, %p117
    %p119 = scmp.ne.s32.totalorder %s108, %s109
    %p120 = scmp.eq.s32.totalorder %s20, 0
    %p121 = por %p119, %p120
    %p122 = scmp.ne.s32.totalorder %s108, %s109
    %p123 = scmp.eq.s32.totalorder %s21, 1
    %p124 = por %p122, %p123
    %p126 = scmp.ne.s32.totalorder %s109, %s125
    %p127 = scmp.eq.s32.totalorder %s21, 0
    %p128 = por %p126, %p127
    %s129 = ssub.s32 %s23, %s30
    %p130 = scmp.eq.s32.totalorder %s129, 0
    %s132 = sadd.s32 %s131, 1
    %s133 = scalar_select %p130, %s131, %s132
    %p136 = pneg %p130
    %p137 = scmp.eq.s32.totalorder %s15, 1
    %p138 = por %p136, %p137
    %p139 = scmp.ne.s32.totalorder %s131, %s134
    %p140 = scmp.eq.s32.totalorder %s15, 0
    %p141 = por %p139, %p140
    %p142 = scmp.ne.s32.totalorder %s131, %s134
    %p143 = scmp.eq.s32.totalorder %s20, 1
    %p144 = por %p142, %p143
    %p145 = scmp.ne.s32.totalorder %s134, %s135
    %p146 = scmp.eq.s32.totalorder %s20, 0
    %p147 = por %p145, %p146
    %p148 = scmp.ne.s32.totalorder %s134, %s135
    %p149 = scmp.eq.s32.totalorder %s21, 1
    %p150 = por %p148, %p149
    %p152 = scmp.ne.s32.totalorder %s135, %s151
    %p153 = scmp.eq.s32.totalorder %s21, 0
    %p154 = por %p152, %p153
    %s155 = ssub.s32 %s23, %s30
    %p156 = scmp.eq.s32.totalorder %s155, 0
    %s158 = sadd.s32 %s157, 1
    %s159 = scalar_select %p156, %s157, %s158
    %p162 = pneg %p156
    %p163 = scmp.eq.s32.totalorder %s15, 1
    %p164 = por %p162, %p163
    %p165 = scmp.ne.s32.totalorder %s157, %s160
    %p166 = scmp.eq.s32.totalorder %s15, 0
    %p167 = por %p165, %p166
    %p168 = scmp.ne.s32.totalorder %s157, %s160
    %p169 = scmp.eq.s32.totalorder %s20, 1
    %p170 = por %p168, %p169
    %p171 = scmp.ne.s32.totalorder %s160, %s161
    %p172 = scmp.eq.s32.totalorder %s20, 0
    %p173 = por %p171, %p172
    %p174 = scmp.ne.s32.totalorder %s160, %s161
    %p175 = scmp.eq.s32.totalorder %s21, 1
    %p176 = por %p174, %p175
    %p178 = scmp.ne.s32.totalorder %s161, %s177
    %p179 = scmp.eq.s32.totalorder %s21, 0
    %p180 = por %p178, %p179
    %s181 = ssub.s32 %s22, %s34
    %s182 = ssub.s32 %s23, %s30
    %s183 = sor.u32 %s181, %s182
    %p184 = scmp.eq.s32.totalorder %s183, 0
    %s186 = sadd.s32 %s185, 1
    %s187 = scalar_select %p184, %s185, %s186
    %p190 = pneg %p184
    %p191 = scmp.eq.s32.totalorder %s15, 1
    %p192 = por %p190, %p191
    %p193 = scmp.ne.s32.totalorder %s185, %s188
    %p194 = scmp.eq.s32.totalorder %s15, 0
    %p195 = por %p193, %p194
    %p196 = scmp.ne.s32.totalorder %s185, %s188
    %p197 = scmp.eq.s32.totalorder %s20, 1
    %p198 = por %p196, %p197
    %p199 = scmp.ne.s32.totalorder %s188, %s189
    %p200 = scmp.eq.s32.totalorder %s20, 0
    %p201 = por %p199, %p200
    %p202 = scmp.ne.s32.totalorder %s188, %s189
    %p203 = scmp.eq.s32.totalorder %s21, 1
    %p204 = por %p202, %p203
    %p206 = scmp.ne.s32.totalorder %s189, %s205
    %p207 = scmp.eq.s32.totalorder %s21, 0
    %p208 = por %p206, %p207
    %s209 = ssub.s32 %s22, %s34
    %s210 = ssub.s32 %s23, %s30
    %s211 = sor.u32 %s209, %s210
    %p212 = scmp.eq.s32.totalorder %s211, 0
    %s214 = sadd.s32 %s213, 1
    %s215 = scalar_select %p212, %s213, %s214
    %p218 = pneg %p212
    %p219 = scmp.eq.s32.totalorder %s15, 1
    %p220 = por %p218, %p219
    %p221 = scmp.ne.s32.totalorder %s213, %s216
    %p222 = scmp.eq.s32.totalorder %s15, 0
    %p223 = por %p221, %p222
    %p224 = scmp.ne.s32.totalorder %s213, %s216
    %p225 = scmp.eq.s32.totalorder %s20, 1
    %p226 = por %p224, %p225
    %p227 = scmp.ne.s32.totalorder %s216, %s217
    %p228 = scmp.eq.s32.totalorder %s20, 0
    %p229 = por %p227, %p228
    %p230 = scmp.ne.s32.totalorder %s216, %s217
    %p231 = scmp.eq.s32.totalorder %s21, 1
    %p232 = por %p230, %p231
    %p234 = scmp.ne.s32.totalorder %s217, %s233
    %p235 = scmp.eq.s32.totalorder %s21, 0
    %p236 = por %p234, %p235
    %s237 = ssub.s32 %s22, %s34
    %s238 = ssub.s32 %s23, %s30
    %s239 = sor.u32 %s237, %s238
    %p240 = scmp.eq.s32.totalorder %s239, 0
    %s242 = sadd.s32 %s241, 1
    %s243 = scalar_select %p240, %s241, %s242
    %p246 = pneg %p240
    %p247 = scmp.eq.s32.totalorder %s15, 1
    %p248 = por %p246, %p247
    %p249 = scmp.ne.s32.totalorder %s241, %s244
    %p250 = scmp.eq.s32.totalorder %s15, 0
    %p251 = por %p249, %p250
    %p252 = scmp.ne.s32.totalorder %s241, %s244
    %p253 = scmp.eq.s32.totalorder %s20, 1
    %p254 = por %p252, %p253
    %p255 = scmp.ne.s32.totalorder %s244, %s245
    %p256 = scmp.eq.s32.totalorder %s20, 0
    %p257 = por %p255, %p256
    %p258 = scmp.ne.s32.totalorder %s244, %s245
    %p259 = scmp.eq.s32.totalorder %s21, 1
    %p260 = por %p258, %p259
    %p262 = scmp.ne.s32.totalorder %s245, %s261
    %p263 = scmp.eq.s32.totalorder %s21, 0
    %p264 = por %p262, %p263
    %p265 = scmp.le.s32.totalorder 1, %s15
    %p266 = scmp.lt.s32.totalorder %s15, 3
    %p267 = pnand %p265, %p266
    %p268 = pneg %p267
    // Predicated region
    $region9: #{block_forward.3} parent=5 // pred_check
      _
    $region10: #{block_forward.3} parent=5 // pred_check_branch
      %270 = sbr.rel (%p267) target = $region12
    $region11: #{block_forward.3} parent=5 // pred_region
      %s271 = ssub.s32 %s15, 1
      // Predicated region
      $region13: #{block_forward.3} parent=11 // pred_check
        %p272 = pneg %p74
      $region14: #{block_forward.3} parent=11 // pred_check_branch
        %274 = sbr.rel (%p272) target = $region16
      $region15: #{block_forward.3} parent=11 // pred_region
        _
      $region16: #{block_forward.3} parent=11 // pred_fallthru
        _
      // Predicated region
      $region17: #{block_forward.3} parent=11 // pred_check
        %p275 = pneg %p95
      $region18: #{block_forward.3} parent=11 // pred_check_branch
        %277 = sbr.rel (%p275) target = $region20
      $region19: #{block_forward.3} parent=11 // pred_region
        _
      $region20: #{block_forward.3} parent=11 // pred_fallthru
        _
      // Predicated region
      $region21: #{block_forward.3} parent=11 // pred_check
        %p278 = pneg %p121
      $region22: #{block_forward.3} parent=11 // pred_check_branch
        %280 = sbr.rel (%p278) target = $region24
      $region23: #{block_forward.3} parent=11 // pred_region
        %p281 = scmp.lt.s32.totalorder %s25, 0
        %s282 = scalar_select %p281, %s25, 0
        %s283 = smul.addr %s282, 8
        %s284 = scalar_lea.vmem %s3, %s283
      $region24: #{block_forward.3} parent=11 // pred_fallthru
        _
      // Predicated region
      $region25: #{block_forward.3} parent=11 // pred_check
        %p285 = pneg %p147
      $region26: #{block_forward.3} parent=11 // pred_check_branch
        %287 = sbr.rel (%p285) target = $region28
      $region27: #{block_forward.3} parent=11 // pred_region
        %p288 = scmp.lt.s32.totalorder %s25, 0
        %s289 = scalar_select %p288, %s25, 0
        %s290 = smul.addr %s289, 8
        %s291 = scalar_lea.vmem %s4, %s290
      $region28: #{block_forward.3} parent=11 // pred_fallthru
        _
      // Predicated region
      $region29: #{block_forward.3} parent=11 // pred_check
        %p292 = pneg %p173
      $region30: #{block_forward.3} parent=11 // pred_check_branch
        %294 = sbr.rel (%p292) target = $region32
      $region31: #{block_forward.3} parent=11 // pred_region
        %p295 = scmp.lt.s32.totalorder %s25, 0
        %s296 = scalar_select %p295, %s25, 0
        %s297 = smul.addr %s296, 8
        %s298 = scalar_lea.vmem %s5, %s297
      $region32: #{block_forward.3} parent=11 // pred_fallthru
        _
    $region12: #{block_forward.3} parent=5 // pred_fallthru
      _
    %p299 = scmp.lt.s32.totalorder %s15, 2
    // Predicated region
    $region33: #{block_forward.3} parent=5 // pred_check
      %p300 = pneg %p299
    $region34: #{block_forward.3} parent=5 // pred_check_branch
      %302 = sbr.rel (%p300) target = $region36
    $region35: #{block_forward.3} parent=5 // pred_region
      // Predicated region
      $region37: #{block_forward.3} parent=35 // pred_check
        %p303 = pneg %p47
      $region38: #{block_forward.3} parent=35 // pred_check_branch
        %305 = sbr.rel (%p303) target = $region40
      $region39: #{block_forward.3} parent=35 // pred_region
        %p306 = scmp.lt.s32.totalorder %s22, 1
        %s307 = scalar_select %p306, %s22, 1
        %s308 = smul.addr %s307, 8
        %s309 = scalar_lea.vmem %s0, %s308
      $region40: #{block_forward.3} parent=35 // pred_fallthru
        _
    $region36: #{block_forward.3} parent=5 // pred_fallthru
      _
    %p310 = scmp.le.s32.totalorder 1, %s15
    %p311 = scmp.lt.s32.totalorder %s15, 3
    %p312 = pnand %p310, %p311
    %p313 = pneg %p312
    // Predicated region
    $region41: #{block_forward.3} parent=5 // pred_check
      _
    $region42: #{block_forward.3} parent=5 // pred_check_branch
      %315 = sbr.rel (%p312) target = $region44
    $region43: #{block_forward.3} parent=5 // pred_region
      %s316 = ssub.s32 %s15, 1
      %p317 = scmp.lt.s32.totalorder %s24, 1
      %s318 = scalar_select %p317, %s24, 1
      %s319 = smul.addr %s318, 8
      %s320 = scalar_lea.vmem %s0, %s319
      %p321 = pneg %p53
      %p322 = pneg %p50
      %p323 = pneg %p74
      %p324 = pneg %p71
      %p325 = pneg %p95
      %p326 = pneg %p92
      %p327 = scmp.lt.s32.totalorder %s25, 0
      %s328 = scalar_select %p327, %s25, 0
      %s329 = smul.addr %s328, 8
      %s330 = scalar_lea.vmem %s3, %s329
      %p331 = pneg %p121
      %p332 = pneg %p118
      %p333 = scmp.lt.s32.totalorder %s25, 0
      %s334 = scalar_select %p333, %s25, 0
      %s335 = smul.addr %s334, 8
      %s336 = scalar_lea.vmem %s4, %s335
      %p337 = pneg %p147
      %p338 = pneg %p144
      %p339 = scmp.lt.s32.totalorder %s25, 0
      %s340 = scalar_select %p339, %s25, 0
      %s341 = smul.addr %s340, 8
      %s342 = scalar_lea.vmem %s5, %s341
      %p343 = pneg %p173
      %p344 = pneg %p170
      %p345 = pneg %p201
      %p346 = pneg %p198
      %p347 = scmp.lt.s32.totalorder %s24, 1
      %s348 = scalar_select %p347, %s24, 1
      %p349 = scmp.lt.s32.totalorder %s25, 0
      %s350 = scalar_select %p349, %s25, 0
      %s351 = sadd.s32 %s350, %s348
      %s352 = smul.addr %s351, 8
      %s353 = scalar_lea.vmem %s6, %s352
      %p354 = pneg %p229
      %p355 = pneg %p226
      %p356 = scmp.lt.s32.totalorder %s24, 1
      %s357 = scalar_select %p356, %s24, 1
      %p358 = scmp.lt.s32.totalorder %s25, 0
      %s359 = scalar_select %p358, %s25, 0
      %s360 = sadd.s32 %s359, %s357
      %s361 = smul.addr %s360, 8
      %s362 = scalar_lea.vmem %s7, %s361
      %p363 = pneg %p257
      %p364 = pneg %p254
      %p365 = scmp.lt.s32.totalorder %s24, 1
      %s366 = scalar_select %p365, %s24, 1
      %p367 = scmp.lt.s32.totalorder %s25, 0
      %s368 = scalar_select %p367, %s25, 0
      %s369 = sadd.s32 %s368, %s366
      %s370 = smul.addr %s369, 8
      %s371 = scalar_lea.vmem %s8, %s370
      %p372 = scmp.lt.s32.totalorder %s24, 1
      %s373 = scalar_select %p372, %s24, 1
      %s374 = smul.addr %s373, 8
      %s375 = scalar_lea.vmem %s0, %s374
      %p376 = scmp.lt.s32.totalorder %s25, 0
      %s377 = scalar_select %p376, %s25, 0
      %s378 = smul.addr %s377, 8
      %s379 = scalar_lea.vmem %s3, %s378
      %p380 = scmp.lt.s32.totalorder %s25, 0
      %s381 = scalar_select %p380, %s25, 0
      %s382 = smul.addr %s381, 8
      %s383 = scalar_lea.vmem %s4, %s382
      %p384 = scmp.lt.s32.totalorder %s25, 0
      %s385 = scalar_select %p384, %s25, 0
      %s386 = smul.addr %s385, 8
      %s387 = scalar_lea.vmem %s5, %s386
      %p388 = scmp.lt.s32.totalorder %s24, 1
      %s389 = scalar_select %p388, %s24, 1
      %p390 = scmp.lt.s32.totalorder %s25, 0
      %s391 = scalar_select %p390, %s25, 0
      %s392 = sadd.s32 %s391, %s389
      %s393 = smul.addr %s392, 8
      %s394 = scalar_lea.vmem %s6, %s393
      %p395 = scmp.lt.s32.totalorder %s24, 1
      %s396 = scalar_select %p395, %s24, 1
      %p397 = scmp.lt.s32.totalorder %s25, 0
      %s398 = scalar_select %p397, %s25, 0
      %s399 = sadd.s32 %s398, %s396
      %s400 = smul.addr %s399, 8
      %s401 = scalar_lea.vmem %s7, %s400
      %p402 = scmp.lt.s32.totalorder %s24, 1
      %s403 = scalar_select %p402, %s24, 1
      %p404 = scmp.lt.s32.totalorder %s25, 0
      %s405 = scalar_select %p404, %s25, 0
      %s406 = sadd.s32 %s405, %s403
      %s407 = smul.addr %s406, 8
      %s408 = scalar_lea.vmem %s8, %s407
      %p409 = scmp.eq.s32.totalorder %s25, 0
      // Predicated region
      $region45: #{block_forward.3} parent=43 // pred_check
        %p410 = pneg %p409
      $region46: #{block_forward.3} parent=43 // pred_check_branch
        %412 = sbr.rel (%p410) target = $region48
      $region47: #{block_forward.3} parent=43 // pred_region
        %v413 = vld [vmem:[%s375] sm:$0xff]
        %v414 = vld [vmem:[%s1] sm:$0x1]
        %v415 = vld [vmem:[%s2] sm:$0x1]
        %vm416 = vcmask 261120
        %v417 = vsel %vm416, %v413, 0.0
        %418 = vadd.xlane.f32.xlu0 %v417
        %v419 = vpop.xlane.xlu0 %418
        %v420 = vrcp.pop 32.0
        %v421 = vmul.f32 %v419, %v420
        %v422 = vsub.f32 %v413, %v421
        %v423 = vmul.f32 %v422, %v422
        %v424 = vsel %vm416, %v423, 0.0
        %425 = vadd.xlane.f32.xlu0 %v424
        %v426 = vpop.xlane.xlu0 %425
        %v427 = vmul.f32 %v426, %v420
        %v428 = vadd.f32 %v427, 1e-06
        %v429 = vrsqrt.pop %v428
        %v430 = vmul.f32 %v422, %v429
        %v432 = vlaneseq
        %v433 = vshrl.u32 %v432, 7
        %v434 = vsub.s32 0, %v433
        %v435 = vrot.slane %v414, %v434
        %v437 = vmul.f32 %v430, %v435
        %v439 = vlaneseq
        %v440 = vshrl.u32 %v439, 7
        %v441 = vsub.s32 0, %v440
        %v442 = vrot.slane %v415, %v441
        %v444 = vadd.f32 %v437, %v442
        %445 = vst.msk [vmem:[#allocation2] sm:$0xff] %vm416, %v444
      $region48: #{block_forward.3} parent=43 // pred_fallthru
        _
      %v446 = vld [vmem:[#allocation2] sm:$0xff]
      %v447 = vld [vmem:[%s379] sm:$0xff]
      %v448 = vld [vmem:[%s379 + $0x8] sm:$0xff]
      %v449 = vld [vmem:[%s379 + $0x10] sm:$0xff]
      %v450 = vld [vmem:[%s379 + $0x18] sm:$0xff]
      %vm451 = vcmask 261120
      %v453 = vsel %vm451, %v446, 0
      %455 = vmatprep.subr.mxu0 0.0
      %456 = vmatpush1.msra.mxu0 %v447
      %457 = vmatprep.subr.mxu0 0.0
      %458 = vmatpush1.msra.mxu0 %v448
      %459 = vmatprep.subr.mxu0 0.0
      %460 = vmatpush1.msra.mxu0 %v449
      %461 = vmatprep.subr.mxu0 0.0
      %462 = vmatpush1.msra.mxu0 %v450
      %463 = vmatprep.subr.mxu0 0.0
      %464 = vmatpush1.msra.mxu0 0.0
      %465 = vmatprep.subr.mxu0 0.0
      %466 = vmatpush1.msra.mxu0 0.0
      %467 = vmatprep.subr.mxu0 0.0
      %468 = vmatpush1.msra.mxu0 0.0
      %469 = vmatprep.subr.mxu0 0.0
      %470 = vmatpush1.msra.mxu0 0.0
      %471 = vmatprep.subr.mxu0 0.0
      %472 = vmatpush1.msra.mxu0 0.0
      %473 = vmatprep.subr.mxu0 0.0
      %474 = vmatpush1.msra.mxu0 0.0
      %475 = vmatprep.subr.mxu0 0.0
      %476 = vmatpush1.msra.mxu0 0.0
      %477 = vmatprep.subr.mxu0 0.0
      %478 = vmatpush1.msra.mxu0 0.0
      %479 = vmatprep.subr.mxu0 0.0
      %480 = vmatpush1.msra.mxu0 0.0
      %481 = vmatprep.subr.mxu0 0.0
      %482 = vmatpush1.msra.mxu0 0.0
      %483 = vmatprep.subr.mxu0 0.0
      %484 = vmatpush1.msra.mxu0 0.0
      %485 = vmatprep.subr.mxu0 0.0
      %486 = vmatpush1.msra.mxu0 0.0
      %487 = vmatprep.subr.mxu0 0.0
      %488 = vmatpush1.msra.mxu0 0.0
      %489 = vmatprep.subr.mxu0 0.0
      %490 = vmatpush1.msra.mxu0 0.0
      %491 = vmatprep.subr.mxu0 0.0
      %492 = vmatpush1.msra.mxu0 0.0
      %493 = vmatprep.subr.mxu0 0.0
      %494 = vmatpush1.msra.mxu0 0.0
      %495 = vmatprep.subr.mxu0 0.0
      %496 = vmatpush1.msra.mxu0 0.0
      %497 = vmatprep.subr.mxu0 0.0
      %498 = vmatpush1.msra.mxu0 0.0
      %499 = vmatprep.subr.mxu0 0.0
      %500 = vmatpush1.msra.mxu0 0.0
      %501 = vmatprep.subr.mxu0 0.0
      %502 = vmatpush1.msra.mxu0 0.0
      %503 = vmatprep.subr.mxu0 0.0
      %504 = vmatpush1.msra.mxu0 0.0
      %505 = vmatprep.subr.mxu0 0.0
      %506 = vmatpush1.msra.mxu0 0.0
      %507 = vmatprep.subr.mxu0 0.0
      %508 = vmatpush1.msra.mxu0 0.0
      %509 = vmatprep.subr.mxu0 0.0
      %510 = vmatpush1.msra.mxu0 0.0
      %511 = vmatprep.subr.mxu0 0.0
      %512 = vmatpush1.msra.mxu0 0.0
      %513 = vmatprep.subr.mxu0 0.0
      %514 = vmatpush1.msra.mxu0 0.0
      %515 = vmatprep.subr.mxu0 0.0
      %516 = vmatpush1.msra.mxu0 0.0
      %517 = vmatprep.subr.mxu0 0.0
      %518 = vmatpush1.msra.mxu0 0.0
      %519 = vmatprep.mubr.f32.mxu0 0.0
      %520 = vmatmul.mubr.f32.gmra.mrb[0].mxu0 %v453
      %v521 = vpop.f32.mrb[0].mxu0
      %v522 = vadd.f32 0.0, %v521
      %v523 = vpop.f32.mrb[0].mxu0
      %524 = vdwg.mxu0
      %525 = vst.msk [vmem:[%s394] sm:$0xff] %vm451, %v522
      %v526 = vld [vmem:[%s383] sm:$0xff]
      %v527 = vld [vmem:[%s383 + $0x8] sm:$0xff]
      %v528 = vld [vmem:[%s383 + $0x10] sm:$0xff]
      %v529 = vld [vmem:[%s383 + $0x18] sm:$0xff]
      %530 = vmatprep.subr.mxu0 0.0
      %531 = vmatpush1.msra.mxu0 %v526
      %532 = vmatprep.subr.mxu0 0.0
      %533 = vmatpush1.msra.mxu0 %v527
      %534 = vmatprep.subr.mxu0 0.0
      %535 = vmatpush1.msra.mxu0 %v528
      %536 = vmatprep.subr.mxu0 0.0
      %537 = vmatpush1.msra.mxu0 %v529
      %538 = vmatprep.subr.mxu0 0.0
      %539 = vmatpush1.msra.mxu0 0.0
      %540 = vmatprep.subr.mxu0 0.0
      %541 = vmatpush1.msra.mxu0 0.0
      %542 = vmatprep.subr.mxu0 0.0
      %543 = vmatpush1.msra.mxu0 0.0
      %544 = vmatprep.subr.mxu0 0.0
      %545 = vmatpush1.msra.mxu0 0.0
      %546 = vmatprep.subr.mxu0 0.0
      %547 = vmatpush1.msra.mxu0 0.0
      %548 = vmatprep.subr.mxu0 0.0
      %549 = vmatpush1.msra.mxu0 0.0
      %550 = vmatprep.subr.mxu0 0.0
      %551 = vmatpush1.msra.mxu0 0.0
      %552 = vmatprep.subr.mxu0 0.0
      %553 = vmatpush1.msra.mxu0 0.0
      %554 = vmatprep.subr.mxu0 0.0
      %555 = vmatpush1.msra.mxu0 0.0
      %556 = vmatprep.subr.mxu0 0.0
      %557 = vmatpush1.msra.mxu0 0.0
      %558 = vmatprep.subr.mxu0 0.0
      %559 = vmatpush1.msra.mxu0 0.0
      %560 = vmatprep.subr.mxu0 0.0
      %561 = vmatpush1.msra.mxu0 0.0
      %562 = vmatprep.subr.mxu0 0.0
      %563 = vmatpush1.msra.mxu0 0.0
      %564 = vmatprep.subr.mxu0 0.0
      %565 = vmatpush1.msra.mxu0 0.0
      %566 = vmatprep.subr.mxu0 0.0
      %567 = vmatpush1.msra.mxu0 0.0
      %568 = vmatprep.subr.mxu0 0.0
      %569 = vmatpush1.msra.mxu0 0.0
      %570 = vmatprep.subr.mxu0 0.0
      %571 = vmatpush1.msra.mxu0 0.0
      %572 = vmatprep.subr.mxu0 0.0
      %573 = vmatpush1.msra.mxu0 0.0
      %574 = vmatprep.subr.mxu0 0.0
      %575 = vmatpush1.msra.mxu0 0.0
      %576 = vmatprep.subr.mxu0 0.0
      %577 = vmatpush1.msra.mxu0 0.0
      %578 = vmatprep.subr.mxu0 0.0
      %579 = vmatpush1.msra.mxu0 0.0
      %580 = vmatprep.subr.mxu0 0.0
      %581 = vmatpush1.msra.mxu0 0.0
      %582 = vmatprep.subr.mxu0 0.0
      %583 = vmatpush1.msra.mxu0 0.0
      %584 = vmatprep.subr.mxu0 0.0
      %585 = vmatpush1.msra.mxu0 0.0
      %586 = vmatprep.subr.mxu0 0.0
      %587 = vmatpush1.msra.mxu0 0.0
      %588 = vmatprep.subr.mxu0 0.0
      %589 = vmatpush1.msra.mxu0 0.0
      %590 = vmatprep.subr.mxu0 0.0
      %591 = vmatpush1.msra.mxu0 0.0
      %592 = vmatprep.subr.mxu0 0.0
      %593 = vmatpush1.msra.mxu0 0.0
      %594 = vmatprep.mubr.f32.mxu0 0.0
      %595 = vmatmul.mubr.f32.gmra.mrb[0].mxu0 %v453
      %v596 = vpop.f32.mrb[0].mxu0
      %v597 = vadd.f32 0.0, %v596
      %v598 = vpop.f32.mrb[0].mxu0
      %599 = vdwg.mxu0
      %600 = vst.msk [vmem:[%s401] sm:$0xff] %vm451, %v597
      %v601 = vld [vmem:[%s387] sm:$0xff]
      %v602 = vld [vmem:[%s387 + $0x8] sm:$0xff]
      %v603 = vld [vmem:[%s387 + $0x10] sm:$0xff]
      %v604 = vld [vmem:[%s387 + $0x18] sm:$0xff]
      %605 = vmatprep.subr.mxu0 0.0
      %606 = vmatpush1.msra.mxu0 %v601
      %607 = vmatprep.subr.mxu0 0.0
      %608 = vmatpush1.msra.mxu0 %v602
      %609 = vmatprep.subr.mxu0 0.0
      %610 = vmatpush1.msra.mxu0 %v603
      %611 = vmatprep.subr.mxu0 0.0
      %612 = vmatpush1.msra.mxu0 %v604
      %613 = vmatprep.subr.mxu0 0.0
      %614 = vmatpush1.msra.mxu0 0.0
      %615 = vmatprep.subr.mxu0 0.0
      %616 = vmatpush1.msra.mxu0 0.0
      %617 = vmatprep.subr.mxu0 0.0
      %618 = vmatpush1.msra.mxu0 0.0
      %619 = vmatprep.subr.mxu0 0.0
      %620 = vmatpush1.msra.mxu0 0.0
      %621 = vmatprep.subr.mxu0 0.0
      %622 = vmatpush1.msra.mxu0 0.0
      %623 = vmatprep.subr.mxu0 0.0
      %624 = vmatpush1.msra.mxu0 0.0
      %625 = vmatprep.subr.mxu0 0.0
      %626 = vmatpush1.msra.mxu0 0.0
      %627 = vmatprep.subr.mxu0 0.0
      %628 = vmatpush1.msra.mxu0 0.0
      %629 = vmatprep.subr.mxu0 0.0
      %630 = vmatpush1.msra.mxu0 0.0
      %631 = vmatprep.subr.mxu0 0.0
      %632 = vmatpush1.msra.mxu0 0.0
      %633 = vmatprep.subr.mxu0 0.0
      %634 = vmatpush1.msra.mxu0 0.0
      %635 = vmatprep.subr.mxu0 0.0
      %636 = vmatpush1.msra.mxu0 0.0
      %637 = vmatprep.subr.mxu0 0.0
      %638 = vmatpush1.msra.mxu0 0.0
      %639 = vmatprep.subr.mxu0 0.0
      %640 = vmatpush1.msra.mxu0 0.0
      %641 = vmatprep.subr.mxu0 0.0
      %642 = vmatpush1.msra.mxu0 0.0
      %643 = vmatprep.subr.mxu0 0.0
      %644 = vmatpush1.msra.mxu0 0.0
      %645 = vmatprep.subr.mxu0 0.0
      %646 = vmatpush1.msra.mxu0 0.0
      %647 = vmatprep.subr.mxu0 0.0
      %648 = vmatpush1.msra.mxu0 0.0
      %649 = vmatprep.subr.mxu0 0.0
      %650 = vmatpush1.msra.mxu0 0.0
      %651 = vmatprep.subr.mxu0 0.0
      %652 = vmatpush1.msra.mxu0 0.0
      %653 = vmatprep.subr.mxu0 0.0
      %654 = vmatpush1.msra.mxu0 0.0
      %655 = vmatprep.subr.mxu0 0.0
      %656 = vmatpush1.msra.mxu0 0.0
      %657 = vmatprep.subr.mxu0 0.0
      %658 = vmatpush1.msra.mxu0 0.0
      %659 = vmatprep.subr.mxu0 0.0
      %660 = vmatpush1.msra.mxu0 0.0
      %661 = vmatprep.subr.mxu0 0.0
      %662 = vmatpush1.msra.mxu0 0.0
      %663 = vmatprep.subr.mxu0 0.0
      %664 = vmatpush1.msra.mxu0 0.0
      %665 = vmatprep.subr.mxu0 0.0
      %666 = vmatpush1.msra.mxu0 0.0
      %667 = vmatprep.subr.mxu0 0.0
      %668 = vmatpush1.msra.mxu0 0.0
      %669 = vmatprep.mubr.f32.mxu0 0.0
      %670 = vmatmul.mubr.f32.gmra.mrb[0].mxu0 %v453
      %v671 = vpop.f32.mrb[0].mxu0
      %v672 = vadd.f32 0.0, %v671
      %v673 = vpop.f32.mrb[0].mxu0
      %674 = vdwg.mxu0
      %675 = vst.msk [vmem:[%s408] sm:$0xff] %vm451, %v672
      %p676 = scmp.lt.s32.totalorder %s24, 1
      %s677 = scalar_select %p676, %s24, 1
      %p678 = scmp.lt.s32.totalorder %s25, 0
      %s679 = scalar_select %p678, %s25, 0
      %s680 = sadd.s32 %s679, %s677
      %s681 = smul.addr %s680, 8
      %s682 = scalar_lea.vmem %s6, %s681
      %p683 = scmp.lt.s32.totalorder %s24, 1
      %s684 = scalar_select %p683, %s24, 1
      %p685 = scmp.lt.s32.totalorder %s25, 0
      %s686 = scalar_select %p685, %s25, 0
      %s687 = sadd.s32 %s686, %s684
      %s688 = smul.addr %s687, 8
      %s689 = scalar_lea.vmem %s7, %s688
      %p690 = scmp.lt.s32.totalorder %s24, 1
      %s691 = scalar_select %p690, %s24, 1
      %p692 = scmp.lt.s32.totalorder %s25, 0
      %s693 = scalar_select %p692, %s25, 0
      %s694 = sadd.s32 %s693, %s691
      %s695 = smul.addr %s694, 8
      %s696 = scalar_lea.vmem %s8, %s695
      // Predicated region
      $region49: #{block_forward.3} parent=43 // pred_check
        %p697 = pneg %p198
      $region50: #{block_forward.3} parent=43 // pred_check_branch
        %699 = sbr.rel (%p697) target = $region52
      $region51: #{block_forward.3} parent=43 // pred_region
        _
      $region52: #{block_forward.3} parent=43 // pred_fallthru
        _
      // Predicated region
      $region53: #{block_forward.3} parent=43 // pred_check
        %p700 = pneg %p226
      $region54: #{block_forward.3} parent=43 // pred_check_branch
        %702 = sbr.rel (%p700) target = $region56
      $region55: #{block_forward.3} parent=43 // pred_region
        _
      $region56: #{block_forward.3} parent=43 // pred_fallthru
        _
      // Predicated region
      $region57: #{block_forward.3} parent=43 // pred_check
        %p703 = pneg %p254
      $region58: #{block_forward.3} parent=43 // pred_check_branch
        %705 = sbr.rel (%p703) target = $region60
      $region59: #{block_forward.3} parent=43 // pred_region
        _
      $region60: #{block_forward.3} parent=43 // pred_fallthru
        _
    $region44: #{block_forward.3} parent=5 // pred_fallthru
      _
    %p706 = scmp.le.s32.totalorder 2, %s15
    // Predicated region
    $region61: #{block_forward.3} parent=5 // pred_check
      %p707 = pneg %p706
    $region62: #{block_forward.3} parent=5 // pred_check_branch
      %709 = sbr.rel (%p707) target = $region64
    $region63: #{block_forward.3} parent=5 // pred_region
      %s710 = ssub.s32 %s15, 2
      // Predicated region
      $region65: #{block_forward.3} parent=63 // pred_check
        %p711 = pneg %p204
      $region66: #{block_forward.3} parent=63 // pred_check_branch
        %713 = sbr.rel (%p711) target = $region68
      $region67: #{block_forward.3} parent=63 // pred_region
        %p714 = scmp.lt.s32.totalorder %s26, 1
        %s715 = scalar_select %p714, %s26, 1
        %p716 = scmp.lt.s32.totalorder %s27, 0
        %s717 = scalar_select %p716, %s27, 0
        %s718 = sadd.s32 %s717, %s715
        %s719 = smul.addr %s718, 8
        %s720 = scalar_lea.vmem %s6, %s719
      $region68: #{block_forward.3} parent=63 // pred_fallthru
        _
      // Predicated region
      $region69: #{block_forward.3} parent=63 // pred_check
        %p721 = pneg %p232
      $region70: #{block_forward.3} parent=63 // pred_check_branch
        %723 = sbr.rel (%p721) target = $region72
      $region71: #{block_forward.3} parent=63 // pred_region
        %p724 = scmp.lt.s32.totalorder %s26, 1
        %s725 = scalar_select %p724, %s26, 1
        %p726 = scmp.lt.s32.totalorder %s27, 0
        %s727 = scalar_select %p726, %s27, 0
        %s728 = sadd.s32 %s727, %s725
        %s729 = smul.addr %s728, 8
        %s730 = scalar_lea.vmem %s7, %s729
      $region72: #{block_forward.3} parent=63 // pred_fallthru
        _
      // Predicated region
      $region73: #{block_forward.3} parent=63 // pred_check
        %p731 = pneg %p260
      $region74: #{block_forward.3} parent=63 // pred_check_branch
        %733 = sbr.rel (%p731) target = $region76
      $region75: #{block_forward.3} parent=63 // pred_region
        %p734 = scmp.lt.s32.totalorder %s26, 1
        %s735 = scalar_select %p734, %s26, 1
        %p736 = scmp.lt.s32.totalorder %s27, 0
        %s737 = scalar_select %p736, %s27, 0
        %s738 = sadd.s32 %s737, %s735
        %s739 = smul.addr %s738, 8
        %s740 = scalar_lea.vmem %s8, %s739
      $region76: #{block_forward.3} parent=63 // pred_fallthru
        _
    $region64: #{block_forward.3} parent=5 // pred_fallthru
      _
  $region6: #{block_forward.3} parent=0 // loop_footer
    %s19 = sadd.s32 1, %s15
  $region7: #{block_forward.3} parent=0 // loop_footer_branch
    %14 = sbr.rel target = $region3
  $region8: #{block_forward.3} parent=0 // loop_exit
    _

// kernel: block_forward.4
$region0: #{block_forward.4}
  #allocation0 [shape = 'u32[]', space=smem, size = 0x4, offset = 0x4, fixed_abs, tag = 'smem constant byte address 0x4 - core index']
  #allocation1 [shape = 'u32[144,128]{1,0:T(1,128)}', space=vmem, size = 0x12000, scoped, tag = 'internal scratch']
  %s0 = inlined_call_operand.vmem [shape: f32[16,32], index: 0, kind: input, shape index: {}]
  %s1 = inlined_call_operand.vmem [shape: f32[16,32], index: 1, kind: input, shape index: {}]
  %s2 = inlined_call_operand.vmem [shape: f32[16,32], index: 2, kind: input, shape index: {}]
  %s3 = inlined_call_operand.vmem [shape: f32[16,32], index: 3, kind: output, shape index: {}]
  %s4 = sld [smem:[#allocation0]]
  $region45: #{block_forward.4} parent=0
    _
  %s6 = ssub.s32 1, %s4
  %s7 = scalar_select 0, %s6, %s4
  loop: start=0, step=1, limit=4
  $region2: #{block_forward.4} parent=0 // loop_pre_header
    _
  $region3: #{block_forward.4} parent=0 // loop_header
    %s9 = sphi 0, %s13
    %p10 = scmp.ge.s32.totalorder %s9, 4
    %s16 = sphi 0, %s28
    %s17 = sphi 0, %s24
    %s18 = sphi 0, %s16
    %s19 = sphi 0, %s17
    %s20 = sphi 0, %s18
    %s21 = sphi 0, %s19
    %s33 = sphi 0, %s35
    %s36 = sphi 0, %s33
    %s37 = sphi 0, %s36
    %s53 = sphi 0, %s37
    %s61 = sphi 0, %s63
    %s64 = sphi 0, %s61
    %s65 = sphi 0, %s64
    %s81 = sphi 0, %s65
    %s89 = sphi 0, %s91
    %s92 = sphi 0, %s89
    %s93 = sphi 0, %s92
    %s109 = sphi 0, %s93
    %s117 = sphi 0, %s119
    %s120 = sphi 0, %s117
    %s121 = sphi 0, %s120
    %s137 = sphi 0, %s121
  $region4: #{block_forward.4} parent=0 // loop_header_branch
    %12 = sbr.rel (%p10) target = $region8
  $region5: #{block_forward.4} parent=0 // loop_body
    %s14 = ssub.s32 %s9, 1
    %s15 = ssub.s32 %s9, 2
    %s22 = sadd.s32 1, %s17
    %p23 = scmp.ge.s32.totalorder %s22, 1
    %s24 = scalar_select %p23, 0, %s22
    %s25 = sadd.s32 1, %s16
    %s26 = scalar_select %p23, %s25, %s16
    %p27 = scmp.ge.s32.totalorder %s26, 2
    %s28 = scalar_select %p27, 0, %s26
    %s29 = ssub.s32 %s16, %s28
    %s30 = ssub.s32 %s17, %s24
    %s31 = sor.u32 %s29, %s30
    %p32 = scmp.eq.s32.totalorder %s31, 0
    %s34 = sadd.s32 %s33, 1
    %s35 = scalar_select %p32, %s33, %s34
    %p38 = pneg %p32
    %p39 = scmp.eq.s32.totalorder %s9, 1
    %p40 = por %p38, %p39
    %p41 = scmp.ne.s32.totalorder %s33, %s36
    %p42 = scmp.eq.s32.totalorder %s9, 0
    %p43 = por %p41, %p42
    %p44 = scmp.ne.s32.totalorder %s33, %s36
    %p45 = scmp.eq.s32.totalorder %s14, 1
    %p46 = por %p44, %p45
    %p47 = scmp.ne.s32.totalorder %s36, %s37
    %p48 = scmp.eq.s32.totalorder %s14, 0
    %p49 = por %p47, %p48
    %p50 = scmp.ne.s32.totalorder %s36, %s37
    %p51 = scmp.eq.s32.totalorder %s15, 1
    %p52 = por %p50, %p51
    %p54 = scmp.ne.s32.totalorder %s37, %s53
    %p55 = scmp.eq.s32.totalorder %s15, 0
    %p56 = por %p54, %p55
    %s57 = ssub.s32 %s16, %s28
    %s58 = ssub.s32 %s17, %s24
    %s59 = sor.u32 %s57, %s58
    %p60 = scmp.eq.s32.totalorder %s59, 0
    %s62 = sadd.s32 %s61, 1
    %s63 = scalar_select %p60, %s61, %s62
    %p66 = pneg %p60
    %p67 = scmp.eq.s32.totalorder %s9, 1
    %p68 = por %p66, %p67
    %p69 = scmp.ne.s32.totalorder %s61, %s64
    %p70 = scmp.eq.s32.totalorder %s9, 0
    %p71 = por %p69, %p70
    %p72 = scmp.ne.s32.totalorder %s61, %s64
    %p73 = scmp.eq.s32.totalorder %s14, 1
    %p74 = por %p72, %p73
    %p75 = scmp.ne.s32.totalorder %s64, %s65
    %p76 = scmp.eq.s32.totalorder %s14, 0
    %p77 = por %p75, %p76
    %p78 = scmp.ne.s32.totalorder %s64, %s65
    %p79 = scmp.eq.s32.totalorder %s15, 1
    %p80 = por %p78, %p79
    %p82 = scmp.ne.s32.totalorder %s65, %s81
    %p83 = scmp.eq.s32.totalorder %s15, 0
    %p84 = por %p82, %p83
    %s85 = ssub.s32 %s16, %s28
    %s86 = ssub.s32 %s17, %s24
    %s87 = sor.u32 %s85, %s86
    %p88 = scmp.eq.s32.totalorder %s87, 0
    %s90 = sadd.s32 %s89, 1
    %s91 = scalar_select %p88, %s89, %s90
    %p94 = pneg %p88
    %p95 = scmp.eq.s32.totalorder %s9, 1
    %p96 = por %p94, %p95
    %p97 = scmp.ne.s32.totalorder %s89, %s92
    %p98 = scmp.eq.s32.totalorder %s9, 0
    %p99 = por %p97, %p98
    %p100 = scmp.ne.s32.totalorder %s89, %s92
    %p101 = scmp.eq.s32.totalorder %s14, 1
    %p102 = por %p100, %p101
    %p103 = scmp.ne.s32.totalorder %s92, %s93
    %p104 = scmp.eq.s32.totalorder %s14, 0
    %p105 = por %p103, %p104
    %p106 = scmp.ne.s32.totalorder %s92, %s93
    %p107 = scmp.eq.s32.totalorder %s15, 1
    %p108 = por %p106, %p107
    %p110 = scmp.ne.s32.totalorder %s93, %s109
    %p111 = scmp.eq.s32.totalorder %s15, 0
    %p112 = por %p110, %p111
    %s113 = ssub.s32 %s16, %s28
    %s114 = ssub.s32 %s17, %s24
    %s115 = sor.u32 %s113, %s114
    %p116 = scmp.eq.s32.totalorder %s115, 0
    %s118 = sadd.s32 %s117, 1
    %s119 = scalar_select %p116, %s117, %s118
    %p122 = pneg %p116
    %p123 = scmp.eq.s32.totalorder %s9, 1
    %p124 = por %p122, %p123
    %p125 = scmp.ne.s32.totalorder %s117, %s120
    %p126 = scmp.eq.s32.totalorder %s9, 0
    %p127 = por %p125, %p126
    %p128 = scmp.ne.s32.totalorder %s117, %s120
    %p129 = scmp.eq.s32.totalorder %s14, 1
    %p130 = por %p128, %p129
    %p131 = scmp.ne.s32.totalorder %s120, %s121
    %p132 = scmp.eq.s32.totalorder %s14, 0
    %p133 = por %p131, %p132
    %p134 = scmp.ne.s32.totalorder %s120, %s121
    %p135 = scmp.eq.s32.totalorder %s15, 1
    %p136 = por %p134, %p135
    %p138 = scmp.ne.s32.totalorder %s121, %s137
    %p139 = scmp.eq.s32.totalorder %s15, 0
    %p140 = por %p138, %p139
    %p141 = scmp.le.s32.totalorder 1, %s9
    %p142 = scmp.lt.s32.totalorder %s9, 3
    %p143 = pnand %p141, %p142
    %p144 = pneg %p143
    // Predicated region
    $region9: #{block_forward.4} parent=5 // pred_check
      _
    $region10: #{block_forward.4} parent=5 // pred_check_branch
      %146 = sbr.rel (%p143) target = $region12
    $region11: #{block_forward.4} parent=5 // pred_region
      %s147 = ssub.s32 %s9, 1
    $region12: #{block_forward.4} parent=5 // pred_fallthru
      _
    %p148 = scmp.lt.s32.totalorder %s9, 2
    // Predicated region
    $region13: #{block_forward.4} parent=5 // pred_check
      %p149 = pneg %p148
    $region14: #{block_forward.4} parent=5 // pred_check_branch
      %151 = sbr.rel (%p149) target = $region16
    $region15: #{block_forward.4} parent=5 // pred_region
      // Predicated region
      $region17: #{block_forward.4} parent=15 // pred_check
        %p152 = pneg %p43
      $region18: #{block_forward.4} parent=15 // pred_check_branch
        %154 = sbr.rel (%p152) target = $region20
      $region19: #{block_forward.4} parent=15 // pred_region
        %p155 = scmp.lt.s32.totalorder %s16, 1
        %s156 = scalar_select %p155, %s16, 1
        %p157 = scmp.lt.s32.totalorder %s17, 0
        %s158 = scalar_select %p157, %s17, 0
        %s159 = sadd.s32 %s158, %s156
        %s160 = smul.addr %s159, 8
        %s161 = scalar_lea.vmem %s0, %s160
      $region20: #{block_forward.4} parent=15 // pred_fallthru
        _
      // Predicated region
      $region21: #{block_forward.4} parent=15 // pred_check
        %p162 = pneg %p71
      $region22: #{block_forward.4} parent=15 // pred_check_branch
        %164 = sbr.rel (%p162) target = $region24
      $region23: #{block_forward.4} parent=15 // pred_region
        %p165 = scmp.lt.s32.totalorder %s16, 1
        %s166 = scalar_select %p165, %s16, 1
        %p167 = scmp.lt.s32.totalorder %s17, 0
        %s168 = scalar_select %p167, %s17, 0
        %s169 = sadd.s32 %s168, %s166
        %s170 = smul.addr %s169, 8
        %s171 = scalar_lea.vmem %s1, %s170
      $region24: #{block_forward.4} parent=15 // pred_fallthru
        _
      // Predicated region
      $region25: #{block_forward.4} parent=15 // pred_check
        %p172 = pneg %p99
      $region26: #{block_forward.4} parent=15 // pred_check_branch
        %174 = sbr.rel (%p172) target = $region28
      $region27: #{block_forward.4} parent=15 // pred_region
        %p175 = scmp.lt.s32.totalorder %s16, 1
        %s176 = scalar_select %p175, %s16, 1
        %p177 = scmp.lt.s32.totalorder %s17, 0
        %s178 = scalar_select %p177, %s17, 0
        %s179 = sadd.s32 %s178, %s176
        %s180 = smul.addr %s179, 8
        %s181 = scalar_lea.vmem %s2, %s180
      $region28: #{block_forward.4} parent=15 // pred_fallthru
        _
    $region16: #{block_forward.4} parent=5 // pred_fallthru
      _
    %p182 = scmp.le.s32.totalorder 1, %s9
    %p183 = scmp.lt.s32.totalorder %s9, 3
    %p184 = pnand %p182, %p183
    %p185 = pneg %p184
    // Predicated region
    $region29: #{block_forward.4} parent=5 // pred_check
      _
    $region30: #{block_forward.4} parent=5 // pred_check_branch
      %187 = sbr.rel (%p184) target = $region32
    $region31: #{block_forward.4} parent=5 // pred_region
      %s188 = ssub.s32 %s9, 1
      %p189 = scmp.lt.s32.totalorder %s18, 1
      %s190 = scalar_select %p189, %s18, 1
      %p191 = scmp.lt.s32.totalorder %s19, 0
      %s192 = scalar_select %p191, %s19, 0
      %s193 = sadd.s32 %s192, %s190
      %s194 = smul.addr %s193, 8
      %s195 = scalar_lea.vmem %s0, %s194
      %p196 = pneg %p49
      %p197 = pneg %p46
      %p198 = scmp.lt.s32.totalorder %s18, 1
      %s199 = scalar_select %p198, %s18, 1
      %p200 = scmp.lt.s32.totalorder %s19, 0
      %s201 = scalar_select %p200, %s19, 0
      %s202 = sadd.s32 %s201, %s199
      %s203 = smul.addr %s202, 8
      %s204 = scalar_lea.vmem %s1, %s203
      %p205 = pneg %p77
      %p206 = pneg %p74
      %p207 = scmp.lt.s32.totalorder %s18, 1
      %s208 = scalar_select %p207, %s18, 1
      %p209 = scmp.lt.s32.totalorder %s19, 0
      %s210 = scalar_select %p209, %s19, 0
      %s211 = sadd.s32 %s210, %s208
      %s212 = smul.addr %s211, 8
      %s213 = scalar_lea.vmem %s2, %s212
      %p214 = pneg %p105
      %p215 = pneg %p102
      %p216 = pneg %p133
      %p217 = pneg %p130
      %p218 = scmp.lt.s32.totalorder %s18, 1
      %s219 = scalar_select %p218, %s18, 1
      %p220 = scmp.lt.s32.totalorder %s19, 0
      %s221 = scalar_select %p220, %s19, 0
      %s222 = sadd.s32 %s221, %s219
      %s223 = smul.addr %s222, 8
      %s224 = scalar_lea.vmem %s3, %s223
      %p225 = scmp.lt.s32.totalorder %s18, 1
      %s226 = scalar_select %p225, %s18, 1
      %p227 = scmp.lt.s32.totalorder %s19, 0
      %s228 = scalar_select %p227, %s19, 0
      %s229 = sadd.s32 %s228, %s226
      %s230 = smul.addr %s229, 8
      %s231 = scalar_lea.vmem %s0, %s230
      %p232 = scmp.lt.s32.totalorder %s18, 1
      %s233 = scalar_select %p232, %s18, 1
      %p234 = scmp.lt.s32.totalorder %s19, 0
      %s235 = scalar_select %p234, %s19, 0
      %s236 = sadd.s32 %s235, %s233
      %s237 = smul.addr %s236, 8
      %s238 = scalar_lea.vmem %s1, %s237
      %p239 = scmp.lt.s32.totalorder %s18, 1
      %s240 = scalar_select %p239, %s18, 1
      %p241 = scmp.lt.s32.totalorder %s19, 0
      %s242 = scalar_select %p241, %s19, 0
      %s243 = sadd.s32 %s242, %s240
      %s244 = smul.addr %s243, 8
      %s245 = scalar_lea.vmem %s2, %s244
      %p246 = scmp.lt.s32.totalorder %s18, 1
      %s247 = scalar_select %p246, %s18, 1
      %p248 = scmp.lt.s32.totalorder %s19, 0
      %s249 = scalar_select %p248, %s19, 0
      %s250 = sadd.s32 %s249, %s247
      %s251 = smul.addr %s250, 8
      %s252 = scalar_lea.vmem %s3, %s251
      %v253 = vld [vmem:[%s231] sm:$0xff]
      %v254 = vmul.f32 %v253, 0.35355338
      %v255 = vld [vmem:[%s238] sm:$0xff]
      %vm256 = vcmask 64512
      %v258 = vsel %vm256, %v254, 0
      %v261 = vsel %vm256, %v255, 0
      %263 = vmatprep.subr.mxu0 0.0
      %264 = vmatpush1.xpose.msra.mxu0 %v261
      %265 = vmatprep.subr.mxu0 0.0
      %266 = vmatpush1.xpose.msra.mxu0 0.0
      %267 = vmatprep.subr.mxu0 0.0
      %268 = vmatpush1.xpose.msra.mxu0 0.0
      %269 = vmatprep.subr.mxu0 0.0
      %270 = vmatpush1.xpose.msra.mxu0 0.0
      %271 = vmatprep.subr.mxu0 0.0
      %272 = vmatpush1.xpose.msra.mxu0 0.0
      %273 = vmatprep.subr.mxu0 0.0
      %274 = vmatpush1.xpose.msra.mxu0 0.0
      %275 = vmatprep.subr.mxu0 0.0
      %276 = vmatpush1.xpose.msra.mxu0 0.0
      %277 = vmatprep.subr.mxu0 0.0
      %278 = vmatpush1.xpose.msra.mxu0 0.0
      %279 = vmatprep.subr.mxu0 0.0
      %280 = vmatpush1.xpose.msra.mxu0 0.0
      %281 = vmatprep.subr.mxu0 0.0
      %282 = vmatpush1.xpose.msra.mxu0 0.0
      %283 = vmatprep.subr.mxu0 0.0
      %284 = vmatpush1.xpose.msra.mxu0 0.0
      %285 = vmatprep.subr.mxu0 0.0
      %286 = vmatpush1.xpose.msra.mxu0 0.0
      %287 = vmatprep.subr.mxu0 0.0
      %288 = vmatpush1.xpose.msra.mxu0 0.0
      %289 = vmatprep.subr.mxu0 0.0
      %290 = vmatpush1.xpose.msra.mxu0 0.0
      %291 = vmatprep.subr.mxu0 0.0
      %292 = vmatpush1.xpose.msra.mxu0 0.0
      %293 = vmatprep.subr.mxu0 0.0
      %294 = vmatpush1.xpose.msra.mxu0 0.0
      %295 = vmatprep.subr.mxu0 0.0
      %296 = vmatpush1.xpose.msra.mxu0 0.0
      %297 = vmatprep.subr.mxu0 0.0
      %298 = vmatpush1.xpose.msra.mxu0 0.0
      %299 = vmatprep.subr.mxu0 0.0
      %300 = vmatpush1.xpose.msra.mxu0 0.0
      %301 = vmatprep.subr.mxu0 0.0
      %302 = vmatpush1.xpose.msra.mxu0 0.0
      %303 = vmatprep.subr.mxu0 0.0
      %304 = vmatpush1.xpose.msra.mxu0 0.0
      %305 = vmatprep.subr.mxu0 0.0
      %306 = vmatpush1.xpose.msra.mxu0 0.0
      %307 = vmatprep.subr.mxu0 0.0
      %308 = vmatpush1.xpose.msra.mxu0 0.0
      %309 = vmatprep.subr.mxu0 0.0
      %310 = vmatpush1.xpose.msra.mxu0 0.0
      %311 = vmatprep.subr.mxu0 0.0
      %312 = vmatpush1.xpose.msra.mxu0 0.0
      %313 = vmatprep.subr.mxu0 0.0
      %314 = vmatpush1.xpose.msra.mxu0 0.0
      %315 = vmatprep.subr.mxu0 0.0
      %316 = vmatpush1.xpose.msra.mxu0 0.0
      %317 = vmatprep.subr.mxu0 0.0
      %318 = vmatpush1.xpose.msra.mxu0 0.0
      %319 = vmatprep.subr.mxu0 0.0
      %320 = vmatpush1.xpose.msra.mxu0 0.0
      %321 = vmatprep.subr.mxu0 0.0
      %322 = vmatpush1.xpose.msra.mxu0 0.0
      %323 = vmatprep.subr.mxu0 0.0
      %324 = vmatpush1.xpose.msra.mxu0 0.0
      %325 = vmatprep.subr.mxu0 0.0
      %326 = vmatpush1.xpose.msra.mxu0 0.0
      %327 = vmatprep.mubr.f32.mxu0 0.0
      %328 = vmatmul.mubr.f32.gmra.mrb[0].mxu0 %v258
      %v329 = vpop.f32.mrb[0].mxu0
      %v330 = vadd.f32 0.0, %v329
      %v331 = vpop.f32.mrb[0].mxu0
      %332 = vdwg.mxu0
      %v333 = vsel %vm256, %v330, -inf
      %334 = vmax.xlane.f32.xlu0 %v333
      %v335 = vpop.xlane.xlu0 %334
      %v336 = vsub.f32 %v330, %v335
      %v337 = vmul.f32 %v336, 1.442695
      %v338 = vpow.pop %v337
      %v339 = vsel %vm256, %v338, 0.0
      %340 = vadd.xlane.f32.xlu0 %v339
      %v341 = vpop.xlane.xlu0 %340
      %v342 = vrcp.pop %v341
      %v343 = vmul.f32 %v338, %v342
      %v344 = vld [vmem:[%s245] sm:$0xff]
      %v346 = vsel %vm256, %v343, 0
      %348 = vmatprep.subr.mxu0 0.0
      %349 = vmatpush1.msra.mxu0 %v344
      %350 = vmatprep.subr.mxu0 0.0
      %351 = vmatpush1.msra.mxu0 0.0
      %352 = vmatprep.subr.mxu0 0.0
      %353 = vmatpush1.msra.mxu0 0.0
      %354 = vmatprep.subr.mxu0 0.0
      %355 = vmatpush1.msra.mxu0 0.0
      %356 = vmatprep.subr.mxu0 0.0
      %357 = vmatpush1.msra.mxu0 0.0
      %358 = vmatprep.subr.mxu0 0.0
      %359 = vmatpush1.msra.mxu0 0.0
      %360 = vmatprep.subr.mxu0 0.0
      %361 = vmatpush1.msra.mxu0 0.0
      %362 = vmatprep.subr.mxu0 0.0
      %363 = vmatpush1.msra.mxu0 0.0
      %364 = vmatprep.subr.mxu0 0.0
      %365 = vmatpush1.msra.mxu0 0.0
      %366 = vmatprep.subr.mxu0 0.0
      %367 = vmatpush1.msra.mxu0 0.0
      %368 = vmatprep.subr.mxu0 0.0
      %369 = vmatpush1.msra.mxu0 0.0
      %370 = vmatprep.subr.mxu0 0.0
      %371 = vmatpush1.msra.mxu0 0.0
      %372 = vmatprep.subr.mxu0 0.0
      %373 = vmatpush1.msra.mxu0 0.0
      %374 = vmatprep.subr.mxu0 0.0
      %375 = vmatpush1.msra.mxu0 0.0
      %376 = vmatprep.subr.mxu0 0.0
      %377 = vmatpush1.msra.mxu0 0.0
      %378 = vmatprep.subr.mxu0 0.0
      %379 = vmatpush1.msra.mxu0 0.0
      %380 = vmatprep.subr.mxu0 0.0
      %381 = vmatpush1.msra.mxu0 0.0
      %382 = vmatprep.subr.mxu0 0.0
      %383 = vmatpush1.msra.mxu0 0.0
      %384 = vmatprep.subr.mxu0 0.0
      %385 = vmatpush1.msra.mxu0 0.0
      %386 = vmatprep.subr.mxu0 0.0
      %387 = vmatpush1.msra.mxu0 0.0
      %388 = vmatprep.subr.mxu0 0.0
      %389 = vmatpush1.msra.mxu0 0.0
      %390 = vmatprep.subr.mxu0 0.0
      %391 = vmatpush1.msra.mxu0 0.0
      %392 = vmatprep.subr.mxu0 0.0
      %393 = vmatpush1.msra.mxu0 0.0
      %394 = vmatprep.subr.mxu0 0.0
      %395 = vmatpush1.msra.mxu0 0.0
      %396 = vmatprep.subr.mxu0 0.0
      %397 = vmatpush1.msra.mxu0 0.0
      %398 = vmatprep.subr.mxu0 0.0
      %399 = vmatpush1.msra.mxu0 0.0
      %400 = vmatprep.subr.mxu0 0.0
      %401 = vmatpush1.msra.mxu0 0.0
      %402 = vmatprep.subr.mxu0 0.0
      %403 = vmatpush1.msra.mxu0 0.0
      %404 = vmatprep.subr.mxu0 0.0
      %405 = vmatpush1.msra.mxu0 0.0
      %406 = vmatprep.subr.mxu0 0.0
      %407 = vmatpush1.msra.mxu0 0.0
      %408 = vmatprep.subr.mxu0 0.0
      %409 = vmatpush1.msra.mxu0 0.0
      %410 = vmatprep.subr.mxu0 0.0
      %411 = vmatpush1.msra.mxu0 0.0
      %412 = vmatprep.mubr.f32.mxu0 0.0
      %413 = vmatmul.mubr.f32.gmra.mrb[0].mxu0 %v346
      %v414 = vpop.f32.mrb[0].mxu0
      %v415 = vadd.f32 0.0, %v414
      %v416 = vpop.f32.mrb[0].mxu0
      %417 = vdwg.mxu0
      %418 = vrot.lane.b32.xlu0 %v254, 120
      %v419 = vpop.permute.xlu0 %418
      %420 = vrot.lane.b32.xlu0 %v255, 120
      %v421 = vpop.permute.xlu0 %420
      %v422 = vsel %vm256, %v419, 0
      %v424 = vsel %vm256, %v421, 0
      %426 = vmatprep.subr.mxu0 0.0
      %427 = vmatpush1.xpose.msra.mxu0 %v424
      %428 = vmatprep.subr.mxu0 0.0
      %429 = vmatpush1.xpose.msra.mxu0 0.0
      %430 = vmatprep.subr.mxu0 0.0
      %431 = vmatpush1.xpose.msra.mxu0 0.0
      %432 = vmatprep.subr.mxu0 0.0
      %433 = vmatpush1.xpose.msra.mxu0 0.0
      %434 = vmatprep.subr.mxu0 0.0
      %435 = vmatpush1.xpose.msra.mxu0 0.0
      %436 = vmatprep.subr.mxu0 0.0
      %437 = vmatpush1.xpose.msra.mxu0 0.0
      %438 = vmatprep.subr.mxu0 0.0
      %439 = vmatpush1.xpose.msra.mxu0 0.0
      %440 = vmatprep.subr.mxu0 0.0
      %441 = vmatpush1.xpose.msra.mxu0 0.0
      %442 = vmatprep.subr.mxu0 0.0
      %443 = vmatpush1.xpose.msra.mxu0 0.0
      %444 = vmatprep.subr.mxu0 0.0
      %445 = vmatpush1.xpose.msra.mxu0 0.0
      %446 = vmatprep.subr.mxu0 0.0
      %447 = vmatpush1.xpose.msra.mxu0 0.0
      %448 = vmatprep.subr.mxu0 0.0
      %449 = vmatpush1.xpose.msra.mxu0 0.0
      %450 = vmatprep.subr.mxu0 0.0
      %451 = vmatpush1.xpose.msra.mxu0 0.0
      %452 = vmatprep.subr.mxu0 0.0
      %453 = vmatpush1.xpose.msra.mxu0 0.0
      %454 = vmatprep.subr.mxu0 0.0
      %455 = vmatpush1.xpose.msra.mxu0 0.0
      %456 = vmatprep.subr.mxu0 0.0
      %457 = vmatpush1.xpose.msra.mxu0 0.0
      %458 = vmatprep.subr.mxu0 0.0
      %459 = vmatpush1.xpose.msra.mxu0 0.0
      %460 = vmatprep.subr.mxu0 0.0
      %461 = vmatpush1.xpose.msra.mxu0 0.0
      %462 = vmatprep.subr.mxu0 0.0
      %463 = vmatpush1.xpose.msra.mxu0 0.0
      %464 = vmatprep.subr.mxu0 0.0
      %465 = vmatpush1.xpose.msra.mxu0 0.0
      %466 = vmatprep.subr.mxu0 0.0
      %467 = vmatpush1.xpose.msra.mxu0 0.0
      %468 = vmatprep.subr.mxu0 0.0
      %469 = vmatpush1.xpose.msra.mxu0 0.0
      %470 = vmatprep.subr.mxu0 0.0
      %471 = vmatpush1.xpose.msra.mxu0 0.0
      %472 = vmatprep.subr.mxu0 0.0
      %473 = vmatpush1.xpose.msra.mxu0 0.0
      %474 = vmatprep.subr.mxu0 0.0
      %475 = vmatpush1.xpose.msra.mxu0 0.0
      %476 = vmatprep.subr.mxu0 0.0
      %477 = vmatpush1.xpose.msra.mxu0 0.0
      %478 = vmatprep.subr.mxu0 0.0
      %479 = vmatpush1.xpose.msra.mxu0 0.0
      %480 = vmatprep.subr.mxu0 0.0
      %481 = vmatpush1.xpose.msra.mxu0 0.0
      %482 = vmatprep.subr.mxu0 0.0
      %483 = vmatpush1.xpose.msra.mxu0 0.0
      %484 = vmatprep.subr.mxu0 0.0
      %485 = vmatpush1.xpose.msra.mxu0 0.0
      %486 = vmatprep.subr.mxu0 0.0
      %487 = vmatpush1.xpose.msra.mxu0 0.0
      %488 = vmatprep.subr.mxu0 0.0
      %489 = vmatpush1.xpose.msra.mxu0 0.0
      %490 = vmatprep.mubr.f32.mxu0 0.0
      %491 = vmatmul.mubr.f32.gmra.mrb[0].mxu0 %v422
      %v492 = vpop.f32.mrb[0].mxu0
      %v493 = vadd.f32 0.0, %v492
      %v494 = vpop.f32.mrb[0].mxu0
      %495 = vdwg.mxu0
      %v496 = vsel %vm256, %v493, -inf
      %497 = vmax.xlane.f32.xlu0 %v496
      %v498 = vpop.xlane.xlu0 %497
      %v499 = vsub.f32 %v493, %v498
      %v500 = vmul.f32 %v499, 1.442695
      %v501 = vpow.pop %v500
      %v502 = vsel %vm256, %v501, 0.0
      %503 = vadd.xlane.f32.xlu0 %v502
      %v504 = vpop.xlane.xlu0 %503
      %v505 = vrcp.pop %v504
      %v506 = vmul.f32 %v501, %v505
      %508 = vrot.lane.b32.xlu0 %v344, 120
      %v509 = vpop.permute.xlu0 %508
      %v512 = vsel %vm256, %v506, 0
      %514 = vmatprep.subr.mxu0 0.0
      %515 = vmatpush1.msra.mxu0 %v509
      %516 = vmatprep.subr.mxu0 0.0
      %517 = vmatpush1.msra.mxu0 0.0
      %518 = vmatprep.subr.mxu0 0.0
      %519 = vmatpush1.msra.mxu0 0.0
      %520 = vmatprep.subr.mxu0 0.0
      %521 = vmatpush1.msra.mxu0 0.0
      %522 = vmatprep.subr.mxu0 0.0
      %523 = vmatpush1.msra.mxu0 0.0
      %524 = vmatprep.subr.mxu0 0.0
      %525 = vmatpush1.msra.mxu0 0.0
      %526 = vmatprep.subr.mxu0 0.0
      %527 = vmatpush1.msra.mxu0 0.0
      %528 = vmatprep.subr.mxu0 0.0
      %529 = vmatpush1.msra.mxu0 0.0
      %530 = vmatprep.subr.mxu0 0.0
      %531 = vmatpush1.msra.mxu0 0.0
      %532 = vmatprep.subr.mxu0 0.0
      %533 = vmatpush1.msra.mxu0 0.0
      %534 = vmatprep.subr.mxu0 0.0
      %535 = vmatpush1.msra.mxu0 0.0
      %536 = vmatprep.subr.mxu0 0.0
      %537 = vmatpush1.msra.mxu0 0.0
      %538 = vmatprep.subr.mxu0 0.0
      %539 = vmatpush1.msra.mxu0 0.0
      %540 = vmatprep.subr.mxu0 0.0
      %541 = vmatpush1.msra.mxu0 0.0
      %542 = vmatprep.subr.mxu0 0.0
      %543 = vmatpush1.msra.mxu0 0.0
      %544 = vmatprep.subr.mxu0 0.0
      %545 = vmatpush1.msra.mxu0 0.0
      %546 = vmatprep.subr.mxu0 0.0
      %547 = vmatpush1.msra.mxu0 0.0
      %548 = vmatprep.subr.mxu0 0.0
      %549 = vmatpush1.msra.mxu0 0.0
      %550 = vmatprep.subr.mxu0 0.0
      %551 = vmatpush1.msra.mxu0 0.0
      %552 = vmatprep.subr.mxu0 0.0
      %553 = vmatpush1.msra.mxu0 0.0
      %554 = vmatprep.subr.mxu0 0.0
      %555 = vmatpush1.msra.mxu0 0.0
      %556 = vmatprep.subr.mxu0 0.0
      %557 = vmatpush1.msra.mxu0 0.0
      %558 = vmatprep.subr.mxu0 0.0
      %559 = vmatpush1.msra.mxu0 0.0
      %560 = vmatprep.subr.mxu0 0.0
      %561 = vmatpush1.msra.mxu0 0.0
      %562 = vmatprep.subr.mxu0 0.0
      %563 = vmatpush1.msra.mxu0 0.0
      %564 = vmatprep.subr.mxu0 0.0
      %565 = vmatpush1.msra.mxu0 0.0
      %566 = vmatprep.subr.mxu0 0.0
      %567 = vmatpush1.msra.mxu0 0.0
      %568 = vmatprep.subr.mxu0 0.0
      %569 = vmatpush1.msra.mxu0 0.0
      %570 = vmatprep.subr.mxu0 0.0
      %571 = vmatpush1.msra.mxu0 0.0
      %572 = vmatprep.subr.mxu0 0.0
      %573 = vmatpush1.msra.mxu0 0.0
      %574 = vmatprep.subr.mxu0 0.0
      %575 = vmatpush1.msra.mxu0 0.0
      %576 = vmatprep.subr.mxu0 0.0
      %577 = vmatpush1.msra.mxu0 0.0
      %578 = vmatprep.mubr.f32.mxu0 0.0
      %579 = vmatmul.mubr.f32.gmra.mrb[0].mxu0 %v512
      %v580 = vpop.f32.mrb[0].mxu0
      %v581 = vadd.f32 0.0, %v580
      %v582 = vpop.f32.mrb[0].mxu0
      %583 = vdwg.mxu0
      %584 = vrot.lane.b32.xlu0 %v254, 112
      %v585 = vpop.permute.xlu0 %584
      %586 = vrot.lane.b32.xlu0 %v255, 112
      %v587 = vpop.permute.xlu0 %586
      %v588 = vsel %vm256, %v585, 0
      %v590 = vsel %vm256, %v587, 0
      %592 = vmatprep.subr.mxu0 0.0
      %593 = vmatpush1.xpose.msra.mxu0 %v590
      %594 = vmatprep.subr.mxu0 0.0
      %595 = vmatpush1.xpose.msra.mxu0 0.0
      %596 = vmatprep.subr.mxu0 0.0
      %597 = vmatpush1.xpose.msra.mxu0 0.0
      %598 = vmatprep.subr.mxu0 0.0
      %599 = vmatpush1.xpose.msra.mxu0 0.0
      %600 = vmatprep.subr.mxu0 0.0
      %601 = vmatpush1.xpose.msra.mxu0 0.0
      %602 = vmatprep.subr.mxu0 0.0
      %603 = vmatpush1.xpose.msra.mxu0 0.0
      %604 = vmatprep.subr.mxu0 0.0
      %605 = vmatpush1.xpose.msra.mxu0 0.0
      %606 = vmatprep.subr.mxu0 0.0
      %607 = vmatpush1.xpose.msra.mxu0 0.0
      %608 = vmatprep.subr.mxu0 0.0
      %609 = vmatpush1.xpose.msra.mxu0 0.0
      %610 = vmatprep.subr.mxu0 0.0
      %611 = vmatpush1.xpose.msra.mxu0 0.0
      %612 = vmatprep.subr.mxu0 0.0
      %613 = vmatpush1.xpose.msra.mxu0 0.0
      %614 = vmatprep.subr.mxu0 0.0
      %615 = vmatpush1.xpose.msra.mxu0 0.0
      %616 = vmatprep.subr.mxu0 0.0
      %617 = vmatpush1.xpose.msra.mxu0 0.0
      %618 = vmatprep.subr.mxu0 0.0
      %619 = vmatpush1.xpose.msra.mxu0 0.0
      %620 = vmatprep.subr.mxu0 0.0
      %621 = vmatpush1.xpose.msra.mxu0 0.0
      %622 = vmatprep.subr.mxu0 0.0
      %623 = vmatpush1.xpose.msra.mxu0 0.0
      %624 = vmatprep.subr.mxu0 0.0
      %625 = vmatpush1.xpose.msra.mxu0 0.0
      %626 = vmatprep.subr.mxu0 0.0
      %627 = vmatpush1.xpose.msra.mxu0 0.0
      %628 = vmatprep.subr.mxu0 0.0
      %629 = vmatpush1.xpose.msra.mxu0 0.0
      %630 = vmatprep.subr.mxu0 0.0
      %631 = vmatpush1.xpose.msra.mxu0 0.0
      %632 = vmatprep.subr.mxu0 0.0
      %633 = vmatpush1.xpose.msra.mxu0 0.0
      %634 = vmatprep.subr.mxu0 0.0
      %635 = vmatpush1.xpose.msra.mxu0 0.0
      %636 = vmatprep.subr.mxu0 0.0
      %637 = vmatpush1.xpose.msra.mxu0 0.0
      %638 = vmatprep.subr.mxu0 0.0
      %639 = vmatpush1.xpose.msra.mxu0 0.0
      %640 = vmatprep.subr.mxu0 0.0
      %641 = vmatpush1.xpose.msra.mxu0 0.0
      %642 = vmatprep.subr.mxu0 0.0
      %643 = vmatpush1.xpose.msra.mxu0 0.0
      %644 = vmatprep.subr.mxu0 0.0
      %645 = vmatpush1.xpose.msra.mxu0 0.0
      %646 = vmatprep.subr.mxu0 0.0
      %647 = vmatpush1.xpose.msra.mxu0 0.0
      %648 = vmatprep.subr.mxu0 0.0
      %649 = vmatpush1.xpose.msra.mxu0 0.0
      %650 = vmatprep.subr.mxu0 0.0
      %651 = vmatpush1.xpose.msra.mxu0 0.0
      %652 = vmatprep.subr.mxu0 0.0
      %653 = vmatpush1.xpose.msra.mxu0 0.0
      %654 = vmatprep.subr.mxu0 0.0
      %655 = vmatpush1.xpose.msra.mxu0 0.0
      %656 = vmatprep.mubr.f32.mxu0 0.0
      %657 = vmatmul.mubr.f32.gmra.mrb[0].mxu0 %v588
      %v658 = vpop.f32.mrb[0].mxu0
      %v659 = vadd.f32 0.0, %v658
      %v660 = vpop.f32.mrb[0].mxu0
      %661 = vdwg.mxu0
      %v662 = vsel %vm256, %v659, -inf
      %663 = vmax.xlane.f32.xlu0 %v662
      %v664 = vpop.xlane.xlu0 %663
      %v665 = vsub.f32 %v659, %v664
      %v666 = vmul.f32 %v665, 1.442695
      %v667 = vpow.pop %v666
      %v668 = vsel %vm256, %v667, 0.0
      %669 = vadd.xlane.f32.xlu0 %v668
      %v670 = vpop.xlane.xlu0 %669
      %v671 = vrcp.pop %v670
      %v672 = vmul.f32 %v667, %v671
      %673 = vrot.lane.b32.xlu0 %v344, 112
      %v674 = vpop.permute.xlu0 %673
      %v677 = vsel %vm256, %v672, 0
      %679 = vmatprep.subr.mxu0 0.0
      %680 = vmatpush1.msra.mxu0 %v674
      %681 = vmatprep.subr.mxu0 0.0
      %682 = vmatpush1.msra.mxu0 0.0
      %683 = vmatprep.subr.mxu0 0.0
      %684 = vmatpush1.msra.mxu0 0.0
      %685 = vmatprep.subr.mxu0 0.0
      %686 = vmatpush1.msra.mxu0 0.0
      %687 = vmatprep.subr.mxu0 0.0
      %688 = vmatpush1.msra.mxu0 0.0
      %689 = vmatprep.subr.mxu0 0.0
      %690 = vmatpush1.msra.mxu0 0.0
      %691 = vmatprep.subr.mxu0 0.0
      %692 = vmatpush1.msra.mxu0 0.0
      %693 = vmatprep.subr.mxu0 0.0
      %694 = vmatpush1.msra.mxu0 0.0
      %695 = vmatprep.subr.mxu0 0.0
      %696 = vmatpush1.msra.mxu0 0.0
      %697 = vmatprep.subr.mxu0 0.0
      %698 = vmatpush1.msra.mxu0 0.0
      %699 = vmatprep.subr.mxu0 0.0
      %700 = vmatpush1.msra.mxu0 0.0
      %701 = vmatprep.subr.mxu0 0.0
      %702 = vmatpush1.msra.mxu0 0.0
      %703 = vmatprep.subr.mxu0 0.0
      %704 = vmatpush1.msra.mxu0 0.0
      %705 = vmatprep.subr.mxu0 0.0
      %706 = vmatpush1.msra.mxu0 0.0
      %707 = vmatprep.subr.mxu0 0.0
      %708 = vmatpush1.msra.mxu0 0.0
      %709 = vmatprep.subr.mxu0 0.0
      %710 = vmatpush1.msra.mxu0 0.0
      %711 = vmatprep.subr.mxu0 0.0
      %712 = vmatpush1.msra.mxu0 0.0
      %713 = vmatprep.subr.mxu0 0.0
      %714 = vmatpush1.msra.mxu0 0.0
      %715 = vmatprep.subr.mxu0 0.0
      %716 = vmatpush1.msra.mxu0 0.0
      %717 = vmatprep.subr.mxu0 0.0
      %718 = vmatpush1.msra.mxu0 0.0
      %719 = vmatprep.subr.mxu0 0.0
      %720 = vmatpush1.msra.mxu0 0.0
      %721 = vmatprep.subr.mxu0 0.0
      %722 = vmatpush1.msra.mxu0 0.0
      %723 = vmatprep.subr.mxu0 0.0
      %724 = vmatpush1.msra.mxu0 0.0
      %725 = vmatprep.subr.mxu0 0.0
      %726 = vmatpush1.msra.mxu0 0.0
      %727 = vmatprep.subr.mxu0 0.0
      %728 = vmatpush1.msra.mxu0 0.0
      %729 = vmatprep.subr.mxu0 0.0
      %730 = vmatpush1.msra.mxu0 0.0
      %731 = vmatprep.subr.mxu0 0.0
      %732 = vmatpush1.msra.mxu0 0.0
      %733 = vmatprep.subr.mxu0 0.0
      %734 = vmatpush1.msra.mxu0 0.0
      %735 = vmatprep.subr.mxu0 0.0
      %736 = vmatpush1.msra.mxu0 0.0
      %737 = vmatprep.subr.mxu0 0.0
      %738 = vmatpush1.msra.mxu0 0.0
      %739 = vmatprep.subr.mxu0 0.0
      %740 = vmatpush1.msra.mxu0 0.0
      %741 = vmatprep.subr.mxu0 0.0
      %742 = vmatpush1.msra.mxu0 0.0
      %743 = vmatprep.mubr.f32.mxu0 0.0
      %744 = vmatmul.mubr.f32.gmra.mrb[0].mxu0 %v677
      %v745 = vpop.f32.mrb[0].mxu0
      %v746 = vadd.f32 0.0, %v745
      %v747 = vpop.f32.mrb[0].mxu0
      %748 = vdwg.mxu0
      %749 = vrot.lane.b32.xlu0 %v254, 104
      %v750 = vpop.permute.xlu0 %749
      %751 = vrot.lane.b32.xlu0 %v255, 104
      %v752 = vpop.permute.xlu0 %751
      %v753 = vsel %vm256, %v750, 0
      %v755 = vsel %vm256, %v752, 0
      %757 = vmatprep.subr.mxu0 0.0
      %758 = vmatpush1.xpose.msra.mxu0 %v755
      %759 = vmatprep.subr.mxu0 0.0
      %760 = vmatpush1.xpose.msra.mxu0 0.0
      %761 = vmatprep.subr.mxu0 0.0
      %762 = vmatpush1.xpose.msra.mxu0 0.0
      %763 = vmatprep.subr.mxu0 0.0
      %764 = vmatpush1.xpose.msra.mxu0 0.0
      %765 = vmatprep.subr.mxu0 0.0
      %766 = vmatpush1.xpose.msra.mxu0 0.0
      %767 = vmatprep.subr.mxu0 0.0
      %768 = vmatpush1.xpose.msra.mxu0 0.0
      %769 = vmatprep.subr.mxu0 0.0
      %770 = vmatpush1.xpose.msra.mxu0 0.0
      %771 = vmatprep.subr.mxu0 0.0
      %772 = vmatpush1.xpose.msra.mxu0 0.0
      %773 = vmatprep.subr.mxu0 0.0
      %774 = vmatpush1.xpose.msra.mxu0 0.0
      %775 = vmatprep.subr.mxu0 0.0
      %776 = vmatpush1.xpose.msra.mxu0 0.0
      %777 = vmatprep.subr.mxu0 0.0
      %778 = vmatpush1.xpose.msra.mxu0 0.0
      %779 = vmatprep.subr.mxu0 0.0
      %780 = vmatpush1.xpose.msra.mxu0 0.0
      %781 = vmatprep.subr.mxu0 0.0
      %782 = vmatpush1.xpose.msra.mxu0 0.0
      %783 = vmatprep.subr.mxu0 0.0
      %784 = vmatpush1.xpose.msra.mxu0 0.0
      %785 = vmatprep.subr.mxu0 0.0
      %786 = vmatpush1.xpose.msra.mxu0 0.0
      %787 = vmatprep.subr.mxu0 0.0
      %788 = vmatpush1.xpose.msra.mxu0 0.0
      %789 = vmatprep.subr.mxu0 0.0
      %790 = vmatpush1.xpose.msra.mxu0 0.0
      %791 = vmatprep.subr.mxu0 0.0
      %792 = vmatpush1.xpose.msra.mxu0 0.0
      %793 = vmatprep.subr.mxu0 0.0
      %794 = vmatpush1.xpose.msra.mxu0 0.0
      %795 = vmatprep.subr.mxu0 0.0
      %796 = vmatpush1.xpose.msra.mxu0 0.0
      %797 = vmatprep.subr.mxu0 0.0
      %798 = vmatpush1.xpose.msra.mxu0 0.0
      %799 = vmatprep.subr.mxu0 0.0
      %800 = vmatpush1.xpose.msra.mxu0 0.0
      %801 = vmatprep.subr.mxu0 0.0
      %802 = vmatpush1.xpose.msra.mxu0 0.0
      %803 = vmatprep.subr.mxu0 0.0
      %804 = vmatpush1.xpose.msra.mxu0 0.0
      %805 = vmatprep.subr.mxu0 0.0
      %806 = vmatpush1.xpose.msra.mxu0 0.0
      %807 = vmatprep.subr.mxu0 0.0
      %808 = vmatpush1.xpose.msra.mxu0 0.0
      %809 = vmatprep.subr.mxu0 0.0
      %810 = vmatpush1.xpose.msra.mxu0 0.0
      %811 = vmatprep.subr.mxu0 0.0
      %812 = vmatpush1.xpose.msra.mxu0 0.0
      %813 = vmatprep.subr.mxu0 0.0
      %814 = vmatpush1.xpose.msra.mxu0 0.0
      %815 = vmatprep.subr.mxu0 0.0
      %816 = vmatpush1.xpose.msra.mxu0 0.0
      %817 = vmatprep.subr.mxu0 0.0
      %818 = vmatpush1.xpose.msra.mxu0 0.0
      %819 = vmatprep.subr.mxu0 0.0
      %820 = vmatpush1.xpose.msra.mxu0 0.0
      %821 = vmatprep.mubr.f32.mxu0 0.0
      %822 = vmatmul.mubr.f32.gmra.mrb[0].mxu0 %v753
      %v823 = vpop.f32.mrb[0].mxu0
      %v824 = vadd.f32 0.0, %v823
      %v825 = vpop.f32.mrb[0].mxu0
      %826 = vdwg.mxu0
      %v827 = vsel %vm256, %v824, -inf
      %828 = vmax.xlane.f32.xlu0 %v827
      %v829 = vpop.xlane.xlu0 %828
      %v830 = vsub.f32 %v824, %v829
      %v831 = vmul.f32 %v830, 1.442695
      %v832 = vpow.pop %v831
      %v833 = vsel %vm256, %v832, 0.0
      %834 = vadd.xlane.f32.xlu0 %v833
      %v835 = vpop.xlane.xlu0 %834
      %v836 = vrcp.pop %v835
      %v837 = vmul.f32 %v832, %v836
      %838 = vrot.lane.b32.xlu0 %v344, 104
      %v839 = vpop.permute.xlu0 %838
      %v842 = vsel %vm256, %v837, 0
      %844 = vmatprep.subr.mxu0 0.0
      %845 = vmatpush1.msra.mxu0 %v839
      %846 = vmatprep.subr.mxu0 0.0
      %847 = vmatpush1.msra.mxu0 0.0
      %848 = vmatprep.subr.mxu0 0.0
      %849 = vmatpush1.msra.mxu0 0.0
      %850 = vmatprep.subr.mxu0 0.0
      %851 = vmatpush1.msra.mxu0 0.0
      %852 = vmatprep.subr.mxu0 0.0
      %853 = vmatpush1.msra.mxu0 0.0
      %854 = vmatprep.subr.mxu0 0.0
      %855 = vmatpush1.msra.mxu0 0.0
      %856 = vmatprep.subr.mxu0 0.0
      %857 = vmatpush1.msra.mxu0 0.0
      %858 = vmatprep.subr.mxu0 0.0
      %859 = vmatpush1.msra.mxu0 0.0
      %860 = vmatprep.subr.mxu0 0.0
      %861 = vmatpush1.msra.mxu0 0.0
      %862 = vmatprep.subr.mxu0 0.0
      %863 = vmatpush1.msra.mxu0 0.0
      %864 = vmatprep.subr.mxu0 0.0
      %865 = vmatpush1.msra.mxu0 0.0
      %866 = vmatprep.subr.mxu0 0.0
      %867 = vmatpush1.msra.mxu0 0.0
      %868 = vmatprep.subr.mxu0 0.0
      %869 = vmatpush1.msra.mxu0 0.0
      %870 = vmatprep.subr.mxu0 0.0
      %871 = vmatpush1.msra.mxu0 0.0
      %872 = vmatprep.subr.mxu0 0.0
      %873 = vmatpush1.msra.mxu0 0.0
      %874 = vmatprep.subr.mxu0 0.0
      %875 = vmatpush1.msra.mxu0 0.0
      %876 = vmatprep.subr.mxu0 0.0
      %877 = vmatpush1.msra.mxu0 0.0
      %878 = vmatprep.subr.mxu0 0.0
      %879 = vmatpush1.msra.mxu0 0.0
      %880 = vmatprep.subr.mxu0 0.0
      %881 = vmatpush1.msra.mxu0 0.0
      %882 = vmatprep.subr.mxu0 0.0
      %883 = vmatpush1.msra.mxu0 0.0
      %884 = vmatprep.subr.mxu0 0.0
      %885 = vmatpush1.msra.mxu0 0.0
      %886 = vmatprep.subr.mxu0 0.0
      %887 = vmatpush1.msra.mxu0 0.0
      %888 = vmatprep.subr.mxu0 0.0
      %889 = vmatpush1.msra.mxu0 0.0
      %890 = vmatprep.subr.mxu0 0.0
      %891 = vmatpush1.msra.mxu0 0.0
      %892 = vmatprep.subr.mxu0 0.0
      %893 = vmatpush1.msra.mxu0 0.0
      %894 = vmatprep.subr.mxu0 0.0
      %895 = vmatpush1.msra.mxu0 0.0
      %896 = vmatprep.subr.mxu0 0.0
      %897 = vmatpush1.msra.mxu0 0.0
      %898 = vmatprep.subr.mxu0 0.0
      %899 = vmatpush1.msra.mxu0 0.0
      %900 = vmatprep.subr.mxu0 0.0
      %901 = vmatpush1.msra.mxu0 0.0
      %902 = vmatprep.subr.mxu0 0.0
      %903 = vmatpush1.msra.mxu0 0.0
      %904 = vmatprep.subr.mxu0 0.0
      %905 = vmatpush1.msra.mxu0 0.0
      %906 = vmatprep.subr.mxu0 0.0
      %907 = vmatpush1.msra.mxu0 0.0
      %908 = vmatprep.mubr.f32.mxu0 0.0
      %909 = vmatmul.mubr.f32.gmra.mrb[0].mxu0 %v842
      %v910 = vpop.f32.mrb[0].mxu0
      %v911 = vadd.f32 0.0, %v910
      %v912 = vpop.f32.mrb[0].mxu0
      %913 = vdwg.mxu0
      %915 = vrot.lane.b32.xlu0 %v581, 8
      %v916 = vpop.permute.xlu0 %915
      %919 = vrot.lane.b32.xlu0 %v746, 16
      %v920 = vpop.permute.xlu0 %919
      %923 = vrot.lane.b32.xlu0 %v911, 24
      %v924 = vpop.permute.xlu0 %923
      %v926 = vsel %vm256, %v415, %v916
      %vm927 = vcmask 130048
      %v928 = vsel %vm927, %v926, %v920
      %vm929 = vcmask 195584
      %v930 = vsel %vm929, %v928, %v924
      %vm931 = vcmask 261120
      %932 = vst.msk [vmem:[%s252] sm:$0xff] %vm931, %v930
      %p933 = scmp.lt.s32.totalorder %s18, 1
      %s934 = scalar_select %p933, %s18, 1
      %p935 = scmp.lt.s32.totalorder %s19, 0
      %s936 = scalar_select %p935, %s19, 0
      %s937 = sadd.s32 %s936, %s934
      %s938 = smul.addr %s937, 8
      %s939 = scalar_lea.vmem %s3, %s938
      // Predicated region
      $region33: #{block_forward.4} parent=31 // pred_check
        %p940 = pneg %p130
      $region34: #{block_forward.4} parent=31 // pred_check_branch
        %942 = sbr.rel (%p940) target = $region36
      $region35: #{block_forward.4} parent=31 // pred_region
        _
      $region36: #{block_forward.4} parent=31 // pred_fallthru
        _
    $region32: #{block_forward.4} parent=5 // pred_fallthru
      _
    %p943 = scmp.le.s32.totalorder 2, %s9
    // Predicated region
    $region37: #{block_forward.4} parent=5 // pred_check
      %p944 = pneg %p943
    $region38: #{block_forward.4} parent=5 // pred_check_branch
      %946 = sbr.rel (%p944) target = $region40
    $region39: #{block_forward.4} parent=5 // pred_region
      %s947 = ssub.s32 %s9, 2
      // Predicated region
      $region41: #{block_forward.4} parent=39 // pred_check
        %p948 = pneg %p136
      $region42: #{block_forward.4} parent=39 // pred_check_branch
        %950 = sbr.rel (%p948) target = $region44
      $region43: #{block_forward.4} parent=39 // pred_region
        %p951 = scmp.lt.s32.totalorder %s20, 1
        %s952 = scalar_select %p951, %s20, 1
        %p953 = scmp.lt.s32.totalorder %s21, 0
        %s954 = scalar_select %p953, %s21, 0
        %s955 = sadd.s32 %s954, %s952
        %s956 = smul.addr %s955, 8
        %s957 = scalar_lea.vmem %s3, %s956
      $region44: #{block_forward.4} parent=39 // pred_fallthru
        _
    $region40: #{block_forward.4} parent=5 // pred_fallthru
      _
  $region6: #{block_forward.4} parent=0 // loop_footer
    %s13 = sadd.s32 1, %s9
  $region7: #{block_forward.4} parent=0 // loop_footer_branch
    %8 = sbr.rel target = $region3
  $region8: #{block_forward.4} parent=0 // loop_exit
    _

// kernel: block_forward.5
$region0: #{block_forward.5}
  #allocation0 [shape = 'u32[]', space=smem, size = 0x4, offset = 0x4, fixed_abs, tag = 'smem constant byte address 0x4 - core index']
  #allocation1 [shape = 'u32[144,128]{1,0:T(1,128)}', space=vmem, size = 0x12000, scoped, tag = 'internal scratch']
  #allocation2 [shape = 'f32[8,32]{1,0:T(8,128)}', space=vmem, size = 0x1000, scoped, tag = 'scratch operand']
  #allocation3 [shape = 'f32[8,32]{1,0:T(8,128)}', space=vmem, size = 0x1000, scoped, tag = 'scratch operand']
  #allocation4 [shape = 'f32[8,32]{1,0:T(8,128)}', space=vmem, size = 0x1000, scoped, tag = 'scratch operand']
  %s0 = inlined_call_operand.vmem [shape: f32[16,32], index: 0, kind: input, shape index: {}]
  %s1 = inlined_call_operand.vmem [shape: f32[16,32], index: 1, kind: input, shape index: {}]
  %s2 = inlined_call_operand.vmem [shape: f32[32,32], index: 2, kind: input, shape index: {}]
  %s3 = inlined_call_operand.vmem [shape: f32[1,32], index: 3, kind: input, shape index: {}]
  %s4 = inlined_call_operand.vmem [shape: f32[1,32], index: 4, kind: input, shape index: {}]
  %s5 = inlined_call_operand.vmem [shape: f32[1,32], index: 5, kind: input, shape index: {}]
  %s6 = inlined_call_operand.vmem [shape: f32[32,128], index: 6, kind: input, shape index: {}]
  %s7 = inlined_call_operand.vmem [shape: f32[1,128], index: 7, kind: input, shape index: {}]
  %s8 = inlined_call_operand.vmem [shape: f32[128,32], index: 8, kind: input, shape index: {}]
  %s9 = inlined_call_operand.vmem [shape: f32[1,32], index: 9, kind: input, shape index: {}]
  %s10 = inlined_call_operand.hbm [shape: f32[16,32], index: 10, kind: output, shape index: {}]
  %s11 = sld [smem:[#allocation0]]
  $region81: #{block_forward.5} parent=0
    _
  %s13 = ssub.s32 1, %s11
  %s14 = scalar_select 0, %s13, %s11
  $region1: #{block_forward.5} parent=0
    #allocation5 [shape = 'u8[8192]{0}', space=vmem, size = 0x2000, scoped, tag = 'output window, operand 0']
    #allocation6 [shape = 's32[2]{0}', space=sflag, size = 0x8, scoped, tag = 'scoped memory for block_forward.5']
    %15 = vsyncpa [#allocation6], 0
    %s16 = scalar_lea.sflag [#allocation6], 1
    %17 = vsyncpa %s16, 0
    loop: start=0, step=1, limit=4
    $region2: #{block_forward.5} parent=1 // loop_pre_header
      _
    $region3: #{block_forward.5} parent=1 // loop_header
      %s19 = sphi 0, %s23
      %p20 = scmp.ge.s32.totalorder %s19, 4
      %s26 = sphi 0, %s38
      %s27 = sphi 0, %s34
      %s28 = sphi 0, %s26
      %s29 = sphi 0, %s27
      %s30 = sphi 0, %s28
      %s31 = sphi 0, %s29
      %s41 = sphi 0, %s43
      %s44 = sphi 0, %s41
      %s45 = sphi 0, %s44
      %s61 = sphi 0, %s45
      %s67 = sphi 0, %s69
      %s70 = sphi 0, %s67
      %s71 = sphi 0, %s70
      %s87 = sphi 0, %s71
      %s91 = sphi 0, %s91
      %s93 = sphi 0, %s91
      %s94 = sphi 0, %s93
      %s108 = sphi 0, %s94
      %s112 = sphi 0, %s112
      %s114 = sphi 0, %s112
      %s115 = sphi 0, %s114
      %s129 = sphi 0, %s115
      %s133 = sphi 0, %s133
      %s135 = sphi 0, %s133
      %s136 = sphi 0, %s135
      %s150 = sphi 0, %s136
      %s154 = sphi 0, %s154
      %s156 = sphi 0, %s154
      %s157 = sphi 0, %s156
      %s171 = sphi 0, %s157
      %s177 = sphi 0, %s179
      %s180 = sphi 0, %s177
      %s181 = sphi 0, %s180
      %s197 = sphi 0, %s181
      %s203 = sphi 0, %s205
      %s206 = sphi 0, %s203
      %s207 = sphi 0, %s206
      %s223 = sphi 0, %s207
      %s229 = sphi 0, %s231
      %s232 = sphi 0, %s229
      %s233 = sphi 0, %s232
      %s249 = sphi 0, %s233
      %s253 = sphi 0, %s253
      %s255 = sphi 0, %s253
      %s256 = sphi 0, %s255
      %s270 = sphi 0, %s256
      %s276 = sphi 0, %s278
      %s279 = sphi 0, %s276
      %s280 = sphi 0, %s279
      %s296 = sphi 0, %s280
    $region4: #{block_forward.5} parent=1 // loop_header_branch
      %22 = sbr.rel (%p20) target = $region8
    $region5: #{block_forward.5} parent=1 // loop_body
      %s24 = ssub.s32 %s19, 1
      %s25 = ssub.s32 %s19, 2
      %s32 = sadd.s32 1, %s27
      %p33 = scmp.ge.s32.totalorder %s32, 1
      %s34 = scalar_select %p33, 0, %s32
      %s35 = sadd.s32 1, %s26
      %s36 = scalar_select %p33, %s35, %s26
      %p37 = scmp.ge.s32.totalorder %s36, 2
      %s38 = scalar_select %p37, 0, %s36
      %s39 = ssub.s32 %s26, %s38
      %p40 = scmp.eq.s32.totalorder %s39, 0
      %s42 = sadd.s32 %s41, 1
      %s43 = scalar_select %p40, %s41, %s42
      %p46 = pneg %p40
      %p47 = scmp.eq.s32.totalorder %s19, 1
      %p48 = por %p46, %p47
      %p49 = scmp.ne.s32.totalorder %s41, %s44
      %p50 = scmp.eq.s32.totalorder %s19, 0
      %p51 = por %p49, %p50
      %p52 = scmp.ne.s32.totalorder %s41, %s44
      %p53 = scmp.eq.s32.totalorder %s24, 1
      %p54 = por %p52, %p53
      %p55 = scmp.ne.s32.totalorder %s44, %s45
      %p56 = scmp.eq.s32.totalorder %s24, 0
      %p57 = por %p55, %p56
      %p58 = scmp.ne.s32.totalorder %s44, %s45
      %p59 = scmp.eq.s32.totalorder %s25, 1
      %p60 = por %p58, %p59
      %p62 = scmp.ne.s32.totalorder %s45, %s61
      %p63 = scmp.eq.s32.totalorder %s25, 0
      %p64 = por %p62, %p63
      %s65 = ssub.s32 %s26, %s38
      %p66 = scmp.eq.s32.totalorder %s65, 0
      %s68 = sadd.s32 %s67, 1
      %s69 = scalar_select %p66, %s67, %s68
      %p72 = pneg %p66
      %p73 = scmp.eq.s32.totalorder %s19, 1
      %p74 = por %p72, %p73
      %p75 = scmp.ne.s32.totalorder %s67, %s70
      %p76 = scmp.eq.s32.totalorder %s19, 0
      %p77 = por %p75, %p76
      %p78 = scmp.ne.s32.totalorder %s67, %s70
      %p79 = scmp.eq.s32.totalorder %s24, 1
      %p80 = por %p78, %p79
      %p81 = scmp.ne.s32.totalorder %s70, %s71
      %p82 = scmp.eq.s32.totalorder %s24, 0
      %p83 = por %p81, %p82
      %p84 = scmp.ne.s32.totalorder %s70, %s71
      %p85 = scmp.eq.s32.totalorder %s25, 1
      %p86 = por %p84, %p85
      %p88 = scmp.ne.s32.totalorder %s71, %s87
      %p89 = scmp.eq.s32.totalorder %s25, 0
      %p90 = por %p88, %p89
      %s92 = sadd.s32 %s91, 1
      %p95 = scmp.eq.s32.totalorder %s19, 1
      %p96 = scmp.ne.s32.totalorder %s91, %s93
      %p97 = scmp.eq.s32.totalorder %s19, 0
      %p98 = por %p96, %p97
      %p99 = scmp.ne.s32.totalorder %s91, %s93
      %p100 = scmp.eq.s32.totalorder %s24, 1
      %p101 = por %p99, %p100
      %p102 = scmp.ne.s32.totalorder %s93, %s94
      %p103 = scmp.eq.s32.totalorder %s24, 0
      %p104 = por %p102, %p103
      %p105 = scmp.ne.s32.totalorder %s93, %s94
      %p106 = scmp.eq.s32.totalorder %s25, 1
      %p107 = por %p105, %p106
      %p109 = scmp.ne.s32.totalorder %s94, %s108
      %p110 = scmp.eq.s32.totalorder %s25, 0
      %p111 = por %p109, %p110
      %s113 = sadd.s32 %s112, 1
      %p116 = scmp.eq.s32.totalorder %s19, 1
      %p117 = scmp.ne.s32.totalorder %s112, %s114
      %p118 = scmp.eq.s32.totalorder %s19, 0
      %p119 = por %p117, %p118
      %p120 = scmp.ne.s32.totalorder %s112, %s114
      %p121 = scmp.eq.s32.totalorder %s24, 1
      %p122 = por %p120, %p121
      %p123 = scmp.ne.s32.totalorder %s114, %s115
      %p124 = scmp.eq.s32.totalorder %s24, 0
      %p125 = por %p123, %p124
      %p126 = scmp.ne.s32.totalorder %s114, %s115
      %p127 = scmp.eq.s32.totalorder %s25, 1
      %p128 = por %p126, %p127
      %p130 = scmp.ne.s32.totalorder %s115, %s129
      %p131 = scmp.eq.s32.totalorder %s25, 0
      %p132 = por %p130, %p131
      %s134 = sadd.s32 %s133, 1
      %p137 = scmp.eq.s32.totalorder %s19, 1
      %p138 = scmp.ne.s32.totalorder %s133, %s135
      %p139 = scmp.eq.s32.totalorder %s19, 0
      %p140 = por %p138, %p139
      %p141 = scmp.ne.s32.totalorder %s133, %s135
      %p142 = scmp.eq.s32.totalorder %s24, 1
      %p143 = por %p141, %p142
      %p144 = scmp.ne.s32.totalorder %s135, %s136
      %p145 = scmp.eq.s32.totalorder %s24, 0
      %p146 = por %p144, %p145
      %p147 = scmp.ne.s32.totalorder %s135, %s136
      %p148 = scmp.eq.s32.totalorder %s25, 1
      %p149 = por %p147, %p148
      %p151 = scmp.ne.s32.totalorder %s136, %s150
      %p152 = scmp.eq.s32.totalorder %s25, 0
      %p153 = por %p151, %p152
      %s155 = sadd.s32 %s154, 1
      %p158 = scmp.eq.s32.totalorder %s19, 1
      %p159 = scmp.ne.s32.totalorder %s154, %s156
      %p160 = scmp.eq.s32.totalorder %s19, 0
      %p161 = por %p159, %p160
      %p162 = scmp.ne.s32.totalorder %s154, %s156
      %p163 = scmp.eq.s32.totalorder %s24, 1
      %p164 = por %p162, %p163
      %p165 = scmp.ne.s32.totalorder %s156, %s157
      %p166 = scmp.eq.s32.totalorder %s24, 0
      %p167 = por %p165, %p166
      %p168 = scmp.ne.s32.totalorder %s156, %s157
      %p169 = scmp.eq.s32.totalorder %s25, 1
      %p170 = por %p168, %p169
      %p172 = scmp.ne.s32.totalorder %s157, %s171
      %p173 = scmp.eq.s32.totalorder %s25, 0
      %p174 = por %p172, %p173
      %s175 = ssub.s32 %s27, %s34
      %p176 = scmp.eq.s32.totalorder %s175, 0
      %s178 = sadd.s32 %s177, 1
      %s179 = scalar_select %p176, %s177, %s178
      %p182 = pneg %p176
      %p183 = scmp.eq.s32.totalorder %s19, 1
      %p184 = por %p182, %p183
      %p185 = scmp.ne.s32.totalorder %s177, %s180
      %p186 = scmp.eq.s32.totalorder %s19, 0
      %p187 = por %p185, %p186
      %p188 = scmp.ne.s32.totalorder %s177, %s180
      %p189 = scmp.eq.s32.totalorder %s24, 1
      %p190 = por %p188, %p189
      %p191 = scmp.ne.s32.totalorder %s180, %s181
      %p192 = scmp.eq.s32.totalorder %s24, 0
      %p193 = por %p191, %p192
      %p194 = scmp.ne.s32.totalorder %s180, %s181
      %p195 = scmp.eq.s32.totalorder %s25, 1
      %p196 = por %p194, %p195
      %p198 = scmp.ne.s32.totalorder %s181, %s197
      %p199 = scmp.eq.s32.totalorder %s25, 0
      %p200 = por %p198, %p199
      %s201 = ssub.s32 %s27, %s34
      %p202 = scmp.eq.s32.totalorder %s201, 0
      %s204 = sadd.s32 %s203, 1
      %s205 = scalar_select %p202, %s203, %s204
      %p208 = pneg %p202
      %p209 = scmp.eq.s32.totalorder %s19, 1
      %p210 = por %p208, %p209
      %p211 = scmp.ne.s32.totalorder %s203, %s206
      %p212 = scmp.eq.s32.totalorder %s19, 0
      %p213 = por %p211, %p212
      %p214 = scmp.ne.s32.totalorder %s203, %s206
      %p215 = scmp.eq.s32.totalorder %s24, 1
      %p216 = por %p214, %p215
      %p217 = scmp.ne.s32.totalorder %s206, %s207
      %p218 = scmp.eq.s32.totalorder %s24, 0
      %p219 = por %p217, %p218
      %p220 = scmp.ne.s32.totalorder %s206, %s207
      %p221 = scmp.eq.s32.totalorder %s25, 1
      %p222 = por %p220, %p221
      %p224 = scmp.ne.s32.totalorder %s207, %s223
      %p225 = scmp.eq.s32.totalorder %s25, 0
      %p226 = por %p224, %p225
      %s227 = ssub.s32 %s27, %s34
      %p228 = scmp.eq.s32.totalorder %s227, 0
      %s230 = sadd.s32 %s229, 1
      %s231 = scalar_select %p228, %s229, %s230
      %p234 = pneg %p228
      %p235 = scmp.eq.s32.totalorder %s19, 1
      %p236 = por %p234, %p235
      %p237 = scmp.ne.s32.totalorder %s229, %s232
      %p238 = scmp.eq.s32.totalorder %s19, 0
      %p239 = por %p237, %p238
      %p240 = scmp.ne.s32.totalorder %s229, %s232
      %p241 = scmp.eq.s32.totalorder %s24, 1
      %p242 = por %p240, %p241
      %p243 = scmp.ne.s32.totalorder %s232, %s233
      %p244 = scmp.eq.s32.totalorder %s24, 0
      %p245 = por %p243, %p244
      %p246 = scmp.ne.s32.totalorder %s232, %s233
      %p247 = scmp.eq.s32.totalorder %s25, 1
      %p248 = por %p246, %p247
      %p250 = scmp.ne.s32.totalorder %s233, %s249
      %p251 = scmp.eq.s32.totalorder %s25, 0
      %p252 = por %p250, %p251
      %s254 = sadd.s32 %s253, 1
      %p257 = scmp.eq.s32.totalorder %s19, 1
      %p258 = scmp.ne.s32.totalorder %s253, %s255
      %p259 = scmp.eq.s32.totalorder %s19, 0
      %p260 = por %p258, %p259
      %p261 = scmp.ne.s32.totalorder %s253, %s255
      %p262 = scmp.eq.s32.totalorder %s24, 1
      %p263 = por %p261, %p262
      %p264 = scmp.ne.s32.totalorder %s255, %s256
      %p265 = scmp.eq.s32.totalorder %s24, 0
      %p266 = por %p264, %p265
      %p267 = scmp.ne.s32.totalorder %s255, %s256
      %p268 = scmp.eq.s32.totalorder %s25, 1
      %p269 = por %p267, %p268
      %p271 = scmp.ne.s32.totalorder %s256, %s270
      %p272 = scmp.eq.s32.totalorder %s25, 0
      %p273 = por %p271, %p272
      %s274 = ssub.s32 %s26, %s38
      %p275 = scmp.eq.s32.totalorder %s274, 0
      %s277 = sadd.s32 %s276, 1
      %s278 = scalar_select %p275, %s276, %s277
      %p281 = pneg %p275
      %p282 = scmp.eq.s32.totalorder %s19, 1
      %p283 = por %p281, %p282
      %p284 = scmp.ne.s32.totalorder %s276, %s279
      %p285 = scmp.eq.s32.totalorder %s19, 0
      %p286 = por %p284, %p285
      %p287 = scmp.ne.s32.totalorder %s276, %s279
      %p288 = scmp.eq.s32.totalorder %s24, 1
      %p289 = por %p287, %p288
      %p290 = scmp.ne.s32.totalorder %s279, %s280
      %p291 = scmp.eq.s32.totalorder %s24, 0
      %p292 = por %p290, %p291
      %p293 = scmp.ne.s32.totalorder %s279, %s280
      %p294 = scmp.eq.s32.totalorder %s25, 1
      %p295 = por %p293, %p294
      %p297 = scmp.ne.s32.totalorder %s280, %s296
      %p298 = scmp.eq.s32.totalorder %s25, 0
      %p299 = por %p297, %p298
      %p300 = scmp.le.s32.totalorder 1, %s19
      %p301 = scmp.lt.s32.totalorder %s19, 3
      %p302 = pnand %p300, %p301
      %p303 = pneg %p302
      // Predicated region
      $region9: #{block_forward.5} parent=5 // pred_check
        _
      $region10: #{block_forward.5} parent=5 // pred_check_branch
        %305 = sbr.rel (%p302) target = $region12
      $region11: #{block_forward.5} parent=5 // pred_region
        %s306 = ssub.s32 %s19, 1
        // Predicated region
        $region13: #{block_forward.5} parent=11 // pred_check
          %p307 = pneg %p104
        $region14: #{block_forward.5} parent=11 // pred_check_branch
          %309 = sbr.rel (%p307) target = $region16
        $region15: #{block_forward.5} parent=11 // pred_region
          _
        $region16: #{block_forward.5} parent=11 // pred_fallthru
          _
        // Predicated region
        $region17: #{block_forward.5} parent=11 // pred_check
          %p310 = pneg %p125
        $region18: #{block_forward.5} parent=11 // pred_check_branch
          %312 = sbr.rel (%p310) target = $region20
        $region19: #{block_forward.5} parent=11 // pred_region
          _
        $region20: #{block_forward.5} parent=11 // pred_fallthru
          _
        // Predicated region
        $region21: #{block_forward.5} parent=11 // pred_check
          %p313 = pneg %p146
        $region22: #{block_forward.5} parent=11 // pred_check_branch
          %315 = sbr.rel (%p313) target = $region24
        $region23: #{block_forward.5} parent=11 // pred_region
          _
        $region24: #{block_forward.5} parent=11 // pred_fallthru
          _
        // Predicated region
        $region25: #{block_forward.5} parent=11 // pred_check
          %p316 = pneg %p167
        $region26: #{block_forward.5} parent=11 // pred_check_branch
          %318 = sbr.rel (%p316) target = $region28
        $region27: #{block_forward.5} parent=11 // pred_region
          _
        $region28: #{block_forward.5} parent=11 // pred_fallthru
          _
        // Predicated region
        $region29: #{block_forward.5} parent=11 // pred_check
          %p319 = pneg %p193
        $region30: #{block_forward.5} parent=11 // pred_check_branch
          %321 = sbr.rel (%p319) target = $region32
        $region31: #{block_forward.5} parent=11 // pred_region
          %p322 = scmp.lt.s32.totalorder %s29, 0
          %s323 = scalar_select %p322, %s29, 0
          %s324 = smul.addr %s323, 8
          %s325 = scalar_lea.vmem %s6, %s324
        $region32: #{block_forward.5} parent=11 // pred_fallthru
          _
        // Predicated region
        $region33: #{block_forward.5} parent=11 // pred_check
          %p326 = pneg %p219
        $region34: #{block_forward.5} parent=11 // pred_check_branch
          %328 = sbr.rel (%p326) target = $region36
        $region35: #{block_forward.5} parent=11 // pred_region
          %p329 = scmp.lt.s32.totalorder %s29, 0
          %s330 = scalar_select %p329, %s29, 0
          %s331 = scalar_lea.vmem %s7, %s330
        $region36: #{block_forward.5} parent=11 // pred_fallthru
          _
        // Predicated region
        $region37: #{block_forward.5} parent=11 // pred_check
          %p332 = pneg %p245
        $region38: #{block_forward.5} parent=11 // pred_check_branch
          %334 = sbr.rel (%p332) target = $region40
        $region39: #{block_forward.5} parent=11 // pred_region
          %s335 = smul.u32 16, %s29
          %p336 = scmp.lt.s32.totalorder %s335, 15
          %s337 = scalar_select %p336, %s335, 15
          %s338 = smul.addr %s337, 8
          %s339 = scalar_lea.vmem %s8, %s338
          %s340 = smul.u32 16, %s29
        $region40: #{block_forward.5} parent=11 // pred_fallthru
          _
        // Predicated region
        $region41: #{block_forward.5} parent=11 // pred_check
          %p341 = pneg %p266
        $region42: #{block_forward.5} parent=11 // pred_check_branch
          %343 = sbr.rel (%p341) target = $region44
        $region43: #{block_forward.5} parent=11 // pred_region
          _
        $region44: #{block_forward.5} parent=11 // pred_fallthru
          _
      $region12: #{block_forward.5} parent=5 // pred_fallthru
        _
      %p344 = scmp.lt.s32.totalorder %s19, 2
      // Predicated region
      $region45: #{block_forward.5} parent=5 // pred_check
        %p345 = pneg %p344
      $region46: #{block_forward.5} parent=5 // pred_check_branch
        %347 = sbr.rel (%p345) target = $region48
      $region47: #{block_forward.5} parent=5 // pred_region
        // Predicated region
        $region49: #{block_forward.5} parent=47 // pred_check
          %p348 = pneg %p51
        $region50: #{block_forward.5} parent=47 // pred_check_branch
          %350 = sbr.rel (%p348) target = $region52
        $region51: #{block_forward.5} parent=47 // pred_region
          %p351 = scmp.lt.s32.totalorder %s26, 1
          %s352 = scalar_select %p351, %s26, 1
          %s353 = smul.addr %s352, 8
          %s354 = scalar_lea.vmem %s0, %s353
        $region52: #{block_forward.5} parent=47 // pred_fallthru
          _
        // Predicated region
        $region53: #{block_forward.5} parent=47 // pred_check
          %p355 = pneg %p77
        $region54: #{block_forward.5} parent=47 // pred_check_branch
          %357 = sbr.rel (%p355) target = $region56
        $region55: #{block_forward.5} parent=47 // pred_region
          %p358 = scmp.lt.s32.totalorder %s26, 1
          %s359 = scalar_select %p358, %s26, 1
          %s360 = smul.addr %s359, 8
          %s361 = scalar_lea.vmem %s1, %s360
        $region56: #{block_forward.5} parent=47 // pred_fallthru
          _
      $region48: #{block_forward.5} parent=5 // pred_fallthru
        _
      %p362 = scmp.le.s32.totalorder 1, %s19
      %p363 = scmp.lt.s32.totalorder %s19, 3
      %p364 = pnand %p362, %p363
      %p365 = pneg %p364
      // Predicated region
      $region57: #{block_forward.5} parent=5 // pred_check
        _
      $region58: #{block_forward.5} parent=5 // pred_check_branch
        %367 = sbr.rel (%p364) target = $region60
      $region59: #{block_forward.5} parent=5 // pred_region
        %s368 = ssub.s32 %s19, 1
        %p369 = scmp.lt.s32.totalorder %s28, 1
        %s370 = scalar_select %p369, %s28, 1
        %s371 = smul.addr %s370, 8
        %s372 = scalar_lea.vmem %s0, %s371
        %p373 = pneg %p57
        %p374 = pneg %p54
        %p375 = scmp.lt.s32.totalorder %s28, 1
        %s376 = scalar_select %p375, %s28, 1
        %s377 = smul.addr %s376, 8
        %s378 = scalar_lea.vmem %s1, %s377
        %p379 = pneg %p83
        %p380 = pneg %p80
        %p381 = pneg %p104
        %p382 = pneg %p101
        %p383 = pneg %p125
        %p384 = pneg %p122
        %p385 = pneg %p146
        %p386 = pneg %p143
        %p387 = pneg %p167
        %p388 = pneg %p164
        %p389 = scmp.lt.s32.totalorder %s29, 0
        %s390 = scalar_select %p389, %s29, 0
        %s391 = smul.addr %s390, 8
        %s392 = scalar_lea.vmem %s6, %s391
        %p393 = pneg %p193
        %p394 = pneg %p190
        %p395 = scmp.lt.s32.totalorder %s29, 0
        %s396 = scalar_select %p395, %s29, 0
        %s397 = scalar_lea.vmem %s7, %s396
        %p398 = pneg %p219
        %p399 = pneg %p216
        %s400 = smul.u32 16, %s29
        %p401 = scmp.lt.s32.totalorder %s400, 15
        %s402 = scalar_select %p401, %s400, 15
        %s403 = smul.addr %s402, 8
        %s404 = scalar_lea.vmem %s8, %s403
        %p405 = pneg %p245
        %p406 = pneg %p242
        %p407 = pneg %p266
        %p408 = pneg %p263
        %p409 = pneg %p292
        %p410 = pneg %p289
        %s411 = sand.u32 %s279, 1
        %s412 = scalar_lea.sflag [#allocation6], %s411
        %s413 = sand.u32 %s279, 1
        %s414 = smul.addr %s413, 8
        %s415 = scalar_lea.vmem [#allocation5], %s414
        %p416 = scmp.lt.s32.totalorder %s28, 1
        %s417 = scalar_select %p416, %s28, 1
        %s418 = smul.addr %s417, 8
        %s419 = scalar_lea.vmem %s0, %s418
        %p420 = scmp.lt.s32.totalorder %s28, 1
        %s421 = scalar_select %p420, %s28, 1
        %s422 = smul.addr %s421, 8
        %s423 = scalar_lea.vmem %s1, %s422
        %p424 = scmp.lt.s32.totalorder %s29, 0
        %s425 = scalar_select %p424, %s29, 0
        %s426 = smul.addr %s425, 8
        %s427 = scalar_lea.vmem %s6, %s426
        %p428 = scmp.lt.s32.totalorder %s29, 0
        %s429 = scalar_select %p428, %s29, 0
        %s430 = scalar_lea.vmem %s7, %s429
        %s431 = smul.u32 16, %s29
        %p432 = scmp.lt.s32.totalorder %s431, 15
        %s433 = scalar_select %p432, %s431, 15
        %s434 = smul.addr %s433, 8
        %s435 = scalar_lea.vmem %s8, %s434
        %s436 = smul.u32 16, %s29
        %p437 = scmp.eq.s32.totalorder %s29, 0
        // Predicated region
        $region61: #{block_forward.5} parent=59 // pred_check
          %p438 = pneg %p437
        $region62: #{block_forward.5} parent=59 // pred_check_branch
          %440 = sbr.rel (%p438) target = $region64
        $region63: #{block_forward.5} parent=59 // pred_region
          %v441 = vld [vmem:[%s419] sm:$0xff]
          %v442 = vld [vmem:[%s2] sm:$0xff]
          %v443 = vld [vmem:[%s2 + $0x8] sm:$0xff]
          %v444 = vld [vmem:[%s2 + $0x10] sm:$0xff]
          %v445 = vld [vmem:[%s2 + $0x18] sm:$0xff]
          %v446 = vld [vmem:[%s3] sm:$0x1]
          %v448 = vlaneseq
          %v449 = vshrl.u32 %v448, 7
          %v450 = vsub.s32 0, %v449
          %v451 = vrot.slane %v446, %v450
          %vm453 = vcmask 261120
          %v455 = vsel %vm453, %v441, 0
          %457 = vmatprep.subr.mxu0 0.0
          %458 = vmatpush1.msra.mxu0 %v442
          %459 = vmatprep.subr.mxu0 0.0
          %460 = vmatpush1.msra.mxu0 %v443
          %461 = vmatprep.subr.mxu0 0.0
          %462 = vmatpush1.msra.mxu0 %v444
          %463 = vmatprep.subr.mxu0 0.0
          %464 = vmatpush1.msra.mxu0 %v445
          %465 = vmatprep.subr.mxu0 0.0
          %466 = vmatpush1.msra.mxu0 0.0
          %467 = vmatprep.subr.mxu0 0.0
          %468 = vmatpush1.msra.mxu0 0.0
          %469 = vmatprep.subr.mxu0 0.0
          %470 = vmatpush1.msra.mxu0 0.0
          %471 = vmatprep.subr.mxu0 0.0
          %472 = vmatpush1.msra.mxu0 0.0
          %473 = vmatprep.subr.mxu0 0.0
          %474 = vmatpush1.msra.mxu0 0.0
          %475 = vmatprep.subr.mxu0 0.0
          %476 = vmatpush1.msra.mxu0 0.0
          %477 = vmatprep.subr.mxu0 0.0
          %478 = vmatpush1.msra.mxu0 0.0
          %479 = vmatprep.subr.mxu0 0.0
          %480 = vmatpush1.msra.mxu0 0.0
          %481 = vmatprep.subr.mxu0 0.0
          %482 = vmatpush1.msra.mxu0 0.0
          %483 = vmatprep.subr.mxu0 0.0
          %484 = vmatpush1.msra.mxu0 0.0
          %485 = vmatprep.subr.mxu0 0.0
          %486 = vmatpush1.msra.mxu0 0.0
          %487 = vmatprep.subr.mxu0 0.0
          %488 = vmatpush1.msra.mxu0 0.0
          %489 = vmatprep.subr.mxu0 0.0
          %490 = vmatpush1.msra.mxu0 0.0
          %491 = vmatprep.subr.mxu0 0.0
          %492 = vmatpush1.msra.mxu0 0.0
          %493 = vmatprep.subr.mxu0 0.0
          %494 = vmatpush1.msra.mxu0 0.0
          %495 = vmatprep.subr.mxu0 0.0
          %496 = vmatpush1.msra.mxu0 0.0
          %497 = vmatprep.subr.mxu0 0.0
          %498 = vmatpush1.msra.mxu0 0.0
          %499 = vmatprep.subr.mxu0 0.0
          %500 = vmatpush1.msra.mxu0 0.0
          %501 = vmatprep.subr.mxu0 0.0
          %502 = vmatpush1.msra.mxu0 0.0
          %503 = vmatprep.subr.mxu0 0.0
          %504 = vmatpush1.msra.mxu0 0.0
          %505 = vmatprep.subr.mxu0 0.0
          %506 = vmatpush1.msra.mxu0 0.0
          %507 = vmatprep.subr.mxu0 0.0
          %508 = vmatpush1.msra.mxu0 0.0
          %509 = vmatprep.subr.mxu0 0.0
          %510 = vmatpush1.msra.mxu0 0.0
          %511 = vmatprep.subr.mxu0 0.0
          %512 = vmatpush1.msra.mxu0 0.0
          %513 = vmatprep.subr.mxu0 0.0
          %514 = vmatpush1.msra.mxu0 0.0
          %515 = vmatprep.subr.mxu0 0.0
          %516 = vmatpush1.msra.mxu0 0.0
          %517 = vmatprep.subr.mxu0 0.0
          %518 = vmatpush1.msra.mxu0 0.0
          %519 = vmatprep.subr.mxu0 0.0
          %520 = vmatpush1.msra.mxu0 0.0
          %521 = vmatprep.mubr.f32.mxu0 0.0
          %522 = vmatmul.mubr.f32.gmra.mrb[0].mxu0 %v455
          %v523 = vpop.f32.mrb[0].mxu0
          %v524 = vadd.f32 %v451, %v523
          %v525 = vpop.f32.mrb[0].mxu0
          %526 = vdwg.mxu0
          %v527 = vld [vmem:[%s423] sm:$0xff]
          %v528 = vadd.f32 %v524, %v527
          %529 = vst.msk [vmem:[#allocation2] sm:$0xff] %vm453, %v528
          %v530 = vld [vmem:[%s4] sm:$0x1]
          %v531 = vld [vmem:[%s5] sm:$0x1]
          %v532 = vsel %vm453, %v528, 0.0
          %533 = vadd.xlane.f32.xlu0 %v532
          %v534 = vpop.xlane.xlu0 %533
          %v535 = vrcp.pop 32.0
          %v536 = vmul.f32 %v534, %v535
          %v537 = vsub.f32 %v528, %v536
          %v538 = vmul.f32 %v537, %v537
          %v539 = vsel %vm453, %v538, 0.0
          %540 = vadd.xlane.f32.xlu0 %v539
          %v541 = vpop.xlane.xlu0 %540
          %v542 = vmul.f32 %v541, %v535
          %v543 = vadd.f32 %v542, 1e-06
          %v544 = vrsqrt.pop %v543
          %v545 = vmul.f32 %v537, %v544
          %v547 = vlaneseq
          %v548 = vshrl.u32 %v547, 7
          %v549 = vsub.s32 0, %v548
          %v550 = vrot.slane %v530, %v549
          %v552 = vmul.f32 %v545, %v550
          %v554 = vlaneseq
          %v555 = vshrl.u32 %v554, 7
          %v556 = vsub.s32 0, %v555
          %v557 = vrot.slane %v531, %v556
          %v559 = vadd.f32 %v552, %v557
          %560 = vst.msk [vmem:[#allocation3] sm:$0xff] %vm453, %v559
          %561 = vst.msk [vmem:[#allocation4] sm:$0xff] %vm453, 0.0
        $region64: #{block_forward.5} parent=59 // pred_fallthru
          _
        %v562 = vld [vmem:[#allocation3] sm:$0xff]
        %v563 = vld [vmem:[%s427] sm:$0xff]
        %v564 = vld [vmem:[%s427 + $0x8] sm:$0xff]
        %v565 = vld [vmem:[%s427 + $0x10] sm:$0xff]
        %v566 = vld [vmem:[%s427 + $0x18] sm:$0xff]
        %v567 = vld [vmem:[%s430] sm:$0x1]
        %v569 = vlaneseq
        %v570 = vshrl.u32 %v569, 7
        %v571 = vsub.s32 0, %v570
        %v572 = vrot.slane %v567, %v571
        %vm574 = vcmask 261120
        %v576 = vsel %vm574, %v562, 0
        %578 = vmatprep.subr.mxu0 0.0
        %579 = vmatpush1.msra.mxu0 %v563
        %580 = vmatprep.subr.mxu0 0.0
        %581 = vmatpush1.msra.mxu0 %v564
        %582 = vmatprep.subr.mxu0 0.0
        %583 = vmatpush1.msra.mxu0 %v565
        %584 = vmatprep.subr.mxu0 0.0
        %585 = vmatpush1.msra.mxu0 %v566
        %586 = vmatprep.subr.mxu0 0.0
        %587 = vmatpush1.msra.mxu0 0.0
        %588 = vmatprep.subr.mxu0 0.0
        %589 = vmatpush1.msra.mxu0 0.0
        %590 = vmatprep.subr.mxu0 0.0
        %591 = vmatpush1.msra.mxu0 0.0
        %592 = vmatprep.subr.mxu0 0.0
        %593 = vmatpush1.msra.mxu0 0.0
        %594 = vmatprep.subr.mxu0 0.0
        %595 = vmatpush1.msra.mxu0 0.0
        %596 = vmatprep.subr.mxu0 0.0
        %597 = vmatpush1.msra.mxu0 0.0
        %598 = vmatprep.subr.mxu0 0.0
        %599 = vmatpush1.msra.mxu0 0.0
        %600 = vmatprep.subr.mxu0 0.0
        %601 = vmatpush1.msra.mxu0 0.0
        %602 = vmatprep.subr.mxu0 0.0
        %603 = vmatpush1.msra.mxu0 0.0
        %604 = vmatprep.subr.mxu0 0.0
        %605 = vmatpush1.msra.mxu0 0.0
        %606 = vmatprep.subr.mxu0 0.0
        %607 = vmatpush1.msra.mxu0 0.0
        %608 = vmatprep.subr.mxu0 0.0
        %609 = vmatpush1.msra.mxu0 0.0
        %610 = vmatprep.subr.mxu0 0.0
        %611 = vmatpush1.msra.mxu0 0.0
        %612 = vmatprep.subr.mxu0 0.0
        %613 = vmatpush1.msra.mxu0 0.0
        %614 = vmatprep.subr.mxu0 0.0
        %615 = vmatpush1.msra.mxu0 0.0
        %616 = vmatprep.subr.mxu0 0.0
        %617 = vmatpush1.msra.mxu0 0.0
        %618 = vmatprep.subr.mxu0 0.0
        %619 = vmatpush1.msra.mxu0 0.0
        %620 = vmatprep.subr.mxu0 0.0
        %621 = vmatpush1.msra.mxu0 0.0
        %622 = vmatprep.subr.mxu0 0.0
        %623 = vmatpush1.msra.mxu0 0.0
        %624 = vmatprep.subr.mxu0 0.0
        %625 = vmatpush1.msra.mxu0 0.0
        %626 = vmatprep.subr.mxu0 0.0
        %627 = vmatpush1.msra.mxu0 0.0
        %628 = vmatprep.subr.mxu0 0.0
        %629 = vmatpush1.msra.mxu0 0.0
        %630 = vmatprep.subr.mxu0 0.0
        %631 = vmatpush1.msra.mxu0 0.0
        %632 = vmatprep.subr.mxu0 0.0
        %633 = vmatpush1.msra.mxu0 0.0
        %634 = vmatprep.subr.mxu0 0.0
        %635 = vmatpush1.msra.mxu0 0.0
        %636 = vmatprep.subr.mxu0 0.0
        %637 = vmatpush1.msra.mxu0 0.0
        %638 = vmatprep.subr.mxu0 0.0
        %639 = vmatpush1.msra.mxu0 0.0
        %640 = vmatprep.subr.mxu0 0.0
        %641 = vmatpush1.msra.mxu0 0.0
        %642 = vmatprep.mubr.f32.mxu0 0.0
        %643 = vmatmul.mubr.f32.gmra.mrb[0].mxu0 %v576
        %v644 = vpop.f32.mrb[0].mxu0
        %v645 = vadd.f32 %v572, %v644
        %v646 = vpop.f32.mrb[0].mxu0
        %647 = vdwg.mxu0
        %v648 = vmul.f32 %v645, 0.5
        %v649 = vmul.f32 %v645, 0.70710677
        %v650 = verf.f32.pop %v649
        %v651 = vadd.f32 %v650, 1.0
        %v652 = vmul.f32 %v648, %v651
        %v653 = vld [vmem:[#allocation4] sm:$0xff]
        %v654 = vld [vmem:[%s435] sm:$0xff]
        %v655 = vld [vmem:[%s435 + $0x8] sm:$0xff]
        %v656 = vld [vmem:[%s435 + $0x10] sm:$0xff]
        %v657 = vld [vmem:[%s435 + $0x18] sm:$0xff]
        %v658 = vld [vmem:[%s435 + $0x20] sm:$0xff]
        %v659 = vld [vmem:[%s435 + $0x28] sm:$0xff]
        %v660 = vld [vmem:[%s435 + $0x30] sm:$0xff]
        %v661 = vld [vmem:[%s435 + $0x38] sm:$0xff]
        %v662 = vld [vmem:[%s435 + $0x40] sm:$0xff]
        %v663 = vld [vmem:[%s435 + $0x48] sm:$0xff]
        %v664 = vld [vmem:[%s435 + $0x50] sm:$0xff]
        %v665 = vld [vmem:[%s435 + $0x58] sm:$0xff]
        %v666 = vld [vmem:[%s435 + $0x60] sm:$0xff]
        %v667 = vld [vmem:[%s435 + $0x68] sm:$0xff]
        %v668 = vld [vmem:[%s435 + $0x70] sm:$0xff]
        %v669 = vld [vmem:[%s435 + $0x78] sm:$0xff]
        %670 = vmatprep.subr.mxu0 0.0
        %671 = vmatpush1.msra.mxu0 %v654
        %672 = vmatprep.subr.mxu0 0.0
        %673 = vmatpush1.msra.mxu0 %v655
        %674 = vmatprep.subr.mxu0 0.0
        %675 = vmatpush1.msra.mxu0 %v656
        %676 = vmatprep.subr.mxu0 0.0
        %677 = vmatpush1.msra.mxu0 %v657
        %678 = vmatprep.subr.mxu0 0.0
        %679 = vmatpush1.msra.mxu0 %v658
        %680 = vmatprep.subr.mxu0 0.0
        %681 = vmatpush1.msra.mxu0 %v659
        %682 = vmatprep.subr.mxu0 0.0
        %683 = vmatpush1.msra.mxu0 %v660
        %684 = vmatprep.subr.mxu0 0.0
        %685 = vmatpush1.msra.mxu0 %v661
        %686 = vmatprep.subr.mxu0 0.0
        %687 = vmatpush1.msra.mxu0 %v662
        %688 = vmatprep.subr.mxu0 0.0
        %689 = vmatpush1.msra.mxu0 %v663
        %690 = vmatprep.subr.mxu0 0.0
        %691 = vmatpush1.msra.mxu0 %v664
        %692 = vmatprep.subr.mxu0 0.0
        %693 = vmatpush1.msra.mxu0 %v665
        %694 = vmatprep.subr.mxu0 0.0
        %695 = vmatpush1.msra.mxu0 %v666
        %696 = vmatprep.subr.mxu0 0.0
        %697 = vmatpush1.msra.mxu0 %v667
        %698 = vmatprep.subr.mxu0 0.0
        %699 = vmatpush1.msra.mxu0 %v668
        %700 = vmatprep.subr.mxu0 0.0
        %701 = vmatpush1.msra.mxu0 %v669
        %702 = vmatprep.subr.mxu0 0.0
        %703 = vmatpush1.msra.mxu0 0.0
        %704 = vmatprep.subr.mxu0 0.0
        %705 = vmatpush1.msra.mxu0 0.0
        %706 = vmatprep.subr.mxu0 0.0
        %707 = vmatpush1.msra.mxu0 0.0
        %708 = vmatprep.subr.mxu0 0.0
        %709 = vmatpush1.msra.mxu0 0.0
        %710 = vmatprep.subr.mxu0 0.0
        %711 = vmatpush1.msra.mxu0 0.0
        %712 = vmatprep.subr.mxu0 0.0
        %713 = vmatpush1.msra.mxu0 0.0
        %714 = vmatprep.subr.mxu0 0.0
        %715 = vmatpush1.msra.mxu0 0.0
        %716 = vmatprep.subr.mxu0 0.0
        %717 = vmatpush1.msra.mxu0 0.0
        %718 = vmatprep.subr.mxu0 0.0
        %719 = vmatpush1.msra.mxu0 0.0
        %720 = vmatprep.subr.mxu0 0.0
        %721 = vmatpush1.msra.mxu0 0.0
        %722 = vmatprep.subr.mxu0 0.0
        %723 = vmatpush1.msra.mxu0 0.0
        %724 = vmatprep.subr.mxu0 0.0
        %725 = vmatpush1.msra.mxu0 0.0
        %726 = vmatprep.subr.mxu0 0.0
        %727 = vmatpush1.msra.mxu0 0.0
        %728 = vmatprep.subr.mxu0 0.0
        %729 = vmatpush1.msra.mxu0 0.0
        %730 = vmatprep.subr.mxu0 0.0
        %731 = vmatpush1.msra.mxu0 0.0
        %732 = vmatprep.subr.mxu0 0.0
        %733 = vmatpush1.msra.mxu0 0.0
        %734 = vmatprep.mubr.f32.mxu0 0.0
        %735 = vmatmul.mubr.f32.gmra.mrb[0].mxu0 %v652
        %v736 = vpop.f32.mrb[0].mxu0
        %v737 = vadd.f32 0.0, %v736
        %v738 = vpop.f32.mrb[0].mxu0
        %739 = vdwg.mxu0
        %v740 = vadd.f32 %v653, %v737
        %741 = vst.msk [vmem:[#allocation4] sm:$0xff] %vm574, %v740
        // Predicated region
        $region65: #{block_forward.5} parent=59 // pred_check
          %p742 = pneg %p437
        $region66: #{block_forward.5} parent=59 // pred_check_branch
          %744 = sbr.rel (%p742) target = $region68
        $region67: #{block_forward.5} parent=59 // pred_region
          %v745 = vld [vmem:[#allocation4] sm:$0xff]
          %v746 = vld [vmem:[%s9] sm:$0x1]
          %v748 = vlaneseq
          %v749 = vshrl.u32 %v748, 7
          %v750 = vsub.s32 0, %v749
          %v751 = vrot.slane %v746, %v750
          %v753 = vadd.f32 %v745, %v751
          %v754 = vld [vmem:[#allocation2] sm:$0xff]
          %v755 = vadd.f32 %v753, %v754
          %756 = vst.msk [vmem:[%s415] sm:$0xff] %vm574, %v755
        $region68: #{block_forward.5} parent=59 // pred_fallthru
          _
        %s757 = sand.u32 %s279, 1
        %s758 = scalar_lea.sflag [#allocation6], %s757
        %s759 = sand.u32 %s279, 1
        %s760 = smul.addr %s759, 8
        %s761 = scalar_lea.vmem [#allocation5], %s760
        // Predicated region
        $region69: #{block_forward.5} parent=59 // pred_check
          %p762 = pneg %p289
        $region70: #{block_forward.5} parent=59 // pred_check_branch
          %764 = sbr.rel (%p762) target = $region72
        $region71: #{block_forward.5} parent=59 // pred_region
          %s766 = ssub.s32 128, 128
          %767 = vsyncadd %s758, %s766
          %s768 = smul.addr %s28, 128
          %s769 = scalar_lea.hbm %s10, %s768
          %s771 = sshll.u32 %s761, 4
          %s772 = int_to_ptr.vmem [resolvable:$true] %s771
          %774 = dma.vmem_to_hbm [thread:$0]  %s772, 128, %s769, %s758
        $region72: #{block_forward.5} parent=59 // pred_fallthru
          _
      $region60: #{block_forward.5} parent=5 // pred_fallthru
        _
      %p775 = scmp.le.s32.totalorder 2, %s19
      // Predicated region
      $region73: #{block_forward.5} parent=5 // pred_check
        %p776 = pneg %p775
      $region74: #{block_forward.5} parent=5 // pred_check_branch
        %778 = sbr.rel (%p776) target = $region76
      $region75: #{block_forward.5} parent=5 // pred_region
        %s779 = ssub.s32 %s19, 2
        // Predicated region
        $region77: #{block_forward.5} parent=75 // pred_check
          %p780 = pneg %p295
        $region78: #{block_forward.5} parent=75 // pred_check_branch
          %782 = sbr.rel (%p780) target = $region80
        $region79: #{block_forward.5} parent=75 // pred_region
          %s783 = sand.u32 %s280, 1
          %s784 = scalar_lea.sflag [#allocation6], %s783
          %s785 = sand.u32 %s280, 1
          %s786 = smul.addr %s785, 8
          %s787 = scalar_lea.vmem [#allocation5], %s786
          %788 = dma.done %s784, 128
        $region80: #{block_forward.5} parent=75 // pred_fallthru
          _
      $region76: #{block_forward.5} parent=5 // pred_fallthru
        _
    $region6: #{block_forward.5} parent=1 // loop_footer
      %s23 = sadd.s32 1, %s19
    $region7: #{block_forward.5} parent=1 // loop_footer_branch
      %18 = sbr.rel target = $region3
    $region8: #{block_forward.5} parent=1 // loop_exit
      _
    %789 = vsyncpa [#allocation6], 1
    %s790 = scalar_lea.sflag [#allocation6], 1
    %791 = vsyncpa %s790, 1

</llo_original>
